<compile_context>
chip_gen: v5e
topology: v5e:2x2
jax: 0.10.0
libtpu: 0.0.40
codegen_flags: <defaults>
</compile_context>

<pallas_src>
import functools

import jax
import jax.numpy as jnp
from jax.experimental import pallas as pl
from jax.experimental.pallas import tpu as pltpu


# ----------------------------------------------------------------------------
# Single fused kernel
# ----------------------------------------------------------------------------
def _fused_lstm_kernel(x_ref,
                       wih0_ref, whh0_ref, b0_ref,
                       wih1_ref, whh1_ref, b1_ref,
                       w2_ref, b2_ref, w3_ref, b3_ref,
                       out_ref,
                       y_sc,
                       *, T, B):
    """2-layer LSTM -> Linear -> ReLU -> Linear -> mean over time, all in VMEM.

    x_ref:    (T*B, D)   time-major flattened input
    wih*_ref: (Din, 4H)  input projection (gate order i, f, g, o)
    whh*_ref: (4, H, H)  recurrent weights split per gate along the leading dim
    b*_ref:   (1, 4H)    b_ih + b_hh
    w2/b2:    (H, H), (1, H)     head layer 2
    w3/b3:    (H, O), (1, O)     head layer 3
    out_ref:  (B, O)
    y_sc:     (T*B, H) VMEM scratch holding the current layer's hidden sequence
    """

    def run_layer(x2d, wih_ref, whh_ref, b_ref):
        H = whh_ref.shape[-1]
        # Hoisted, batched input projection: one (T*B, Din) x (Din, 4H) matmul,
        # bias folded in once (no per-step broadcast inside the recurrence).
        xp_all = jnp.dot(x2d, wih_ref[...],
                         preferred_element_type=jnp.float32) + b_ref[...]
        # One-time per-gate split (outside the time loop).
        xp = [xp_all[:, k * H:(k + 1) * H] for k in range(4)]

        h = None
        c = None
        for t in range(T):  # statically unrolled recurrence (T is small)
            lo = t * B
            if t == 0:
                # h == 0, c == 0 at t=0: skip the recurrent matmuls entirely.
                pre = [xp[k][lo:lo + B, :] for k in range(4)]
            else:
                # Per-gate recurrent matmul: gate selection is a leading-dim
                # index on (4, H, H) — no per-step lane-offset slicing.
                pre = [xp[k][lo:lo + B, :]
                       + jnp.dot(h, whh_ref[k],
                                 preferred_element_type=jnp.float32)
                       for k in range(4)]
            i_g = jax.nn.sigmoid(pre[0])
            f_g = jax.nn.sigmoid(pre[1])
            g_g = jnp.tanh(pre[2])
            o_g = jax.nn.sigmoid(pre[3])
            c = i_g * g_g if t == 0 else f_g * c + i_g * g_g
            h = o_g * jnp.tanh(c)
            y_sc[lo:lo + B, :] = h
        # Full hidden sequence of this layer, assembled in VMEM scratch.
        return y_sc[...]  # (T*B, H)

    y = run_layer(x_ref[...].astype(jnp.float32), wih0_ref, whh0_ref, b0_ref)
    y = run_layer(y, wih1_ref, whh1_ref, b1_ref)

    # Head: batched over all T*B rows — two matmuls total instead of T small ones.
    z = jnp.dot(y, w2_ref[...], preferred_element_type=jnp.float32) + b2_ref[...]
    z = jnp.maximum(z, 0.0)
    o = jnp.dot(z, w3_ref[...], preferred_element_type=jnp.float32) + b3_ref[...]

    # Mean over the time axis (rows are t-major, b-minor).
    acc = o[0:B, :]
    for t in range(1, T):
        acc = acc + o[t * B:(t + 1) * B, :]
    out_ref[...] = (acc * (1.0 / T)).astype(out_ref.dtype)


# ----------------------------------------------------------------------------
# Wrapper: one pallas_call, everything resident in VMEM.
# ----------------------------------------------------------------------------
def lstm_model_forward(x, params):
    T, B, D = x.shape
    l0, l1 = params["lstm"]
    H = l0["whh_g"].shape[-1]
    O = params["w3_t"].shape[1]
    x2d = x.reshape(T * B, D)

    def full(shape):
        if len(shape) == 2:
            return pl.BlockSpec(shape, lambda i: (0, 0))
        return pl.BlockSpec(shape, lambda i: (0, 0, 0))

    kernel = functools.partial(_fused_lstm_kernel, T=T, B=B)
    return pl.pallas_call(
        kernel,
        out_shape=jax.ShapeDtypeStruct((B, O), x.dtype),
        grid_spec=pltpu.PrefetchScalarGridSpec(
            num_scalar_prefetch=0,
            grid=(1,),
            in_specs=[
                full((T * B, D)),
                full((D, 4 * H)), full((4, H, H)), full((1, 4 * H)),
                full((H, 4 * H)), full((4, H, H)), full((1, 4 * H)),
                full((H, H)), full((1, H)),
                full((H, O)), full((1, O)),
            ],
            out_specs=full((B, O)),
            scratch_shapes=[pltpu.VMEM((T * B, H), jnp.float32)],
        ),
        compiler_params=pltpu.CompilerParams(
            dimension_semantics=("arbitrary",),
            vmem_limit_bytes=32 * 1024 * 1024,
        ),
    )(x2d,
      l0["wih_t"], l0["whh_g"], l0["b"],
      l1["wih_t"], l1["whh_g"], l1["b"],
      params["w2_t"], params["b2"], params["w3_t"], params["b3"])


# ----------------------------------------------------------------------------
# Pure-JAX reference for correctness checking.
# ----------------------------------------------------------------------------
def reference_forward(x, params):
    T, B, _ = x.shape
    y = x
    for layer in params["lstm"]:
        H = layer["whh_t"].shape[0]
        h = jnp.zeros((B, H), jnp.float32)
        c = jnp.zeros((B, H), jnp.float32)
        outs = []
        for t in range(T):
            gates = y[t] @ layer["wih_t"] + h @ layer["whh_t"] + layer["b"]
            i = jax.nn.sigmoid(gates[:, 0 * H:1 * H])
            f = jax.nn.sigmoid(gates[:, 1 * H:2 * H])
            g = jnp.tanh(gates[:, 2 * H:3 * H])
            o = jax.nn.sigmoid(gates[:, 3 * H:4 * H])
            c = f * c + i * g
            h = o * jnp.tanh(c)
            outs.append(h)
        y = jnp.stack(outs, axis=0)
    z = jnp.maximum(y @ params["w2_t"] + params["b2"], 0.0)
    out = z @ params["w3_t"] + params["b3"]
    return jnp.mean(out, axis=0)


def init_params(key, input_size, hidden_size, output_size, num_layers):
    bound = 1.0 / jnp.sqrt(hidden_size)
    params = {"lstm": []}
    for l in range(num_layers):
        d_in = input_size if l == 0 else hidden_size
        key, k1, k2, k3, k4 = jax.random.split(key, 5)
        w_ih = jax.random.uniform(k1, (4 * hidden_size, d_in), jnp.float32, -bound, bound)
        w_hh = jax.random.uniform(k2, (4 * hidden_size, hidden_size), jnp.float32, -bound, bound)
        b_ih = jax.random.uniform(k3, (4 * hidden_size,), jnp.float32, -bound, bound)
        b_hh = jax.random.uniform(k4, (4 * hidden_size,), jnp.float32, -bound, bound)
        params["lstm"].append({
            "wih_t": w_ih.T,                                               # (D, 4H)
            "whh_t": w_hh.T,                                               # (H, 4H) — reference only
            "whh_g": w_hh.reshape(4, hidden_size, hidden_size)             # (4, H_out, H_in)
                         .transpose(0, 2, 1),                              # -> (4, H_in, H_out)
            "b": (b_ih + b_hh).reshape(1, -1),                             # (1, 4H)
        })
    key, k5, k6, k7, k8 = jax.random.split(key, 5)
    hb = 1.0 / jnp.sqrt(hidden_size)
    w2 = jax.random.uniform(k5, (hidden_size, hidden_size), jnp.float32, -hb, hb)
    b2 = jax.random.uniform(k6, (hidden_size,), jnp.float32, -hb, hb)
    w3 = jax.random.uniform(k7, (output_size, hidden_size), jnp.float32, -hb, hb)
    b3 = jax.random.uniform(k8, (output_size,), jnp.float32, -hb, hb)
    params["w2_t"] = w2.T
    params["b2"] = b2.reshape(1, -1)
    params["w3_t"] = w3.T
    params["b3"] = b3.reshape(1, -1)
    return params


if __name__ == "__main__":
    # Small shapes consistent with the module: seq-first LSTM input (T, B, input_size)
    T, B = 8, 2
    input_size = hidden_size = output_size = 32
    num_layers = 2

    key = jax.random.PRNGKey(0)
    key, kx = jax.random.split(key)
    x = jax.random.normal(kx, (T, B, input_size), jnp.float32)

    params = init_params(key, input_size, hidden_size, output_size, num_layers)

    out = lstm_model_forward(x, params)
    out = jax.block_until_ready(out)

    ref = reference_forward(x, params)
    assert out.shape == (B, output_size), out.shape
    assert jnp.allclose(out, ref, atol=1e-4, rtol=1e-4), float(jnp.max(jnp.abs(out - ref)))

    print("KERNEL_OK")
</pallas_src>

<mosaic_0001>
module attributes {stable_mosaic.version = 11 : i64} {
  func.func @_fused_lstm_kernel(%arg0: i32, %arg1: memref<16x32xf32, #tpu.memory_space<vmem>>, %arg2: memref<32x128xf32, #tpu.memory_space<vmem>>, %arg3: memref<4x32x32xf32, #tpu.memory_space<vmem>>, %arg4: memref<1x128xf32, #tpu.memory_space<vmem>>, %arg5: memref<32x128xf32, #tpu.memory_space<vmem>>, %arg6: memref<4x32x32xf32, #tpu.memory_space<vmem>>, %arg7: memref<1x128xf32, #tpu.memory_space<vmem>>, %arg8: memref<32x32xf32, #tpu.memory_space<vmem>>, %arg9: memref<1x32xf32, #tpu.memory_space<vmem>>, %arg10: memref<32x32xf32, #tpu.memory_space<vmem>>, %arg11: memref<1x32xf32, #tpu.memory_space<vmem>>, %arg12: memref<2x32xf32, #tpu.memory_space<vmem>>, %arg13: memref<16x32xf32, #tpu.memory_space<vmem>>) attributes {dimension_semantics = [#tpu.dimension_semantics<arbitrary>], iteration_bounds = array<i64: 1>, scalar_prefetch = 0 : i64, scratch_operands = 1 : i64, tpu.core_type = #tpu.core_type<tc>, window_params = [{pipeline_mode = #tpu.pipeline_mode<synchronous>, transform_indices = @transform_0, window_bounds = array<i64: 16, 32>}, {pipeline_mode = #tpu.pipeline_mode<synchronous>, transform_indices = @transform_1, window_bounds = array<i64: 32, 128>}, {pipeline_mode = #tpu.pipeline_mode<synchronous>, transform_indices = @transform_2, window_bounds = array<i64: 4, 32, 32>}, {pipeline_mode = #tpu.pipeline_mode<synchronous>, transform_indices = @transform_3, window_bounds = array<i64: 1, 128>}, {pipeline_mode = #tpu.pipeline_mode<synchronous>, transform_indices = @transform_4, window_bounds = array<i64: 32, 128>}, {pipeline_mode = #tpu.pipeline_mode<synchronous>, transform_indices = @transform_5, window_bounds = array<i64: 4, 32, 32>}, {pipeline_mode = #tpu.pipeline_mode<synchronous>, transform_indices = @transform_6, window_bounds = array<i64: 1, 128>}, {pipeline_mode = #tpu.pipeline_mode<synchronous>, transform_indices = @transform_7, window_bounds = array<i64: 32, 32>}, {pipeline_mode = #tpu.pipeline_mode<synchronous>, transform_indices = @transform_8, window_bounds = array<i64: 1, 32>}, {pipeline_mode = #tpu.pipeline_mode<synchronous>, transform_indices = @transform_9, window_bounds = array<i64: 32, 32>}, {pipeline_mode = #tpu.pipeline_mode<synchronous>, transform_indices = @transform_10, window_bounds = array<i64: 1, 32>}, {pipeline_mode = #tpu.pipeline_mode<synchronous>, transform_indices = @transform_11, window_bounds = array<i64: 2, 32>}]} {
    %c0 = arith.constant 0 : index
    %c0_0 = arith.constant 0 : index
    %0 = vector.load %arg1[%c0, %c0_0] : memref<16x32xf32, #tpu.memory_space<vmem>>, vector<16x32xf32>
    %c0_1 = arith.constant 0 : index
    %c0_2 = arith.constant 0 : index
    %1 = vector.load %arg2[%c0_1, %c0_2] : memref<32x128xf32, #tpu.memory_space<vmem>>, vector<32x128xf32>
    %cst = arith.constant dense<0.000000e+00> : vector<16x128xf32>
    %2 = tpu.matmul %0, %1, %cst {dimension_numbers = #tpu.dot_dimension_numbers<[1], [0], [0], [1], [0, 0, 1, 1], [], []>} : vector<16x32xf32>, vector<32x128xf32>, vector<16x128xf32> -> vector<16x128xf32>
    %c0_3 = arith.constant 0 : index
    %c0_4 = arith.constant 0 : index
    %3 = vector.load %arg4[%c0_3, %c0_4] : memref<1x128xf32, #tpu.memory_space<vmem>>, vector<1x128xf32>
    %4 = vector.broadcast %3 : vector<1x128xf32> to vector<16x128xf32>
    %5 = arith.addf %2, %4 : vector<16x128xf32>
    %6 = vector.extract_strided_slice %5 {offsets = [0, 0], sizes = [16, 32], strides = [1, 1]} : vector<16x128xf32> to vector<16x32xf32>
    %7 = vector.extract_strided_slice %5 {offsets = [0, 32], sizes = [16, 32], strides = [1, 1]} : vector<16x128xf32> to vector<16x32xf32>
    %8 = vector.extract_strided_slice %5 {offsets = [0, 64], sizes = [16, 32], strides = [1, 1]} : vector<16x128xf32> to vector<16x32xf32>
    %9 = vector.extract_strided_slice %5 {offsets = [0, 96], sizes = [16, 32], strides = [1, 1]} : vector<16x128xf32> to vector<16x32xf32>
    %10 = vector.extract_strided_slice %6 {offsets = [0, 0], sizes = [2, 32], strides = [1, 1]} : vector<16x32xf32> to vector<2x32xf32>
    %11 = vector.extract_strided_slice %8 {offsets = [0, 0], sizes = [2, 32], strides = [1, 1]} : vector<16x32xf32> to vector<2x32xf32>
    %12 = vector.extract_strided_slice %9 {offsets = [0, 0], sizes = [2, 32], strides = [1, 1]} : vector<16x32xf32> to vector<2x32xf32>
    %13 = arith.negf %10 : vector<2x32xf32>
    %14 = math.exp %13 : vector<2x32xf32>
    %cst_5 = arith.constant 1.000000e+00 : f32
    %15 = vector.broadcast %cst_5 : f32 to vector<2x32xf32>
    %16 = arith.addf %15, %14 : vector<2x32xf32>
    %17 = arith.divf %15, %16 : vector<2x32xf32>
    %18 = math.tanh %11 : vector<2x32xf32>
    %19 = arith.negf %12 : vector<2x32xf32>
    %20 = math.exp %19 : vector<2x32xf32>
    %cst_6 = arith.constant 1.000000e+00 : f32
    %21 = vector.broadcast %cst_6 : f32 to vector<2x32xf32>
    %22 = arith.addf %21, %20 : vector<2x32xf32>
    %23 = arith.divf %21, %22 : vector<2x32xf32>
    %24 = arith.mulf %17, %18 : vector<2x32xf32>
    %25 = math.tanh %24 : vector<2x32xf32>
    %26 = arith.mulf %23, %25 : vector<2x32xf32>
    %c0_7 = arith.constant 0 : index
    %c0_8 = arith.constant 0 : index
    %27 = vector.load %arg13[%c0_7, %c0_8] : memref<16x32xf32, #tpu.memory_space<vmem>>, vector<2x32xf32>
    tpu.vector_store %arg13[%c0_7, %c0_8], %26 {strides = array<i32>} : memref<16x32xf32, #tpu.memory_space<vmem>>, vector<2x32xf32>,
    %28 = vector.extract_strided_slice %6 {offsets = [2, 0], sizes = [2, 32], strides = [1, 1]} : vector<16x32xf32> to vector<2x32xf32>
    %c0_9 = arith.constant 0 : index
    %c0_10 = arith.constant 0 : index
    %c0_11 = arith.constant 0 : index
    %29 = vector.load %arg3[%c0_9, %c0_10, %c0_11] : memref<4x32x32xf32, #tpu.memory_space<vmem>>, vector<1x32x32xf32>
    %30 = vector.shape_cast %29 : vector<1x32x32xf32> to vector<32x32xf32>
    %cst_12 = arith.constant dense<0.000000e+00> : vector<2x32xf32>
    %31 = tpu.matmul %26, %30, %cst_12 {dimension_numbers = #tpu.dot_dimension_numbers<[1], [0], [0], [1], [0, 0, 1, 1], [], []>} : vector<2x32xf32>, vector<32x32xf32>, vector<2x32xf32> -> vector<2x32xf32>
    %32 = arith.addf %28, %31 : vector<2x32xf32>
    %33 = vector.extract_strided_slice %7 {offsets = [2, 0], sizes = [2, 32], strides = [1, 1]} : vector<16x32xf32> to vector<2x32xf32>
    %c1 = arith.constant 1 : index
    %c0_13 = arith.constant 0 : index
    %c0_14 = arith.constant 0 : index
    %34 = vector.load %arg3[%c1, %c0_13, %c0_14] : memref<4x32x32xf32, #tpu.memory_space<vmem>>, vector<1x32x32xf32>
    %35 = vector.shape_cast %34 : vector<1x32x32xf32> to vector<32x32xf32>
    %cst_15 = arith.constant dense<0.000000e+00> : vector<2x32xf32>
    %36 = tpu.matmul %26, %35, %cst_15 {dimension_numbers = #tpu.dot_dimension_numbers<[1], [0], [0], [1], [0, 0, 1, 1], [], []>} : vector<2x32xf32>, vector<32x32xf32>, vector<2x32xf32> -> vector<2x32xf32>
    %37 = arith.addf %33, %36 : vector<2x32xf32>
    %38 = vector.extract_strided_slice %8 {offsets = [2, 0], sizes = [2, 32], strides = [1, 1]} : vector<16x32xf32> to vector<2x32xf32>
    %c2 = arith.constant 2 : index
    %c0_16 = arith.constant 0 : index
    %c0_17 = arith.constant 0 : index
    %39 = vector.load %arg3[%c2, %c0_16, %c0_17] : memref<4x32x32xf32, #tpu.memory_space<vmem>>, vector<1x32x32xf32>
    %40 = vector.shape_cast %39 : vector<1x32x32xf32> to vector<32x32xf32>
    %cst_18 = arith.constant dense<0.000000e+00> : vector<2x32xf32>
    %41 = tpu.matmul %26, %40, %cst_18 {dimension_numbers = #tpu.dot_dimension_numbers<[1], [0], [0], [1], [0, 0, 1, 1], [], []>} : vector<2x32xf32>, vector<32x32xf32>, vector<2x32xf32> -> vector<2x32xf32>
    %42 = arith.addf %38, %41 : vector<2x32xf32>
    %43 = vector.extract_strided_slice %9 {offsets = [2, 0], sizes = [2, 32], strides = [1, 1]} : vector<16x32xf32> to vector<2x32xf32>
    %c3 = arith.constant 3 : index
    %c0_19 = arith.constant 0 : index
    %c0_20 = arith.constant 0 : index
    %44 = vector.load %arg3[%c3, %c0_19, %c0_20] : memref<4x32x32xf32, #tpu.memory_space<vmem>>, vector<1x32x32xf32>
    %45 = vector.shape_cast %44 : vector<1x32x32xf32> to vector<32x32xf32>
    %cst_21 = arith.constant dense<0.000000e+00> : vector<2x32xf32>
    %46 = tpu.matmul %26, %45, %cst_21 {dimension_numbers = #tpu.dot_dimension_numbers<[1], [0], [0], [1], [0, 0, 1, 1], [], []>} : vector<2x32xf32>, vector<32x32xf32>, vector<2x32xf32> -> vector<2x32xf32>
    %47 = arith.addf %43, %46 : vector<2x32xf32>
    %48 = arith.negf %32 : vector<2x32xf32>
    %49 = math.exp %48 : vector<2x32xf32>
    %cst_22 = arith.constant 1.000000e+00 : f32
    %50 = vector.broadcast %cst_22 : f32 to vector<2x32xf32>
    %51 = arith.addf %50, %49 : vector<2x32xf32>
    %52 = arith.divf %50, %51 : vector<2x32xf32>
    %53 = arith.negf %37 : vector<2x32xf32>
    %54 = math.exp %53 : vector<2x32xf32>
    %cst_23 = arith.constant 1.000000e+00 : f32
    %55 = vector.broadcast %cst_23 : f32 to vector<2x32xf32>
    %56 = arith.addf %55, %54 : vector<2x32xf32>
    %57 = arith.divf %55, %56 : vector<2x32xf32>
    %58 = math.tanh %42 : vector<2x32xf32>
    %59 = arith.negf %47 : vector<2x32xf32>
    %60 = math.exp %59 : vector<2x32xf32>
    %cst_24 = arith.constant 1.000000e+00 : f32
    %61 = vector.broadcast %cst_24 : f32 to vector<2x32xf32>
    %62 = arith.addf %61, %60 : vector<2x32xf32>
    %63 = arith.divf %61, %62 : vector<2x32xf32>
    %64 = arith.mulf %57, %24 : vector<2x32xf32>
    %65 = arith.mulf %52, %58 : vector<2x32xf32>
    %66 = arith.addf %64, %65 : vector<2x32xf32>
    %67 = math.tanh %66 : vector<2x32xf32>
    %68 = arith.mulf %63, %67 : vector<2x32xf32>
    %c2_25 = arith.constant 2 : index
    %c0_26 = arith.constant 0 : index
    %69 = vector.load %arg13[%c2_25, %c0_26] : memref<16x32xf32, #tpu.memory_space<vmem>>, vector<2x32xf32>
    tpu.vector_store %arg13[%c2_25, %c0_26], %68 {strides = array<i32>} : memref<16x32xf32, #tpu.memory_space<vmem>>, vector<2x32xf32>,
    %70 = vector.extract_strided_slice %6 {offsets = [4, 0], sizes = [2, 32], strides = [1, 1]} : vector<16x32xf32> to vector<2x32xf32>
    %c0_27 = arith.constant 0 : index
    %c0_28 = arith.constant 0 : index
    %c0_29 = arith.constant 0 : index
    %71 = vector.load %arg3[%c0_27, %c0_28, %c0_29] : memref<4x32x32xf32, #tpu.memory_space<vmem>>, vector<1x32x32xf32>
    %72 = vector.shape_cast %71 : vector<1x32x32xf32> to vector<32x32xf32>
    %cst_30 = arith.constant dense<0.000000e+00> : vector<2x32xf32>
    %73 = tpu.matmul %68, %72, %cst_30 {dimension_numbers = #tpu.dot_dimension_numbers<[1], [0], [0], [1], [0, 0, 1, 1], [], []>} : vector<2x32xf32>, vector<32x32xf32>, vector<2x32xf32> -> vector<2x32xf32>
    %74 = arith.addf %70, %73 : vector<2x32xf32>
    %75 = vector.extract_strided_slice %7 {offsets = [4, 0], sizes = [2, 32], strides = [1, 1]} : vector<16x32xf32> to vector<2x32xf32>
    %c1_31 = arith.constant 1 : index
    %c0_32 = arith.constant 0 : index
    %c0_33 = arith.constant 0 : index
    %76 = vector.load %arg3[%c1_31, %c0_32, %c0_33] : memref<4x32x32xf32, #tpu.memory_space<vmem>>, vector<1x32x32xf32>
    %77 = vector.shape_cast %76 : vector<1x32x32xf32> to vector<32x32xf32>
    %cst_34 = arith.constant dense<0.000000e+00> : vector<2x32xf32>
    %78 = tpu.matmul %68, %77, %cst_34 {dimension_numbers = #tpu.dot_dimension_numbers<[1], [0], [0], [1], [0, 0, 1, 1], [], []>} : vector<2x32xf32>, vector<32x32xf32>, vector<2x32xf32> -> vector<2x32xf32>
    %79 = arith.addf %75, %78 : vector<2x32xf32>
    %80 = vector.extract_strided_slice %8 {offsets = [4, 0], sizes = [2, 32], strides = [1, 1]} : vector<16x32xf32> to vector<2x32xf32>
    %c2_35 = arith.constant 2 : index
    %c0_36 = arith.constant 0 : index
    %c0_37 = arith.constant 0 : index
    %81 = vector.load %arg3[%c2_35, %c0_36, %c0_37] : memref<4x32x32xf32, #tpu.memory_space<vmem>>, vector<1x32x32xf32>
    %82 = vector.shape_cast %81 : vector<1x32x32xf32> to vector<32x32xf32>
    %cst_38 = arith.constant dense<0.000000e+00> : vector<2x32xf32>
    %83 = tpu.matmul %68, %82, %cst_38 {dimension_numbers = #tpu.dot_dimension_numbers<[1], [0], [0], [1], [0, 0, 1, 1], [], []>} : vector<2x32xf32>, vector<32x32xf32>, vector<2x32xf32> -> vector<2x32xf32>
    %84 = arith.addf %80, %83 : vector<2x32xf32>
    %85 = vector.extract_strided_slice %9 {offsets = [4, 0], sizes = [2, 32], strides = [1, 1]} : vector<16x32xf32> to vector<2x32xf32>
    %c3_39 = arith.constant 3 : index
    %c0_40 = arith.constant 0 : index
    %c0_41 = arith.constant 0 : index
    %86 = vector.load %arg3[%c3_39, %c0_40, %c0_41] : memref<4x32x32xf32, #tpu.memory_space<vmem>>, vector<1x32x32xf32>
    %87 = vector.shape_cast %86 : vector<1x32x32xf32> to vector<32x32xf32>
    %cst_42 = arith.constant dense<0.000000e+00> : vector<2x32xf32>
    %88 = tpu.matmul %68, %87, %cst_42 {dimension_numbers = #tpu.dot_dimension_numbers<[1], [0], [0], [1], [0, 0, 1, 1], [], []>} : vector<2x32xf32>, vector<32x32xf32>, vector<2x32xf32> -> vector<2x32xf32>
    %89 = arith.addf %85, %88 : vector<2x32xf32>
    %90 = arith.negf %74 : vector<2x32xf32>
    %91 = math.exp %90 : vector<2x32xf32>
    %cst_43 = arith.constant 1.000000e+00 : f32
    %92 = vector.broadcast %cst_43 : f32 to vector<2x32xf32>
    %93 = arith.addf %92, %91 : vector<2x32xf32>
    %94 = arith.divf %92, %93 : vector<2x32xf32>
    %95 = arith.negf %79 : vector<2x32xf32>
    %96 = math.exp %95 : vector<2x32xf32>
    %cst_44 = arith.constant 1.000000e+00 : f32
    %97 = vector.broadcast %cst_44 : f32 to vector<2x32xf32>
    %98 = arith.addf %97, %96 : vector<2x32xf32>
    %99 = arith.divf %97, %98 : vector<2x32xf32>
    %100 = math.tanh %84 : vector<2x32xf32>
    %101 = arith.negf %89 : vector<2x32xf32>
    %102 = math.exp %101 : vector<2x32xf32>
    %cst_45 = arith.constant 1.000000e+00 : f32
    %103 = vector.broadcast %cst_45 : f32 to vector<2x32xf32>
    %104 = arith.addf %103, %102 : vector<2x32xf32>
    %105 = arith.divf %103, %104 : vector<2x32xf32>
    %106 = arith.mulf %99, %66 : vector<2x32xf32>
    %107 = arith.mulf %94, %100 : vector<2x32xf32>
    %108 = arith.addf %106, %107 : vector<2x32xf32>
    %109 = math.tanh %108 : vector<2x32xf32>
    %110 = arith.mulf %105, %109 : vector<2x32xf32>
    %c4 = arith.constant 4 : index
    %c0_46 = arith.constant 0 : index
    %111 = vector.load %arg13[%c4, %c0_46] : memref<16x32xf32, #tpu.memory_space<vmem>>, vector<2x32xf32>
    tpu.vector_store %arg13[%c4, %c0_46], %110 {strides = array<i32>} : memref<16x32xf32, #tpu.memory_space<vmem>>, vector<2x32xf32>,
    %112 = vector.extract_strided_slice %6 {offsets = [6, 0], sizes = [2, 32], strides = [1, 1]} : vector<16x32xf32> to vector<2x32xf32>
    %c0_47 = arith.constant 0 : index
    %c0_48 = arith.constant 0 : index
    %c0_49 = arith.constant 0 : index
    %113 = vector.load %arg3[%c0_47, %c0_48, %c0_49] : memref<4x32x32xf32, #tpu.memory_space<vmem>>, vector<1x32x32xf32>
    %114 = vector.shape_cast %113 : vector<1x32x32xf32> to vector<32x32xf32>
    %cst_50 = arith.constant dense<0.000000e+00> : vector<2x32xf32>
    %115 = tpu.matmul %110, %114, %cst_50 {dimension_numbers = #tpu.dot_dimension_numbers<[1], [0], [0], [1], [0, 0, 1, 1], [], []>} : vector<2x32xf32>, vector<32x32xf32>, vector<2x32xf32> -> vector<2x32xf32>
    %116 = arith.addf %112, %115 : vector<2x32xf32>
    %117 = vector.extract_strided_slice %7 {offsets = [6, 0], sizes = [2, 32], strides = [1, 1]} : vector<16x32xf32> to vector<2x32xf32>
    %c1_51 = arith.constant 1 : index
    %c0_52 = arith.constant 0 : index
    %c0_53 = arith.constant 0 : index
    %118 = vector.load %arg3[%c1_51, %c0_52, %c0_53] : memref<4x32x32xf32, #tpu.memory_space<vmem>>, vector<1x32x32xf32>
    %119 = vector.shape_cast %118 : vector<1x32x32xf32> to vector<32x32xf32>
    %cst_54 = arith.constant dense<0.000000e+00> : vector<2x32xf32>
    %120 = tpu.matmul %110, %119, %cst_54 {dimension_numbers = #tpu.dot_dimension_numbers<[1], [0], [0], [1], [0, 0, 1, 1], [], []>} : vector<2x32xf32>, vector<32x32xf32>, vector<2x32xf32> -> vector<2x32xf32>
    %121 = arith.addf %117, %120 : vector<2x32xf32>
    %122 = vector.extract_strided_slice %8 {offsets = [6, 0], sizes = [2, 32], strides = [1, 1]} : vector<16x32xf32> to vector<2x32xf32>
    %c2_55 = arith.constant 2 : index
    %c0_56 = arith.constant 0 : index
    %c0_57 = arith.constant 0 : index
    %123 = vector.load %arg3[%c2_55, %c0_56, %c0_57] : memref<4x32x32xf32, #tpu.memory_space<vmem>>, vector<1x32x32xf32>
    %124 = vector.shape_cast %123 : vector<1x32x32xf32> to vector<32x32xf32>
    %cst_58 = arith.constant dense<0.000000e+00> : vector<2x32xf32>
    %125 = tpu.matmul %110, %124, %cst_58 {dimension_numbers = #tpu.dot_dimension_numbers<[1], [0], [0], [1], [0, 0, 1, 1], [], []>} : vector<2x32xf32>, vector<32x32xf32>, vector<2x32xf32> -> vector<2x32xf32>
    %126 = arith.addf %122, %125 : vector<2x32xf32>
    %127 = vector.extract_strided_slice %9 {offsets = [6, 0], sizes = [2, 32], strides = [1, 1]} : vector<16x32xf32> to vector<2x32xf32>
    %c3_59 = arith.constant 3 : index
    %c0_60 = arith.constant 0 : index
    %c0_61 = arith.constant 0 : index
    %128 = vector.load %arg3[%c3_59, %c0_60, %c0_61] : memref<4x32x32xf32, #tpu.memory_space<vmem>>, vector<1x32x32xf32>
    %129 = vector.shape_cast %128 : vector<1x32x32xf32> to vector<32x32xf32>
    %cst_62 = arith.constant dense<0.000000e+00> : vector<2x32xf32>
    %130 = tpu.matmul %110, %129, %cst_62 {dimension_numbers = #tpu.dot_dimension_numbers<[1], [0], [0], [1], [0, 0, 1, 1], [], []>} : vector<2x32xf32>, vector<32x32xf32>, vector<2x32xf32> -> vector<2x32xf32>
    %131 = arith.addf %127, %130 : vector<2x32xf32>
    %132 = arith.negf %116 : vector<2x32xf32>
    %133 = math.exp %132 : vector<2x32xf32>
    %cst_63 = arith.constant 1.000000e+00 : f32
    %134 = vector.broadcast %cst_63 : f32 to vector<2x32xf32>
    %135 = arith.addf %134, %133 : vector<2x32xf32>
    %136 = arith.divf %134, %135 : vector<2x32xf32>
    %137 = arith.negf %121 : vector<2x32xf32>
    %138 = math.exp %137 : vector<2x32xf32>
    %cst_64 = arith.constant 1.000000e+00 : f32
    %139 = vector.broadcast %cst_64 : f32 to vector<2x32xf32>
    %140 = arith.addf %139, %138 : vector<2x32xf32>
    %141 = arith.divf %139, %140 : vector<2x32xf32>
    %142 = math.tanh %126 : vector<2x32xf32>
    %143 = arith.negf %131 : vector<2x32xf32>
    %144 = math.exp %143 : vector<2x32xf32>
    %cst_65 = arith.constant 1.000000e+00 : f32
    %145 = vector.broadcast %cst_65 : f32 to vector<2x32xf32>
    %146 = arith.addf %145, %144 : vector<2x32xf32>
    %147 = arith.divf %145, %146 : vector<2x32xf32>
    %148 = arith.mulf %141, %108 : vector<2x32xf32>
    %149 = arith.mulf %136, %142 : vector<2x32xf32>
    %150 = arith.addf %148, %149 : vector<2x32xf32>
    %151 = math.tanh %150 : vector<2x32xf32>
    %152 = arith.mulf %147, %151 : vector<2x32xf32>
    %c6 = arith.constant 6 : index
    %c0_66 = arith.constant 0 : index
    %153 = vector.load %arg13[%c6, %c0_66] : memref<16x32xf32, #tpu.memory_space<vmem>>, vector<2x32xf32>
    tpu.vector_store %arg13[%c6, %c0_66], %152 {strides = array<i32>} : memref<16x32xf32, #tpu.memory_space<vmem>>, vector<2x32xf32>,
    %154 = vector.extract_strided_slice %6 {offsets = [8, 0], sizes = [2, 32], strides = [1, 1]} : vector<16x32xf32> to vector<2x32xf32>
    %c0_67 = arith.constant 0 : index
    %c0_68 = arith.constant 0 : index
    %c0_69 = arith.constant 0 : index
    %155 = vector.load %arg3[%c0_67, %c0_68, %c0_69] : memref<4x32x32xf32, #tpu.memory_space<vmem>>, vector<1x32x32xf32>
    %156 = vector.shape_cast %155 : vector<1x32x32xf32> to vector<32x32xf32>
    %cst_70 = arith.constant dense<0.000000e+00> : vector<2x32xf32>
    %157 = tpu.matmul %152, %156, %cst_70 {dimension_numbers = #tpu.dot_dimension_numbers<[1], [0], [0], [1], [0, 0, 1, 1], [], []>} : vector<2x32xf32>, vector<32x32xf32>, vector<2x32xf32> -> vector<2x32xf32>
    %158 = arith.addf %154, %157 : vector<2x32xf32>
    %159 = vector.extract_strided_slice %7 {offsets = [8, 0], sizes = [2, 32], strides = [1, 1]} : vector<16x32xf32> to vector<2x32xf32>
    %c1_71 = arith.constant 1 : index
    %c0_72 = arith.constant 0 : index
    %c0_73 = arith.constant 0 : index
    %160 = vector.load %arg3[%c1_71, %c0_72, %c0_73] : memref<4x32x32xf32, #tpu.memory_space<vmem>>, vector<1x32x32xf32>
    %161 = vector.shape_cast %160 : vector<1x32x32xf32> to vector<32x32xf32>
    %cst_74 = arith.constant dense<0.000000e+00> : vector<2x32xf32>
    %162 = tpu.matmul %152, %161, %cst_74 {dimension_numbers = #tpu.dot_dimension_numbers<[1], [0], [0], [1], [0, 0, 1, 1], [], []>} : vector<2x32xf32>, vector<32x32xf32>, vector<2x32xf32> -> vector<2x32xf32>
    %163 = arith.addf %159, %162 : vector<2x32xf32>
    %164 = vector.extract_strided_slice %8 {offsets = [8, 0], sizes = [2, 32], strides = [1, 1]} : vector<16x32xf32> to vector<2x32xf32>
    %c2_75 = arith.constant 2 : index
    %c0_76 = arith.constant 0 : index
    %c0_77 = arith.constant 0 : index
    %165 = vector.load %arg3[%c2_75, %c0_76, %c0_77] : memref<4x32x32xf32, #tpu.memory_space<vmem>>, vector<1x32x32xf32>
    %166 = vector.shape_cast %165 : vector<1x32x32xf32> to vector<32x32xf32>
    %cst_78 = arith.constant dense<0.000000e+00> : vector<2x32xf32>
    %167 = tpu.matmul %152, %166, %cst_78 {dimension_numbers = #tpu.dot_dimension_numbers<[1], [0], [0], [1], [0, 0, 1, 1], [], []>} : vector<2x32xf32>, vector<32x32xf32>, vector<2x32xf32> -> vector<2x32xf32>
    %168 = arith.addf %164, %167 : vector<2x32xf32>
    %169 = vector.extract_strided_slice %9 {offsets = [8, 0], sizes = [2, 32], strides = [1, 1]} : vector<16x32xf32> to vector<2x32xf32>
    %c3_79 = arith.constant 3 : index
    %c0_80 = arith.constant 0 : index
    %c0_81 = arith.constant 0 : index
    %170 = vector.load %arg3[%c3_79, %c0_80, %c0_81] : memref<4x32x32xf32, #tpu.memory_space<vmem>>, vector<1x32x32xf32>
    %171 = vector.shape_cast %170 : vector<1x32x32xf32> to vector<32x32xf32>
    %cst_82 = arith.constant dense<0.000000e+00> : vector<2x32xf32>
    %172 = tpu.matmul %152, %171, %cst_82 {dimension_numbers = #tpu.dot_dimension_numbers<[1], [0], [0], [1], [0, 0, 1, 1], [], []>} : vector<2x32xf32>, vector<32x32xf32>, vector<2x32xf32> -> vector<2x32xf32>
    %173 = arith.addf %169, %172 : vector<2x32xf32>
    %174 = arith.negf %158 : vector<2x32xf32>
    %175 = math.exp %174 : vector<2x32xf32>
    %cst_83 = arith.constant 1.000000e+00 : f32
    %176 = vector.broadcast %cst_83 : f32 to vector<2x32xf32>
    %177 = arith.addf %176, %175 : vector<2x32xf32>
    %178 = arith.divf %176, %177 : vector<2x32xf32>
    %179 = arith.negf %163 : vector<2x32xf32>
    %180 = math.exp %179 : vector<2x32xf32>
    %cst_84 = arith.constant 1.000000e+00 : f32
    %181 = vector.broadcast %cst_84 : f32 to vector<2x32xf32>
    %182 = arith.addf %181, %180 : vector<2x32xf32>
    %183 = arith.divf %181, %182 : vector<2x32xf32>
    %184 = math.tanh %168 : vector<2x32xf32>
    %185 = arith.negf %173 : vector<2x32xf32>
    %186 = math.exp %185 : vector<2x32xf32>
    %cst_85 = arith.constant 1.000000e+00 : f32
    %187 = vector.broadcast %cst_85 : f32 to vector<2x32xf32>
    %188 = arith.addf %187, %186 : vector<2x32xf32>
    %189 = arith.divf %187, %188 : vector<2x32xf32>
    %190 = arith.mulf %183, %150 : vector<2x32xf32>
    %191 = arith.mulf %178, %184 : vector<2x32xf32>
    %192 = arith.addf %190, %191 : vector<2x32xf32>
    %193 = math.tanh %192 : vector<2x32xf32>
    %194 = arith.mulf %189, %193 : vector<2x32xf32>
    %c8 = arith.constant 8 : index
    %c0_86 = arith.constant 0 : index
    %195 = vector.load %arg13[%c8, %c0_86] : memref<16x32xf32, #tpu.memory_space<vmem>>, vector<2x32xf32>
    tpu.vector_store %arg13[%c8, %c0_86], %194 {strides = array<i32>} : memref<16x32xf32, #tpu.memory_space<vmem>>, vector<2x32xf32>,
    %196 = vector.extract_strided_slice %6 {offsets = [10, 0], sizes = [2, 32], strides = [1, 1]} : vector<16x32xf32> to vector<2x32xf32>
    %c0_87 = arith.constant 0 : index
    %c0_88 = arith.constant 0 : index
    %c0_89 = arith.constant 0 : index
    %197 = vector.load %arg3[%c0_87, %c0_88, %c0_89] : memref<4x32x32xf32, #tpu.memory_space<vmem>>, vector<1x32x32xf32>
    %198 = vector.shape_cast %197 : vector<1x32x32xf32> to vector<32x32xf32>
    %cst_90 = arith.constant dense<0.000000e+00> : vector<2x32xf32>
    %199 = tpu.matmul %194, %198, %cst_90 {dimension_numbers = #tpu.dot_dimension_numbers<[1], [0], [0], [1], [0, 0, 1, 1], [], []>} : vector<2x32xf32>, vector<32x32xf32>, vector<2x32xf32> -> vector<2x32xf32>
    %200 = arith.addf %196, %199 : vector<2x32xf32>
    %201 = vector.extract_strided_slice %7 {offsets = [10, 0], sizes = [2, 32], strides = [1, 1]} : vector<16x32xf32> to vector<2x32xf32>
    %c1_91 = arith.constant 1 : index
    %c0_92 = arith.constant 0 : index
    %c0_93 = arith.constant 0 : index
    %202 = vector.load %arg3[%c1_91, %c0_92, %c0_93] : memref<4x32x32xf32, #tpu.memory_space<vmem>>, vector<1x32x32xf32>
    %203 = vector.shape_cast %202 : vector<1x32x32xf32> to vector<32x32xf32>
    %cst_94 = arith.constant dense<0.000000e+00> : vector<2x32xf32>
    %204 = tpu.matmul %194, %203, %cst_94 {dimension_numbers = #tpu.dot_dimension_numbers<[1], [0], [0], [1], [0, 0, 1, 1], [], []>} : vector<2x32xf32>, vector<32x32xf32>, vector<2x32xf32> -> vector<2x32xf32>
    %205 = arith.addf %201, %204 : vector<2x32xf32>
    %206 = vector.extract_strided_slice %8 {offsets = [10, 0], sizes = [2, 32], strides = [1, 1]} : vector<16x32xf32> to vector<2x32xf32>
    %c2_95 = arith.constant 2 : index
    %c0_96 = arith.constant 0 : index
    %c0_97 = arith.constant 0 : index
    %207 = vector.load %arg3[%c2_95, %c0_96, %c0_97] : memref<4x32x32xf32, #tpu.memory_space<vmem>>, vector<1x32x32xf32>
    %208 = vector.shape_cast %207 : vector<1x32x32xf32> to vector<32x32xf32>
    %cst_98 = arith.constant dense<0.000000e+00> : vector<2x32xf32>
    %209 = tpu.matmul %194, %208, %cst_98 {dimension_numbers = #tpu.dot_dimension_numbers<[1], [0], [0], [1], [0, 0, 1, 1], [], []>} : vector<2x32xf32>, vector<32x32xf32>, vector<2x32xf32> -> vector<2x32xf32>
    %210 = arith.addf %206, %209 : vector<2x32xf32>
    %211 = vector.extract_strided_slice %9 {offsets = [10, 0], sizes = [2, 32], strides = [1, 1]} : vector<16x32xf32> to vector<2x32xf32>
    %c3_99 = arith.constant 3 : index
    %c0_100 = arith.constant 0 : index
    %c0_101 = arith.constant 0 : index
    %212 = vector.load %arg3[%c3_99, %c0_100, %c0_101] : memref<4x32x32xf32, #tpu.memory_space<vmem>>, vector<1x32x32xf32>
    %213 = vector.shape_cast %212 : vector<1x32x32xf32> to vector<32x32xf32>
    %cst_102 = arith.constant dense<0.000000e+00> : vector<2x32xf32>
    %214 = tpu.matmul %194, %213, %cst_102 {dimension_numbers = #tpu.dot_dimension_numbers<[1], [0], [0], [1], [0, 0, 1, 1], [], []>} : vector<2x32xf32>, vector<32x32xf32>, vector<2x32xf32> -> vector<2x32xf32>
    %215 = arith.addf %211, %214 : vector<2x32xf32>
    %216 = arith.negf %200 : vector<2x32xf32>
    %217 = math.exp %216 : vector<2x32xf32>
    %cst_103 = arith.constant 1.000000e+00 : f32
    %218 = vector.broadcast %cst_103 : f32 to vector<2x32xf32>
    %219 = arith.addf %218, %217 : vector<2x32xf32>
    %220 = arith.divf %218, %219 : vector<2x32xf32>
    %221 = arith.negf %205 : vector<2x32xf32>
    %222 = math.exp %221 : vector<2x32xf32>
    %cst_104 = arith.constant 1.000000e+00 : f32
    %223 = vector.broadcast %cst_104 : f32 to vector<2x32xf32>
    %224 = arith.addf %223, %222 : vector<2x32xf32>
    %225 = arith.divf %223, %224 : vector<2x32xf32>
    %226 = math.tanh %210 : vector<2x32xf32>
    %227 = arith.negf %215 : vector<2x32xf32>
    %228 = math.exp %227 : vector<2x32xf32>
    %cst_105 = arith.constant 1.000000e+00 : f32
    %229 = vector.broadcast %cst_105 : f32 to vector<2x32xf32>
    %230 = arith.addf %229, %228 : vector<2x32xf32>
    %231 = arith.divf %229, %230 : vector<2x32xf32>
    %232 = arith.mulf %225, %192 : vector<2x32xf32>
    %233 = arith.mulf %220, %226 : vector<2x32xf32>
    %234 = arith.addf %232, %233 : vector<2x32xf32>
    %235 = math.tanh %234 : vector<2x32xf32>
    %236 = arith.mulf %231, %235 : vector<2x32xf32>
    %c10 = arith.constant 10 : index
    %c0_106 = arith.constant 0 : index
    %237 = vector.load %arg13[%c10, %c0_106] : memref<16x32xf32, #tpu.memory_space<vmem>>, vector<2x32xf32>
    tpu.vector_store %arg13[%c10, %c0_106], %236 {strides = array<i32>} : memref<16x32xf32, #tpu.memory_space<vmem>>, vector<2x32xf32>,
    %238 = vector.extract_strided_slice %6 {offsets = [12, 0], sizes = [2, 32], strides = [1, 1]} : vector<16x32xf32> to vector<2x32xf32>
    %c0_107 = arith.constant 0 : index
    %c0_108 = arith.constant 0 : index
    %c0_109 = arith.constant 0 : index
    %239 = vector.load %arg3[%c0_107, %c0_108, %c0_109] : memref<4x32x32xf32, #tpu.memory_space<vmem>>, vector<1x32x32xf32>
    %240 = vector.shape_cast %239 : vector<1x32x32xf32> to vector<32x32xf32>
    %cst_110 = arith.constant dense<0.000000e+00> : vector<2x32xf32>
    %241 = tpu.matmul %236, %240, %cst_110 {dimension_numbers = #tpu.dot_dimension_numbers<[1], [0], [0], [1], [0, 0, 1, 1], [], []>} : vector<2x32xf32>, vector<32x32xf32>, vector<2x32xf32> -> vector<2x32xf32>
    %242 = arith.addf %238, %241 : vector<2x32xf32>
    %243 = vector.extract_strided_slice %7 {offsets = [12, 0], sizes = [2, 32], strides = [1, 1]} : vector<16x32xf32> to vector<2x32xf32>
    %c1_111 = arith.constant 1 : index
    %c0_112 = arith.constant 0 : index
    %c0_113 = arith.constant 0 : index
    %244 = vector.load %arg3[%c1_111, %c0_112, %c0_113] : memref<4x32x32xf32, #tpu.memory_space<vmem>>, vector<1x32x32xf32>
    %245 = vector.shape_cast %244 : vector<1x32x32xf32> to vector<32x32xf32>
    %cst_114 = arith.constant dense<0.000000e+00> : vector<2x32xf32>
    %246 = tpu.matmul %236, %245, %cst_114 {dimension_numbers = #tpu.dot_dimension_numbers<[1], [0], [0], [1], [0, 0, 1, 1], [], []>} : vector<2x32xf32>, vector<32x32xf32>, vector<2x32xf32> -> vector<2x32xf32>
    %247 = arith.addf %243, %246 : vector<2x32xf32>
    %248 = vector.extract_strided_slice %8 {offsets = [12, 0], sizes = [2, 32], strides = [1, 1]} : vector<16x32xf32> to vector<2x32xf32>
    %c2_115 = arith.constant 2 : index
    %c0_116 = arith.constant 0 : index
    %c0_117 = arith.constant 0 : index
    %249 = vector.load %arg3[%c2_115, %c0_116, %c0_117] : memref<4x32x32xf32, #tpu.memory_space<vmem>>, vector<1x32x32xf32>
    %250 = vector.shape_cast %249 : vector<1x32x32xf32> to vector<32x32xf32>
    %cst_118 = arith.constant dense<0.000000e+00> : vector<2x32xf32>
    %251 = tpu.matmul %236, %250, %cst_118 {dimension_numbers = #tpu.dot_dimension_numbers<[1], [0], [0], [1], [0, 0, 1, 1], [], []>} : vector<2x32xf32>, vector<32x32xf32>, vector<2x32xf32> -> vector<2x32xf32>
    %252 = arith.addf %248, %251 : vector<2x32xf32>
    %253 = vector.extract_strided_slice %9 {offsets = [12, 0], sizes = [2, 32], strides = [1, 1]} : vector<16x32xf32> to vector<2x32xf32>
    %c3_119 = arith.constant 3 : index
    %c0_120 = arith.constant 0 : index
    %c0_121 = arith.constant 0 : index
    %254 = vector.load %arg3[%c3_119, %c0_120, %c0_121] : memref<4x32x32xf32, #tpu.memory_space<vmem>>, vector<1x32x32xf32>
    %255 = vector.shape_cast %254 : vector<1x32x32xf32> to vector<32x32xf32>
    %cst_122 = arith.constant dense<0.000000e+00> : vector<2x32xf32>
    %256 = tpu.matmul %236, %255, %cst_122 {dimension_numbers = #tpu.dot_dimension_numbers<[1], [0], [0], [1], [0, 0, 1, 1], [], []>} : vector<2x32xf32>, vector<32x32xf32>, vector<2x32xf32> -> vector<2x32xf32>
    %257 = arith.addf %253, %256 : vector<2x32xf32>
    %258 = arith.negf %242 : vector<2x32xf32>
    %259 = math.exp %258 : vector<2x32xf32>
    %cst_123 = arith.constant 1.000000e+00 : f32
    %260 = vector.broadcast %cst_123 : f32 to vector<2x32xf32>
    %261 = arith.addf %260, %259 : vector<2x32xf32>
    %262 = arith.divf %260, %261 : vector<2x32xf32>
    %263 = arith.negf %247 : vector<2x32xf32>
    %264 = math.exp %263 : vector<2x32xf32>
    %cst_124 = arith.constant 1.000000e+00 : f32
    %265 = vector.broadcast %cst_124 : f32 to vector<2x32xf32>
    %266 = arith.addf %265, %264 : vector<2x32xf32>
    %267 = arith.divf %265, %266 : vector<2x32xf32>
    %268 = math.tanh %252 : vector<2x32xf32>
    %269 = arith.negf %257 : vector<2x32xf32>
    %270 = math.exp %269 : vector<2x32xf32>
    %cst_125 = arith.constant 1.000000e+00 : f32
    %271 = vector.broadcast %cst_125 : f32 to vector<2x32xf32>
    %272 = arith.addf %271, %270 : vector<2x32xf32>
    %273 = arith.divf %271, %272 : vector<2x32xf32>
    %274 = arith.mulf %267, %234 : vector<2x32xf32>
    %275 = arith.mulf %262, %268 : vector<2x32xf32>
    %276 = arith.addf %274, %275 : vector<2x32xf32>
    %277 = math.tanh %276 : vector<2x32xf32>
    %278 = arith.mulf %273, %277 : vector<2x32xf32>
    %c12 = arith.constant 12 : index
    %c0_126 = arith.constant 0 : index
    %279 = vector.load %arg13[%c12, %c0_126] : memref<16x32xf32, #tpu.memory_space<vmem>>, vector<2x32xf32>
    tpu.vector_store %arg13[%c12, %c0_126], %278 {strides = array<i32>} : memref<16x32xf32, #tpu.memory_space<vmem>>, vector<2x32xf32>,
    %280 = vector.extract_strided_slice %6 {offsets = [14, 0], sizes = [2, 32], strides = [1, 1]} : vector<16x32xf32> to vector<2x32xf32>
    %c0_127 = arith.constant 0 : index
    %c0_128 = arith.constant 0 : index
    %c0_129 = arith.constant 0 : index
    %281 = vector.load %arg3[%c0_127, %c0_128, %c0_129] : memref<4x32x32xf32, #tpu.memory_space<vmem>>, vector<1x32x32xf32>
    %282 = vector.shape_cast %281 : vector<1x32x32xf32> to vector<32x32xf32>
    %cst_130 = arith.constant dense<0.000000e+00> : vector<2x32xf32>
    %283 = tpu.matmul %278, %282, %cst_130 {dimension_numbers = #tpu.dot_dimension_numbers<[1], [0], [0], [1], [0, 0, 1, 1], [], []>} : vector<2x32xf32>, vector<32x32xf32>, vector<2x32xf32> -> vector<2x32xf32>
    %284 = arith.addf %280, %283 : vector<2x32xf32>
    %285 = vector.extract_strided_slice %7 {offsets = [14, 0], sizes = [2, 32], strides = [1, 1]} : vector<16x32xf32> to vector<2x32xf32>
    %c1_131 = arith.constant 1 : index
    %c0_132 = arith.constant 0 : index
    %c0_133 = arith.constant 0 : index
    %286 = vector.load %arg3[%c1_131, %c0_132, %c0_133] : memref<4x32x32xf32, #tpu.memory_space<vmem>>, vector<1x32x32xf32>
    %287 = vector.shape_cast %286 : vector<1x32x32xf32> to vector<32x32xf32>
    %cst_134 = arith.constant dense<0.000000e+00> : vector<2x32xf32>
    %288 = tpu.matmul %278, %287, %cst_134 {dimension_numbers = #tpu.dot_dimension_numbers<[1], [0], [0], [1], [0, 0, 1, 1], [], []>} : vector<2x32xf32>, vector<32x32xf32>, vector<2x32xf32> -> vector<2x32xf32>
    %289 = arith.addf %285, %288 : vector<2x32xf32>
    %290 = vector.extract_strided_slice %8 {offsets = [14, 0], sizes = [2, 32], strides = [1, 1]} : vector<16x32xf32> to vector<2x32xf32>
    %c2_135 = arith.constant 2 : index
    %c0_136 = arith.constant 0 : index
    %c0_137 = arith.constant 0 : index
    %291 = vector.load %arg3[%c2_135, %c0_136, %c0_137] : memref<4x32x32xf32, #tpu.memory_space<vmem>>, vector<1x32x32xf32>
    %292 = vector.shape_cast %291 : vector<1x32x32xf32> to vector<32x32xf32>
    %cst_138 = arith.constant dense<0.000000e+00> : vector<2x32xf32>
    %293 = tpu.matmul %278, %292, %cst_138 {dimension_numbers = #tpu.dot_dimension_numbers<[1], [0], [0], [1], [0, 0, 1, 1], [], []>} : vector<2x32xf32>, vector<32x32xf32>, vector<2x32xf32> -> vector<2x32xf32>
    %294 = arith.addf %290, %293 : vector<2x32xf32>
    %295 = vector.extract_strided_slice %9 {offsets = [14, 0], sizes = [2, 32], strides = [1, 1]} : vector<16x32xf32> to vector<2x32xf32>
    %c3_139 = arith.constant 3 : index
    %c0_140 = arith.constant 0 : index
    %c0_141 = arith.constant 0 : index
    %296 = vector.load %arg3[%c3_139, %c0_140, %c0_141] : memref<4x32x32xf32, #tpu.memory_space<vmem>>, vector<1x32x32xf32>
    %297 = vector.shape_cast %296 : vector<1x32x32xf32> to vector<32x32xf32>
    %cst_142 = arith.constant dense<0.000000e+00> : vector<2x32xf32>
    %298 = tpu.matmul %278, %297, %cst_142 {dimension_numbers = #tpu.dot_dimension_numbers<[1], [0], [0], [1], [0, 0, 1, 1], [], []>} : vector<2x32xf32>, vector<32x32xf32>, vector<2x32xf32> -> vector<2x32xf32>
    %299 = arith.addf %295, %298 : vector<2x32xf32>
    %300 = arith.negf %284 : vector<2x32xf32>
    %301 = math.exp %300 : vector<2x32xf32>
    %cst_143 = arith.constant 1.000000e+00 : f32
    %302 = vector.broadcast %cst_143 : f32 to vector<2x32xf32>
    %303 = arith.addf %302, %301 : vector<2x32xf32>
    %304 = arith.divf %302, %303 : vector<2x32xf32>
    %305 = arith.negf %289 : vector<2x32xf32>
    %306 = math.exp %305 : vector<2x32xf32>
    %cst_144 = arith.constant 1.000000e+00 : f32
    %307 = vector.broadcast %cst_144 : f32 to vector<2x32xf32>
    %308 = arith.addf %307, %306 : vector<2x32xf32>
    %309 = arith.divf %307, %308 : vector<2x32xf32>
    %310 = math.tanh %294 : vector<2x32xf32>
    %311 = arith.negf %299 : vector<2x32xf32>
    %312 = math.exp %311 : vector<2x32xf32>
    %cst_145 = arith.constant 1.000000e+00 : f32
    %313 = vector.broadcast %cst_145 : f32 to vector<2x32xf32>
    %314 = arith.addf %313, %312 : vector<2x32xf32>
    %315 = arith.divf %313, %314 : vector<2x32xf32>
    %316 = arith.mulf %309, %276 : vector<2x32xf32>
    %317 = arith.mulf %304, %310 : vector<2x32xf32>
    %318 = arith.addf %316, %317 : vector<2x32xf32>
    %319 = math.tanh %318 : vector<2x32xf32>
    %320 = arith.mulf %315, %319 : vector<2x32xf32>
    %c14 = arith.constant 14 : index
    %c0_146 = arith.constant 0 : index
    %321 = vector.load %arg13[%c14, %c0_146] : memref<16x32xf32, #tpu.memory_space<vmem>>, vector<2x32xf32>
    tpu.vector_store %arg13[%c14, %c0_146], %320 {strides = array<i32>} : memref<16x32xf32, #tpu.memory_space<vmem>>, vector<2x32xf32>,
    %c0_147 = arith.constant 0 : index
    %c0_148 = arith.constant 0 : index
    %322 = vector.load %arg13[%c0_147, %c0_148] : memref<16x32xf32, #tpu.memory_space<vmem>>, vector<16x32xf32>
    %c0_149 = arith.constant 0 : index
    %c0_150 = arith.constant 0 : index
    %323 = vector.load %arg5[%c0_149, %c0_150] : memref<32x128xf32, #tpu.memory_space<vmem>>, vector<32x128xf32>
    %cst_151 = arith.constant dense<0.000000e+00> : vector<16x128xf32>
    %324 = tpu.matmul %322, %323, %cst_151 {dimension_numbers = #tpu.dot_dimension_numbers<[1], [0], [0], [1], [0, 0, 1, 1], [], []>} : vector<16x32xf32>, vector<32x128xf32>, vector<16x128xf32> -> vector<16x128xf32>
    %c0_152 = arith.constant 0 : index
    %c0_153 = arith.constant 0 : index
    %325 = vector.load %arg7[%c0_152, %c0_153] : memref<1x128xf32, #tpu.memory_space<vmem>>, vector<1x128xf32>
    %326 = vector.broadcast %325 : vector<1x128xf32> to vector<16x128xf32>
    %327 = arith.addf %324, %326 : vector<16x128xf32>
    %328 = vector.extract_strided_slice %327 {offsets = [0, 0], sizes = [16, 32], strides = [1, 1]} : vector<16x128xf32> to vector<16x32xf32>
    %329 = vector.extract_strided_slice %327 {offsets = [0, 32], sizes = [16, 32], strides = [1, 1]} : vector<16x128xf32> to vector<16x32xf32>
    %330 = vector.extract_strided_slice %327 {offsets = [0, 64], sizes = [16, 32], strides = [1, 1]} : vector<16x128xf32> to vector<16x32xf32>
    %331 = vector.extract_strided_slice %327 {offsets = [0, 96], sizes = [16, 32], strides = [1, 1]} : vector<16x128xf32> to vector<16x32xf32>
    %332 = vector.extract_strided_slice %328 {offsets = [0, 0], sizes = [2, 32], strides = [1, 1]} : vector<16x32xf32> to vector<2x32xf32>
    %333 = vector.extract_strided_slice %330 {offsets = [0, 0], sizes = [2, 32], strides = [1, 1]} : vector<16x32xf32> to vector<2x32xf32>
    %334 = vector.extract_strided_slice %331 {offsets = [0, 0], sizes = [2, 32], strides = [1, 1]} : vector<16x32xf32> to vector<2x32xf32>
    %335 = arith.negf %332 : vector<2x32xf32>
    %336 = math.exp %335 : vector<2x32xf32>
    %cst_154 = arith.constant 1.000000e+00 : f32
    %337 = vector.broadcast %cst_154 : f32 to vector<2x32xf32>
    %338 = arith.addf %337, %336 : vector<2x32xf32>
    %339 = arith.divf %337, %338 : vector<2x32xf32>
    %340 = math.tanh %333 : vector<2x32xf32>
    %341 = arith.negf %334 : vector<2x32xf32>
    %342 = math.exp %341 : vector<2x32xf32>
    %cst_155 = arith.constant 1.000000e+00 : f32
    %343 = vector.broadcast %cst_155 : f32 to vector<2x32xf32>
    %344 = arith.addf %343, %342 : vector<2x32xf32>
    %345 = arith.divf %343, %344 : vector<2x32xf32>
    %346 = arith.mulf %339, %340 : vector<2x32xf32>
    %347 = math.tanh %346 : vector<2x32xf32>
    %348 = arith.mulf %345, %347 : vector<2x32xf32>
    %c0_156 = arith.constant 0 : index
    %c0_157 = arith.constant 0 : index
    %349 = vector.load %arg13[%c0_156, %c0_157] : memref<16x32xf32, #tpu.memory_space<vmem>>, vector<2x32xf32>
    tpu.vector_store %arg13[%c0_156, %c0_157], %348 {strides = array<i32>} : memref<16x32xf32, #tpu.memory_space<vmem>>, vector<2x32xf32>,
    %350 = vector.extract_strided_slice %328 {offsets = [2, 0], sizes = [2, 32], strides = [1, 1]} : vector<16x32xf32> to vector<2x32xf32>
    %c0_158 = arith.constant 0 : index
    %c0_159 = arith.constant 0 : index
    %c0_160 = arith.constant 0 : index
    %351 = vector.load %arg6[%c0_158, %c0_159, %c0_160] : memref<4x32x32xf32, #tpu.memory_space<vmem>>, vector<1x32x32xf32>
    %352 = vector.shape_cast %351 : vector<1x32x32xf32> to vector<32x32xf32>
    %cst_161 = arith.constant dense<0.000000e+00> : vector<2x32xf32>
    %353 = tpu.matmul %348, %352, %cst_161 {dimension_numbers = #tpu.dot_dimension_numbers<[1], [0], [0], [1], [0, 0, 1, 1], [], []>} : vector<2x32xf32>, vector<32x32xf32>, vector<2x32xf32> -> vector<2x32xf32>
    %354 = arith.addf %350, %353 : vector<2x32xf32>
    %355 = vector.extract_strided_slice %329 {offsets = [2, 0], sizes = [2, 32], strides = [1, 1]} : vector<16x32xf32> to vector<2x32xf32>
    %c1_162 = arith.constant 1 : index
    %c0_163 = arith.constant 0 : index
    %c0_164 = arith.constant 0 : index
    %356 = vector.load %arg6[%c1_162, %c0_163, %c0_164] : memref<4x32x32xf32, #tpu.memory_space<vmem>>, vector<1x32x32xf32>
    %357 = vector.shape_cast %356 : vector<1x32x32xf32> to vector<32x32xf32>
    %cst_165 = arith.constant dense<0.000000e+00> : vector<2x32xf32>
    %358 = tpu.matmul %348, %357, %cst_165 {dimension_numbers = #tpu.dot_dimension_numbers<[1], [0], [0], [1], [0, 0, 1, 1], [], []>} : vector<2x32xf32>, vector<32x32xf32>, vector<2x32xf32> -> vector<2x32xf32>
    %359 = arith.addf %355, %358 : vector<2x32xf32>
    %360 = vector.extract_strided_slice %330 {offsets = [2, 0], sizes = [2, 32], strides = [1, 1]} : vector<16x32xf32> to vector<2x32xf32>
    %c2_166 = arith.constant 2 : index
    %c0_167 = arith.constant 0 : index
    %c0_168 = arith.constant 0 : index
    %361 = vector.load %arg6[%c2_166, %c0_167, %c0_168] : memref<4x32x32xf32, #tpu.memory_space<vmem>>, vector<1x32x32xf32>
    %362 = vector.shape_cast %361 : vector<1x32x32xf32> to vector<32x32xf32>
    %cst_169 = arith.constant dense<0.000000e+00> : vector<2x32xf32>
    %363 = tpu.matmul %348, %362, %cst_169 {dimension_numbers = #tpu.dot_dimension_numbers<[1], [0], [0], [1], [0, 0, 1, 1], [], []>} : vector<2x32xf32>, vector<32x32xf32>, vector<2x32xf32> -> vector<2x32xf32>
    %364 = arith.addf %360, %363 : vector<2x32xf32>
    %365 = vector.extract_strided_slice %331 {offsets = [2, 0], sizes = [2, 32], strides = [1, 1]} : vector<16x32xf32> to vector<2x32xf32>
    %c3_170 = arith.constant 3 : index
    %c0_171 = arith.constant 0 : index
    %c0_172 = arith.constant 0 : index
    %366 = vector.load %arg6[%c3_170, %c0_171, %c0_172] : memref<4x32x32xf32, #tpu.memory_space<vmem>>, vector<1x32x32xf32>
    %367 = vector.shape_cast %366 : vector<1x32x32xf32> to vector<32x32xf32>
    %cst_173 = arith.constant dense<0.000000e+00> : vector<2x32xf32>
    %368 = tpu.matmul %348, %367, %cst_173 {dimension_numbers = #tpu.dot_dimension_numbers<[1], [0], [0], [1], [0, 0, 1, 1], [], []>} : vector<2x32xf32>, vector<32x32xf32>, vector<2x32xf32> -> vector<2x32xf32>
    %369 = arith.addf %365, %368 : vector<2x32xf32>
    %370 = arith.negf %354 : vector<2x32xf32>
    %371 = math.exp %370 : vector<2x32xf32>
    %cst_174 = arith.constant 1.000000e+00 : f32
    %372 = vector.broadcast %cst_174 : f32 to vector<2x32xf32>
    %373 = arith.addf %372, %371 : vector<2x32xf32>
    %374 = arith.divf %372, %373 : vector<2x32xf32>
    %375 = arith.negf %359 : vector<2x32xf32>
    %376 = math.exp %375 : vector<2x32xf32>
    %cst_175 = arith.constant 1.000000e+00 : f32
    %377 = vector.broadcast %cst_175 : f32 to vector<2x32xf32>
    %378 = arith.addf %377, %376 : vector<2x32xf32>
    %379 = arith.divf %377, %378 : vector<2x32xf32>
    %380 = math.tanh %364 : vector<2x32xf32>
    %381 = arith.negf %369 : vector<2x32xf32>
    %382 = math.exp %381 : vector<2x32xf32>
    %cst_176 = arith.constant 1.000000e+00 : f32
    %383 = vector.broadcast %cst_176 : f32 to vector<2x32xf32>
    %384 = arith.addf %383, %382 : vector<2x32xf32>
    %385 = arith.divf %383, %384 : vector<2x32xf32>
    %386 = arith.mulf %379, %346 : vector<2x32xf32>
    %387 = arith.mulf %374, %380 : vector<2x32xf32>
    %388 = arith.addf %386, %387 : vector<2x32xf32>
    %389 = math.tanh %388 : vector<2x32xf32>
    %390 = arith.mulf %385, %389 : vector<2x32xf32>
    %c2_177 = arith.constant 2 : index
    %c0_178 = arith.constant 0 : index
    %391 = vector.load %arg13[%c2_177, %c0_178] : memref<16x32xf32, #tpu.memory_space<vmem>>, vector<2x32xf32>
    tpu.vector_store %arg13[%c2_177, %c0_178], %390 {strides = array<i32>} : memref<16x32xf32, #tpu.memory_space<vmem>>, vector<2x32xf32>,
    %392 = vector.extract_strided_slice %328 {offsets = [4, 0], sizes = [2, 32], strides = [1, 1]} : vector<16x32xf32> to vector<2x32xf32>
    %c0_179 = arith.constant 0 : index
    %c0_180 = arith.constant 0 : index
    %c0_181 = arith.constant 0 : index
    %393 = vector.load %arg6[%c0_179, %c0_180, %c0_181] : memref<4x32x32xf32, #tpu.memory_space<vmem>>, vector<1x32x32xf32>
    %394 = vector.shape_cast %393 : vector<1x32x32xf32> to vector<32x32xf32>
    %cst_182 = arith.constant dense<0.000000e+00> : vector<2x32xf32>
    %395 = tpu.matmul %390, %394, %cst_182 {dimension_numbers = #tpu.dot_dimension_numbers<[1], [0], [0], [1], [0, 0, 1, 1], [], []>} : vector<2x32xf32>, vector<32x32xf32>, vector<2x32xf32> -> vector<2x32xf32>
    %396 = arith.addf %392, %395 : vector<2x32xf32>
    %397 = vector.extract_strided_slice %329 {offsets = [4, 0], sizes = [2, 32], strides = [1, 1]} : vector<16x32xf32> to vector<2x32xf32>
    %c1_183 = arith.constant 1 : index
    %c0_184 = arith.constant 0 : index
    %c0_185 = arith.constant 0 : index
    %398 = vector.load %arg6[%c1_183, %c0_184, %c0_185] : memref<4x32x32xf32, #tpu.memory_space<vmem>>, vector<1x32x32xf32>
    %399 = vector.shape_cast %398 : vector<1x32x32xf32> to vector<32x32xf32>
    %cst_186 = arith.constant dense<0.000000e+00> : vector<2x32xf32>
    %400 = tpu.matmul %390, %399, %cst_186 {dimension_numbers = #tpu.dot_dimension_numbers<[1], [0], [0], [1], [0, 0, 1, 1], [], []>} : vector<2x32xf32>, vector<32x32xf32>, vector<2x32xf32> -> vector<2x32xf32>
    %401 = arith.addf %397, %400 : vector<2x32xf32>
    %402 = vector.extract_strided_slice %330 {offsets = [4, 0], sizes = [2, 32], strides = [1, 1]} : vector<16x32xf32> to vector<2x32xf32>
    %c2_187 = arith.constant 2 : index
    %c0_188 = arith.constant 0 : index
    %c0_189 = arith.constant 0 : index
    %403 = vector.load %arg6[%c2_187, %c0_188, %c0_189] : memref<4x32x32xf32, #tpu.memory_space<vmem>>, vector<1x32x32xf32>
    %404 = vector.shape_cast %403 : vector<1x32x32xf32> to vector<32x32xf32>
    %cst_190 = arith.constant dense<0.000000e+00> : vector<2x32xf32>
    %405 = tpu.matmul %390, %404, %cst_190 {dimension_numbers = #tpu.dot_dimension_numbers<[1], [0], [0], [1], [0, 0, 1, 1], [], []>} : vector<2x32xf32>, vector<32x32xf32>, vector<2x32xf32> -> vector<2x32xf32>
    %406 = arith.addf %402, %405 : vector<2x32xf32>
    %407 = vector.extract_strided_slice %331 {offsets = [4, 0], sizes = [2, 32], strides = [1, 1]} : vector<16x32xf32> to vector<2x32xf32>
    %c3_191 = arith.constant 3 : index
    %c0_192 = arith.constant 0 : index
    %c0_193 = arith.constant 0 : index
    %408 = vector.load %arg6[%c3_191, %c0_192, %c0_193] : memref<4x32x32xf32, #tpu.memory_space<vmem>>, vector<1x32x32xf32>
    %409 = vector.shape_cast %408 : vector<1x32x32xf32> to vector<32x32xf32>
    %cst_194 = arith.constant dense<0.000000e+00> : vector<2x32xf32>
    %410 = tpu.matmul %390, %409, %cst_194 {dimension_numbers = #tpu.dot_dimension_numbers<[1], [0], [0], [1], [0, 0, 1, 1], [], []>} : vector<2x32xf32>, vector<32x32xf32>, vector<2x32xf32> -> vector<2x32xf32>
    %411 = arith.addf %407, %410 : vector<2x32xf32>
    %412 = arith.negf %396 : vector<2x32xf32>
    %413 = math.exp %412 : vector<2x32xf32>
    %cst_195 = arith.constant 1.000000e+00 : f32
    %414 = vector.broadcast %cst_195 : f32 to vector<2x32xf32>
    %415 = arith.addf %414, %413 : vector<2x32xf32>
    %416 = arith.divf %414, %415 : vector<2x32xf32>
    %417 = arith.negf %401 : vector<2x32xf32>
    %418 = math.exp %417 : vector<2x32xf32>
    %cst_196 = arith.constant 1.000000e+00 : f32
    %419 = vector.broadcast %cst_196 : f32 to vector<2x32xf32>
    %420 = arith.addf %419, %418 : vector<2x32xf32>
    %421 = arith.divf %419, %420 : vector<2x32xf32>
    %422 = math.tanh %406 : vector<2x32xf32>
    %423 = arith.negf %411 : vector<2x32xf32>
    %424 = math.exp %423 : vector<2x32xf32>
    %cst_197 = arith.constant 1.000000e+00 : f32
    %425 = vector.broadcast %cst_197 : f32 to vector<2x32xf32>
    %426 = arith.addf %425, %424 : vector<2x32xf32>
    %427 = arith.divf %425, %426 : vector<2x32xf32>
    %428 = arith.mulf %421, %388 : vector<2x32xf32>
    %429 = arith.mulf %416, %422 : vector<2x32xf32>
    %430 = arith.addf %428, %429 : vector<2x32xf32>
    %431 = math.tanh %430 : vector<2x32xf32>
    %432 = arith.mulf %427, %431 : vector<2x32xf32>
    %c4_198 = arith.constant 4 : index
    %c0_199 = arith.constant 0 : index
    %433 = vector.load %arg13[%c4_198, %c0_199] : memref<16x32xf32, #tpu.memory_space<vmem>>, vector<2x32xf32>
    tpu.vector_store %arg13[%c4_198, %c0_199], %432 {strides = array<i32>} : memref<16x32xf32, #tpu.memory_space<vmem>>, vector<2x32xf32>,
    %434 = vector.extract_strided_slice %328 {offsets = [6, 0], sizes = [2, 32], strides = [1, 1]} : vector<16x32xf32> to vector<2x32xf32>
    %c0_200 = arith.constant 0 : index
    %c0_201 = arith.constant 0 : index
    %c0_202 = arith.constant 0 : index
    %435 = vector.load %arg6[%c0_200, %c0_201, %c0_202] : memref<4x32x32xf32, #tpu.memory_space<vmem>>, vector<1x32x32xf32>
    %436 = vector.shape_cast %435 : vector<1x32x32xf32> to vector<32x32xf32>
    %cst_203 = arith.constant dense<0.000000e+00> : vector<2x32xf32>
    %437 = tpu.matmul %432, %436, %cst_203 {dimension_numbers = #tpu.dot_dimension_numbers<[1], [0], [0], [1], [0, 0, 1, 1], [], []>} : vector<2x32xf32>, vector<32x32xf32>, vector<2x32xf32> -> vector<2x32xf32>
    %438 = arith.addf %434, %437 : vector<2x32xf32>
    %439 = vector.extract_strided_slice %329 {offsets = [6, 0], sizes = [2, 32], strides = [1, 1]} : vector<16x32xf32> to vector<2x32xf32>
    %c1_204 = arith.constant 1 : index
    %c0_205 = arith.constant 0 : index
    %c0_206 = arith.constant 0 : index
    %440 = vector.load %arg6[%c1_204, %c0_205, %c0_206] : memref<4x32x32xf32, #tpu.memory_space<vmem>>, vector<1x32x32xf32>
    %441 = vector.shape_cast %440 : vector<1x32x32xf32> to vector<32x32xf32>
    %cst_207 = arith.constant dense<0.000000e+00> : vector<2x32xf32>
    %442 = tpu.matmul %432, %441, %cst_207 {dimension_numbers = #tpu.dot_dimension_numbers<[1], [0], [0], [1], [0, 0, 1, 1], [], []>} : vector<2x32xf32>, vector<32x32xf32>, vector<2x32xf32> -> vector<2x32xf32>
    %443 = arith.addf %439, %442 : vector<2x32xf32>
    %444 = vector.extract_strided_slice %330 {offsets = [6, 0], sizes = [2, 32], strides = [1, 1]} : vector<16x32xf32> to vector<2x32xf32>
    %c2_208 = arith.constant 2 : index
    %c0_209 = arith.constant 0 : index
    %c0_210 = arith.constant 0 : index
    %445 = vector.load %arg6[%c2_208, %c0_209, %c0_210] : memref<4x32x32xf32, #tpu.memory_space<vmem>>, vector<1x32x32xf32>
    %446 = vector.shape_cast %445 : vector<1x32x32xf32> to vector<32x32xf32>
    %cst_211 = arith.constant dense<0.000000e+00> : vector<2x32xf32>
    %447 = tpu.matmul %432, %446, %cst_211 {dimension_numbers = #tpu.dot_dimension_numbers<[1], [0], [0], [1], [0, 0, 1, 1], [], []>} : vector<2x32xf32>, vector<32x32xf32>, vector<2x32xf32> -> vector<2x32xf32>
    %448 = arith.addf %444, %447 : vector<2x32xf32>
    %449 = vector.extract_strided_slice %331 {offsets = [6, 0], sizes = [2, 32], strides = [1, 1]} : vector<16x32xf32> to vector<2x32xf32>
    %c3_212 = arith.constant 3 : index
    %c0_213 = arith.constant 0 : index
    %c0_214 = arith.constant 0 : index
    %450 = vector.load %arg6[%c3_212, %c0_213, %c0_214] : memref<4x32x32xf32, #tpu.memory_space<vmem>>, vector<1x32x32xf32>
    %451 = vector.shape_cast %450 : vector<1x32x32xf32> to vector<32x32xf32>
    %cst_215 = arith.constant dense<0.000000e+00> : vector<2x32xf32>
    %452 = tpu.matmul %432, %451, %cst_215 {dimension_numbers = #tpu.dot_dimension_numbers<[1], [0], [0], [1], [0, 0, 1, 1], [], []>} : vector<2x32xf32>, vector<32x32xf32>, vector<2x32xf32> -> vector<2x32xf32>
    %453 = arith.addf %449, %452 : vector<2x32xf32>
    %454 = arith.negf %438 : vector<2x32xf32>
    %455 = math.exp %454 : vector<2x32xf32>
    %cst_216 = arith.constant 1.000000e+00 : f32
    %456 = vector.broadcast %cst_216 : f32 to vector<2x32xf32>
    %457 = arith.addf %456, %455 : vector<2x32xf32>
    %458 = arith.divf %456, %457 : vector<2x32xf32>
    %459 = arith.negf %443 : vector<2x32xf32>
    %460 = math.exp %459 : vector<2x32xf32>
    %cst_217 = arith.constant 1.000000e+00 : f32
    %461 = vector.broadcast %cst_217 : f32 to vector<2x32xf32>
    %462 = arith.addf %461, %460 : vector<2x32xf32>
    %463 = arith.divf %461, %462 : vector<2x32xf32>
    %464 = math.tanh %448 : vector<2x32xf32>
    %465 = arith.negf %453 : vector<2x32xf32>
    %466 = math.exp %465 : vector<2x32xf32>
    %cst_218 = arith.constant 1.000000e+00 : f32
    %467 = vector.broadcast %cst_218 : f32 to vector<2x32xf32>
    %468 = arith.addf %467, %466 : vector<2x32xf32>
    %469 = arith.divf %467, %468 : vector<2x32xf32>
    %470 = arith.mulf %463, %430 : vector<2x32xf32>
    %471 = arith.mulf %458, %464 : vector<2x32xf32>
    %472 = arith.addf %470, %471 : vector<2x32xf32>
    %473 = math.tanh %472 : vector<2x32xf32>
    %474 = arith.mulf %469, %473 : vector<2x32xf32>
    %c6_219 = arith.constant 6 : index
    %c0_220 = arith.constant 0 : index
    %475 = vector.load %arg13[%c6_219, %c0_220] : memref<16x32xf32, #tpu.memory_space<vmem>>, vector<2x32xf32>
    tpu.vector_store %arg13[%c6_219, %c0_220], %474 {strides = array<i32>} : memref<16x32xf32, #tpu.memory_space<vmem>>, vector<2x32xf32>,
    %476 = vector.extract_strided_slice %328 {offsets = [8, 0], sizes = [2, 32], strides = [1, 1]} : vector<16x32xf32> to vector<2x32xf32>
    %c0_221 = arith.constant 0 : index
    %c0_222 = arith.constant 0 : index
    %c0_223 = arith.constant 0 : index
    %477 = vector.load %arg6[%c0_221, %c0_222, %c0_223] : memref<4x32x32xf32, #tpu.memory_space<vmem>>, vector<1x32x32xf32>
    %478 = vector.shape_cast %477 : vector<1x32x32xf32> to vector<32x32xf32>
    %cst_224 = arith.constant dense<0.000000e+00> : vector<2x32xf32>
    %479 = tpu.matmul %474, %478, %cst_224 {dimension_numbers = #tpu.dot_dimension_numbers<[1], [0], [0], [1], [0, 0, 1, 1], [], []>} : vector<2x32xf32>, vector<32x32xf32>, vector<2x32xf32> -> vector<2x32xf32>
    %480 = arith.addf %476, %479 : vector<2x32xf32>
    %481 = vector.extract_strided_slice %329 {offsets = [8, 0], sizes = [2, 32], strides = [1, 1]} : vector<16x32xf32> to vector<2x32xf32>
    %c1_225 = arith.constant 1 : index
    %c0_226 = arith.constant 0 : index
    %c0_227 = arith.constant 0 : index
    %482 = vector.load %arg6[%c1_225, %c0_226, %c0_227] : memref<4x32x32xf32, #tpu.memory_space<vmem>>, vector<1x32x32xf32>
    %483 = vector.shape_cast %482 : vector<1x32x32xf32> to vector<32x32xf32>
    %cst_228 = arith.constant dense<0.000000e+00> : vector<2x32xf32>
    %484 = tpu.matmul %474, %483, %cst_228 {dimension_numbers = #tpu.dot_dimension_numbers<[1], [0], [0], [1], [0, 0, 1, 1], [], []>} : vector<2x32xf32>, vector<32x32xf32>, vector<2x32xf32> -> vector<2x32xf32>
    %485 = arith.addf %481, %484 : vector<2x32xf32>
    %486 = vector.extract_strided_slice %330 {offsets = [8, 0], sizes = [2, 32], strides = [1, 1]} : vector<16x32xf32> to vector<2x32xf32>
    %c2_229 = arith.constant 2 : index
    %c0_230 = arith.constant 0 : index
    %c0_231 = arith.constant 0 : index
    %487 = vector.load %arg6[%c2_229, %c0_230, %c0_231] : memref<4x32x32xf32, #tpu.memory_space<vmem>>, vector<1x32x32xf32>
    %488 = vector.shape_cast %487 : vector<1x32x32xf32> to vector<32x32xf32>
    %cst_232 = arith.constant dense<0.000000e+00> : vector<2x32xf32>
    %489 = tpu.matmul %474, %488, %cst_232 {dimension_numbers = #tpu.dot_dimension_numbers<[1], [0], [0], [1], [0, 0, 1, 1], [], []>} : vector<2x32xf32>, vector<32x32xf32>, vector<2x32xf32> -> vector<2x32xf32>
    %490 = arith.addf %486, %489 : vector<2x32xf32>
    %491 = vector.extract_strided_slice %331 {offsets = [8, 0], sizes = [2, 32], strides = [1, 1]} : vector<16x32xf32> to vector<2x32xf32>
    %c3_233 = arith.constant 3 : index
    %c0_234 = arith.constant 0 : index
    %c0_235 = arith.constant 0 : index
    %492 = vector.load %arg6[%c3_233, %c0_234, %c0_235] : memref<4x32x32xf32, #tpu.memory_space<vmem>>, vector<1x32x32xf32>
    %493 = vector.shape_cast %492 : vector<1x32x32xf32> to vector<32x32xf32>
    %cst_236 = arith.constant dense<0.000000e+00> : vector<2x32xf32>
    %494 = tpu.matmul %474, %493, %cst_236 {dimension_numbers = #tpu.dot_dimension_numbers<[1], [0], [0], [1], [0, 0, 1, 1], [], []>} : vector<2x32xf32>, vector<32x32xf32>, vector<2x32xf32> -> vector<2x32xf32>
    %495 = arith.addf %491, %494 : vector<2x32xf32>
    %496 = arith.negf %480 : vector<2x32xf32>
    %497 = math.exp %496 : vector<2x32xf32>
    %cst_237 = arith.constant 1.000000e+00 : f32
    %498 = vector.broadcast %cst_237 : f32 to vector<2x32xf32>
    %499 = arith.addf %498, %497 : vector<2x32xf32>
    %500 = arith.divf %498, %499 : vector<2x32xf32>
    %501 = arith.negf %485 : vector<2x32xf32>
    %502 = math.exp %501 : vector<2x32xf32>
    %cst_238 = arith.constant 1.000000e+00 : f32
    %503 = vector.broadcast %cst_238 : f32 to vector<2x32xf32>
    %504 = arith.addf %503, %502 : vector<2x32xf32>
    %505 = arith.divf %503, %504 : vector<2x32xf32>
    %506 = math.tanh %490 : vector<2x32xf32>
    %507 = arith.negf %495 : vector<2x32xf32>
    %508 = math.exp %507 : vector<2x32xf32>
    %cst_239 = arith.constant 1.000000e+00 : f32
    %509 = vector.broadcast %cst_239 : f32 to vector<2x32xf32>
    %510 = arith.addf %509, %508 : vector<2x32xf32>
    %511 = arith.divf %509, %510 : vector<2x32xf32>
    %512 = arith.mulf %505, %472 : vector<2x32xf32>
    %513 = arith.mulf %500, %506 : vector<2x32xf32>
    %514 = arith.addf %512, %513 : vector<2x32xf32>
    %515 = math.tanh %514 : vector<2x32xf32>
    %516 = arith.mulf %511, %515 : vector<2x32xf32>
    %c8_240 = arith.constant 8 : index
    %c0_241 = arith.constant 0 : index
    %517 = vector.load %arg13[%c8_240, %c0_241] : memref<16x32xf32, #tpu.memory_space<vmem>>, vector<2x32xf32>
    tpu.vector_store %arg13[%c8_240, %c0_241], %516 {strides = array<i32>} : memref<16x32xf32, #tpu.memory_space<vmem>>, vector<2x32xf32>,
    %518 = vector.extract_strided_slice %328 {offsets = [10, 0], sizes = [2, 32], strides = [1, 1]} : vector<16x32xf32> to vector<2x32xf32>
    %c0_242 = arith.constant 0 : index
    %c0_243 = arith.constant 0 : index
    %c0_244 = arith.constant 0 : index
    %519 = vector.load %arg6[%c0_242, %c0_243, %c0_244] : memref<4x32x32xf32, #tpu.memory_space<vmem>>, vector<1x32x32xf32>
    %520 = vector.shape_cast %519 : vector<1x32x32xf32> to vector<32x32xf32>
    %cst_245 = arith.constant dense<0.000000e+00> : vector<2x32xf32>
    %521 = tpu.matmul %516, %520, %cst_245 {dimension_numbers = #tpu.dot_dimension_numbers<[1], [0], [0], [1], [0, 0, 1, 1], [], []>} : vector<2x32xf32>, vector<32x32xf32>, vector<2x32xf32> -> vector<2x32xf32>
    %522 = arith.addf %518, %521 : vector<2x32xf32>
    %523 = vector.extract_strided_slice %329 {offsets = [10, 0], sizes = [2, 32], strides = [1, 1]} : vector<16x32xf32> to vector<2x32xf32>
    %c1_246 = arith.constant 1 : index
    %c0_247 = arith.constant 0 : index
    %c0_248 = arith.constant 0 : index
    %524 = vector.load %arg6[%c1_246, %c0_247, %c0_248] : memref<4x32x32xf32, #tpu.memory_space<vmem>>, vector<1x32x32xf32>
    %525 = vector.shape_cast %524 : vector<1x32x32xf32> to vector<32x32xf32>
    %cst_249 = arith.constant dense<0.000000e+00> : vector<2x32xf32>
    %526 = tpu.matmul %516, %525, %cst_249 {dimension_numbers = #tpu.dot_dimension_numbers<[1], [0], [0], [1], [0, 0, 1, 1], [], []>} : vector<2x32xf32>, vector<32x32xf32>, vector<2x32xf32> -> vector<2x32xf32>
    %527 = arith.addf %523, %526 : vector<2x32xf32>
    %528 = vector.extract_strided_slice %330 {offsets = [10, 0], sizes = [2, 32], strides = [1, 1]} : vector<16x32xf32> to vector<2x32xf32>
    %c2_250 = arith.constant 2 : index
    %c0_251 = arith.constant 0 : index
    %c0_252 = arith.constant 0 : index
    %529 = vector.load %arg6[%c2_250, %c0_251, %c0_252] : memref<4x32x32xf32, #tpu.memory_space<vmem>>, vector<1x32x32xf32>
    %530 = vector.shape_cast %529 : vector<1x32x32xf32> to vector<32x32xf32>
    %cst_253 = arith.constant dense<0.000000e+00> : vector<2x32xf32>
    %531 = tpu.matmul %516, %530, %cst_253 {dimension_numbers = #tpu.dot_dimension_numbers<[1], [0], [0], [1], [0, 0, 1, 1], [], []>} : vector<2x32xf32>, vector<32x32xf32>, vector<2x32xf32> -> vector<2x32xf32>
    %532 = arith.addf %528, %531 : vector<2x32xf32>
    %533 = vector.extract_strided_slice %331 {offsets = [10, 0], sizes = [2, 32], strides = [1, 1]} : vector<16x32xf32> to vector<2x32xf32>
    %c3_254 = arith.constant 3 : index
    %c0_255 = arith.constant 0 : index
    %c0_256 = arith.constant 0 : index
    %534 = vector.load %arg6[%c3_254, %c0_255, %c0_256] : memref<4x32x32xf32, #tpu.memory_space<vmem>>, vector<1x32x32xf32>
    %535 = vector.shape_cast %534 : vector<1x32x32xf32> to vector<32x32xf32>
    %cst_257 = arith.constant dense<0.000000e+00> : vector<2x32xf32>
    %536 = tpu.matmul %516, %535, %cst_257 {dimension_numbers = #tpu.dot_dimension_numbers<[1], [0], [0], [1], [0, 0, 1, 1], [], []>} : vector<2x32xf32>, vector<32x32xf32>, vector<2x32xf32> -> vector<2x32xf32>
    %537 = arith.addf %533, %536 : vector<2x32xf32>
    %538 = arith.negf %522 : vector<2x32xf32>
    %539 = math.exp %538 : vector<2x32xf32>
    %cst_258 = arith.constant 1.000000e+00 : f32
    %540 = vector.broadcast %cst_258 : f32 to vector<2x32xf32>
    %541 = arith.addf %540, %539 : vector<2x32xf32>
    %542 = arith.divf %540, %541 : vector<2x32xf32>
    %543 = arith.negf %527 : vector<2x32xf32>
    %544 = math.exp %543 : vector<2x32xf32>
    %cst_259 = arith.constant 1.000000e+00 : f32
    %545 = vector.broadcast %cst_259 : f32 to vector<2x32xf32>
    %546 = arith.addf %545, %544 : vector<2x32xf32>
    %547 = arith.divf %545, %546 : vector<2x32xf32>
    %548 = math.tanh %532 : vector<2x32xf32>
    %549 = arith.negf %537 : vector<2x32xf32>
    %550 = math.exp %549 : vector<2x32xf32>
    %cst_260 = arith.constant 1.000000e+00 : f32
    %551 = vector.broadcast %cst_260 : f32 to vector<2x32xf32>
    %552 = arith.addf %551, %550 : vector<2x32xf32>
    %553 = arith.divf %551, %552 : vector<2x32xf32>
    %554 = arith.mulf %547, %514 : vector<2x32xf32>
    %555 = arith.mulf %542, %548 : vector<2x32xf32>
    %556 = arith.addf %554, %555 : vector<2x32xf32>
    %557 = math.tanh %556 : vector<2x32xf32>
    %558 = arith.mulf %553, %557 : vector<2x32xf32>
    %c10_261 = arith.constant 10 : index
    %c0_262 = arith.constant 0 : index
    %559 = vector.load %arg13[%c10_261, %c0_262] : memref<16x32xf32, #tpu.memory_space<vmem>>, vector<2x32xf32>
    tpu.vector_store %arg13[%c10_261, %c0_262], %558 {strides = array<i32>} : memref<16x32xf32, #tpu.memory_space<vmem>>, vector<2x32xf32>,
    %560 = vector.extract_strided_slice %328 {offsets = [12, 0], sizes = [2, 32], strides = [1, 1]} : vector<16x32xf32> to vector<2x32xf32>
    %c0_263 = arith.constant 0 : index
    %c0_264 = arith.constant 0 : index
    %c0_265 = arith.constant 0 : index
    %561 = vector.load %arg6[%c0_263, %c0_264, %c0_265] : memref<4x32x32xf32, #tpu.memory_space<vmem>>, vector<1x32x32xf32>
    %562 = vector.shape_cast %561 : vector<1x32x32xf32> to vector<32x32xf32>
    %cst_266 = arith.constant dense<0.000000e+00> : vector<2x32xf32>
    %563 = tpu.matmul %558, %562, %cst_266 {dimension_numbers = #tpu.dot_dimension_numbers<[1], [0], [0], [1], [0, 0, 1, 1], [], []>} : vector<2x32xf32>, vector<32x32xf32>, vector<2x32xf32> -> vector<2x32xf32>
    %564 = arith.addf %560, %563 : vector<2x32xf32>
    %565 = vector.extract_strided_slice %329 {offsets = [12, 0], sizes = [2, 32], strides = [1, 1]} : vector<16x32xf32> to vector<2x32xf32>
    %c1_267 = arith.constant 1 : index
    %c0_268 = arith.constant 0 : index
    %c0_269 = arith.constant 0 : index
    %566 = vector.load %arg6[%c1_267, %c0_268, %c0_269] : memref<4x32x32xf32, #tpu.memory_space<vmem>>, vector<1x32x32xf32>
    %567 = vector.shape_cast %566 : vector<1x32x32xf32> to vector<32x32xf32>
    %cst_270 = arith.constant dense<0.000000e+00> : vector<2x32xf32>
    %568 = tpu.matmul %558, %567, %cst_270 {dimension_numbers = #tpu.dot_dimension_numbers<[1], [0], [0], [1], [0, 0, 1, 1], [], []>} : vector<2x32xf32>, vector<32x32xf32>, vector<2x32xf32> -> vector<2x32xf32>
    %569 = arith.addf %565, %568 : vector<2x32xf32>
    %570 = vector.extract_strided_slice %330 {offsets = [12, 0], sizes = [2, 32], strides = [1, 1]} : vector<16x32xf32> to vector<2x32xf32>
    %c2_271 = arith.constant 2 : index
    %c0_272 = arith.constant 0 : index
    %c0_273 = arith.constant 0 : index
    %571 = vector.load %arg6[%c2_271, %c0_272, %c0_273] : memref<4x32x32xf32, #tpu.memory_space<vmem>>, vector<1x32x32xf32>
    %572 = vector.shape_cast %571 : vector<1x32x32xf32> to vector<32x32xf32>
    %cst_274 = arith.constant dense<0.000000e+00> : vector<2x32xf32>
    %573 = tpu.matmul %558, %572, %cst_274 {dimension_numbers = #tpu.dot_dimension_numbers<[1], [0], [0], [1], [0, 0, 1, 1], [], []>} : vector<2x32xf32>, vector<32x32xf32>, vector<2x32xf32> -> vector<2x32xf32>
    %574 = arith.addf %570, %573 : vector<2x32xf32>
    %575 = vector.extract_strided_slice %331 {offsets = [12, 0], sizes = [2, 32], strides = [1, 1]} : vector<16x32xf32> to vector<2x32xf32>
    %c3_275 = arith.constant 3 : index
    %c0_276 = arith.constant 0 : index
    %c0_277 = arith.constant 0 : index
    %576 = vector.load %arg6[%c3_275, %c0_276, %c0_277] : memref<4x32x32xf32, #tpu.memory_space<vmem>>, vector<1x32x32xf32>
    %577 = vector.shape_cast %576 : vector<1x32x32xf32> to vector<32x32xf32>
    %cst_278 = arith.constant dense<0.000000e+00> : vector<2x32xf32>
    %578 = tpu.matmul %558, %577, %cst_278 {dimension_numbers = #tpu.dot_dimension_numbers<[1], [0], [0], [1], [0, 0, 1, 1], [], []>} : vector<2x32xf32>, vector<32x32xf32>, vector<2x32xf32> -> vector<2x32xf32>
    %579 = arith.addf %575, %578 : vector<2x32xf32>
    %580 = arith.negf %564 : vector<2x32xf32>
    %581 = math.exp %580 : vector<2x32xf32>
    %cst_279 = arith.constant 1.000000e+00 : f32
    %582 = vector.broadcast %cst_279 : f32 to vector<2x32xf32>
    %583 = arith.addf %582, %581 : vector<2x32xf32>
    %584 = arith.divf %582, %583 : vector<2x32xf32>
    %585 = arith.negf %569 : vector<2x32xf32>
    %586 = math.exp %585 : vector<2x32xf32>
    %cst_280 = arith.constant 1.000000e+00 : f32
    %587 = vector.broadcast %cst_280 : f32 to vector<2x32xf32>
    %588 = arith.addf %587, %586 : vector<2x32xf32>
    %589 = arith.divf %587, %588 : vector<2x32xf32>
    %590 = math.tanh %574 : vector<2x32xf32>
    %591 = arith.negf %579 : vector<2x32xf32>
    %592 = math.exp %591 : vector<2x32xf32>
    %cst_281 = arith.constant 1.000000e+00 : f32
    %593 = vector.broadcast %cst_281 : f32 to vector<2x32xf32>
    %594 = arith.addf %593, %592 : vector<2x32xf32>
    %595 = arith.divf %593, %594 : vector<2x32xf32>
    %596 = arith.mulf %589, %556 : vector<2x32xf32>
    %597 = arith.mulf %584, %590 : vector<2x32xf32>
    %598 = arith.addf %596, %597 : vector<2x32xf32>
    %599 = math.tanh %598 : vector<2x32xf32>
    %600 = arith.mulf %595, %599 : vector<2x32xf32>
    %c12_282 = arith.constant 12 : index
    %c0_283 = arith.constant 0 : index
    %601 = vector.load %arg13[%c12_282, %c0_283] : memref<16x32xf32, #tpu.memory_space<vmem>>, vector<2x32xf32>
    tpu.vector_store %arg13[%c12_282, %c0_283], %600 {strides = array<i32>} : memref<16x32xf32, #tpu.memory_space<vmem>>, vector<2x32xf32>,
    %602 = vector.extract_strided_slice %328 {offsets = [14, 0], sizes = [2, 32], strides = [1, 1]} : vector<16x32xf32> to vector<2x32xf32>
    %c0_284 = arith.constant 0 : index
    %c0_285 = arith.constant 0 : index
    %c0_286 = arith.constant 0 : index
    %603 = vector.load %arg6[%c0_284, %c0_285, %c0_286] : memref<4x32x32xf32, #tpu.memory_space<vmem>>, vector<1x32x32xf32>
    %604 = vector.shape_cast %603 : vector<1x32x32xf32> to vector<32x32xf32>
    %cst_287 = arith.constant dense<0.000000e+00> : vector<2x32xf32>
    %605 = tpu.matmul %600, %604, %cst_287 {dimension_numbers = #tpu.dot_dimension_numbers<[1], [0], [0], [1], [0, 0, 1, 1], [], []>} : vector<2x32xf32>, vector<32x32xf32>, vector<2x32xf32> -> vector<2x32xf32>
    %606 = arith.addf %602, %605 : vector<2x32xf32>
    %607 = vector.extract_strided_slice %329 {offsets = [14, 0], sizes = [2, 32], strides = [1, 1]} : vector<16x32xf32> to vector<2x32xf32>
    %c1_288 = arith.constant 1 : index
    %c0_289 = arith.constant 0 : index
    %c0_290 = arith.constant 0 : index
    %608 = vector.load %arg6[%c1_288, %c0_289, %c0_290] : memref<4x32x32xf32, #tpu.memory_space<vmem>>, vector<1x32x32xf32>
    %609 = vector.shape_cast %608 : vector<1x32x32xf32> to vector<32x32xf32>
    %cst_291 = arith.constant dense<0.000000e+00> : vector<2x32xf32>
    %610 = tpu.matmul %600, %609, %cst_291 {dimension_numbers = #tpu.dot_dimension_numbers<[1], [0], [0], [1], [0, 0, 1, 1], [], []>} : vector<2x32xf32>, vector<32x32xf32>, vector<2x32xf32> -> vector<2x32xf32>
    %611 = arith.addf %607, %610 : vector<2x32xf32>
    %612 = vector.extract_strided_slice %330 {offsets = [14, 0], sizes = [2, 32], strides = [1, 1]} : vector<16x32xf32> to vector<2x32xf32>
    %c2_292 = arith.constant 2 : index
    %c0_293 = arith.constant 0 : index
    %c0_294 = arith.constant 0 : index
    %613 = vector.load %arg6[%c2_292, %c0_293, %c0_294] : memref<4x32x32xf32, #tpu.memory_space<vmem>>, vector<1x32x32xf32>
    %614 = vector.shape_cast %613 : vector<1x32x32xf32> to vector<32x32xf32>
    %cst_295 = arith.constant dense<0.000000e+00> : vector<2x32xf32>
    %615 = tpu.matmul %600, %614, %cst_295 {dimension_numbers = #tpu.dot_dimension_numbers<[1], [0], [0], [1], [0, 0, 1, 1], [], []>} : vector<2x32xf32>, vector<32x32xf32>, vector<2x32xf32> -> vector<2x32xf32>
    %616 = arith.addf %612, %615 : vector<2x32xf32>
    %617 = vector.extract_strided_slice %331 {offsets = [14, 0], sizes = [2, 32], strides = [1, 1]} : vector<16x32xf32> to vector<2x32xf32>
    %c3_296 = arith.constant 3 : index
    %c0_297 = arith.constant 0 : index
    %c0_298 = arith.constant 0 : index
    %618 = vector.load %arg6[%c3_296, %c0_297, %c0_298] : memref<4x32x32xf32, #tpu.memory_space<vmem>>, vector<1x32x32xf32>
    %619 = vector.shape_cast %618 : vector<1x32x32xf32> to vector<32x32xf32>
    %cst_299 = arith.constant dense<0.000000e+00> : vector<2x32xf32>
    %620 = tpu.matmul %600, %619, %cst_299 {dimension_numbers = #tpu.dot_dimension_numbers<[1], [0], [0], [1], [0, 0, 1, 1], [], []>} : vector<2x32xf32>, vector<32x32xf32>, vector<2x32xf32> -> vector<2x32xf32>
    %621 = arith.addf %617, %620 : vector<2x32xf32>
    %622 = arith.negf %606 : vector<2x32xf32>
    %623 = math.exp %622 : vector<2x32xf32>
    %cst_300 = arith.constant 1.000000e+00 : f32
    %624 = vector.broadcast %cst_300 : f32 to vector<2x32xf32>
    %625 = arith.addf %624, %623 : vector<2x32xf32>
    %626 = arith.divf %624, %625 : vector<2x32xf32>
    %627 = arith.negf %611 : vector<2x32xf32>
    %628 = math.exp %627 : vector<2x32xf32>
    %cst_301 = arith.constant 1.000000e+00 : f32
    %629 = vector.broadcast %cst_301 : f32 to vector<2x32xf32>
    %630 = arith.addf %629, %628 : vector<2x32xf32>
    %631 = arith.divf %629, %630 : vector<2x32xf32>
    %632 = math.tanh %616 : vector<2x32xf32>
    %633 = arith.negf %621 : vector<2x32xf32>
    %634 = math.exp %633 : vector<2x32xf32>
    %cst_302 = arith.constant 1.000000e+00 : f32
    %635 = vector.broadcast %cst_302 : f32 to vector<2x32xf32>
    %636 = arith.addf %635, %634 : vector<2x32xf32>
    %637 = arith.divf %635, %636 : vector<2x32xf32>
    %638 = arith.mulf %631, %598 : vector<2x32xf32>
    %639 = arith.mulf %626, %632 : vector<2x32xf32>
    %640 = arith.addf %638, %639 : vector<2x32xf32>
    %641 = math.tanh %640 : vector<2x32xf32>
    %642 = arith.mulf %637, %641 : vector<2x32xf32>
    %c14_303 = arith.constant 14 : index
    %c0_304 = arith.constant 0 : index
    %643 = vector.load %arg13[%c14_303, %c0_304] : memref<16x32xf32, #tpu.memory_space<vmem>>, vector<2x32xf32>
    tpu.vector_store %arg13[%c14_303, %c0_304], %642 {strides = array<i32>} : memref<16x32xf32, #tpu.memory_space<vmem>>, vector<2x32xf32>,
    %c0_305 = arith.constant 0 : index
    %c0_306 = arith.constant 0 : index
    %644 = vector.load %arg13[%c0_305, %c0_306] : memref<16x32xf32, #tpu.memory_space<vmem>>, vector<16x32xf32>
    %c0_307 = arith.constant 0 : index
    %c0_308 = arith.constant 0 : index
    %645 = vector.load %arg8[%c0_307, %c0_308] : memref<32x32xf32, #tpu.memory_space<vmem>>, vector<32x32xf32>
    %cst_309 = arith.constant dense<0.000000e+00> : vector<16x32xf32>
    %646 = tpu.matmul %644, %645, %cst_309 {dimension_numbers = #tpu.dot_dimension_numbers<[1], [0], [0], [1], [0, 0, 1, 1], [], []>} : vector<16x32xf32>, vector<32x32xf32>, vector<16x32xf32> -> vector<16x32xf32>
    %c0_310 = arith.constant 0 : index
    %c0_311 = arith.constant 0 : index
    %647 = vector.load %arg9[%c0_310, %c0_311] : memref<1x32xf32, #tpu.memory_space<vmem>>, vector<1x32xf32>
    %648 = vector.broadcast %647 : vector<1x32xf32> to vector<16x32xf32>
    %649 = arith.addf %646, %648 : vector<16x32xf32>
    %cst_312 = arith.constant 0.000000e+00 : f32
    %650 = vector.broadcast %cst_312 : f32 to vector<16x32xf32>
    %651 = arith.maximumf %649, %650 : vector<16x32xf32>
    %c0_313 = arith.constant 0 : index
    %c0_314 = arith.constant 0 : index
    %652 = vector.load %arg10[%c0_313, %c0_314] : memref<32x32xf32, #tpu.memory_space<vmem>>, vector<32x32xf32>
    %cst_315 = arith.constant dense<0.000000e+00> : vector<16x32xf32>
    %653 = tpu.matmul %651, %652, %cst_315 {dimension_numbers = #tpu.dot_dimension_numbers<[1], [0], [0], [1], [0, 0, 1, 1], [], []>} : vector<16x32xf32>, vector<32x32xf32>, vector<16x32xf32> -> vector<16x32xf32>
    %c0_316 = arith.constant 0 : index
    %c0_317 = arith.constant 0 : index
    %654 = vector.load %arg11[%c0_316, %c0_317] : memref<1x32xf32, #tpu.memory_space<vmem>>, vector<1x32xf32>
    %655 = vector.broadcast %654 : vector<1x32xf32> to vector<16x32xf32>
    %656 = arith.addf %653, %655 : vector<16x32xf32>
    %657 = vector.extract_strided_slice %656 {offsets = [0, 0], sizes = [2, 32], strides = [1, 1]} : vector<16x32xf32> to vector<2x32xf32>
    %658 = vector.extract_strided_slice %656 {offsets = [2, 0], sizes = [2, 32], strides = [1, 1]} : vector<16x32xf32> to vector<2x32xf32>
    %659 = arith.addf %657, %658 : vector<2x32xf32>
    %660 = vector.extract_strided_slice %656 {offsets = [4, 0], sizes = [2, 32], strides = [1, 1]} : vector<16x32xf32> to vector<2x32xf32>
    %661 = arith.addf %659, %660 : vector<2x32xf32>
    %662 = vector.extract_strided_slice %656 {offsets = [6, 0], sizes = [2, 32], strides = [1, 1]} : vector<16x32xf32> to vector<2x32xf32>
    %663 = arith.addf %661, %662 : vector<2x32xf32>
    %664 = vector.extract_strided_slice %656 {offsets = [8, 0], sizes = [2, 32], strides = [1, 1]} : vector<16x32xf32> to vector<2x32xf32>
    %665 = arith.addf %663, %664 : vector<2x32xf32>
    %666 = vector.extract_strided_slice %656 {offsets = [10, 0], sizes = [2, 32], strides = [1, 1]} : vector<16x32xf32> to vector<2x32xf32>
    %667 = arith.addf %665, %666 : vector<2x32xf32>
    %668 = vector.extract_strided_slice %656 {offsets = [12, 0], sizes = [2, 32], strides = [1, 1]} : vector<16x32xf32> to vector<2x32xf32>
    %669 = arith.addf %667, %668 : vector<2x32xf32>
    %670 = vector.extract_strided_slice %656 {offsets = [14, 0], sizes = [2, 32], strides = [1, 1]} : vector<16x32xf32> to vector<2x32xf32>
    %671 = arith.addf %669, %670 : vector<2x32xf32>
    %cst_318 = arith.constant 1.250000e-01 : f32
    %672 = vector.broadcast %cst_318 : f32 to vector<2x32xf32>
    %673 = arith.mulf %671, %672 : vector<2x32xf32>
    %c0_319 = arith.constant 0 : index
    %c0_320 = arith.constant 0 : index
    %674 = vector.load %arg12[%c0_319, %c0_320] : memref<2x32xf32, #tpu.memory_space<vmem>>, vector<2x32xf32>
    tpu.vector_store %arg12[%c0_319, %c0_320], %673 {strides = array<i32>} : memref<2x32xf32, #tpu.memory_space<vmem>>, vector<2x32xf32>,
    return
  }
  func.func @transform_0(%arg0: i32) -> (i32, i32) {
    %c0_i32 = arith.constant 0 : i32
    %c0_i32_0 = arith.constant 0 : i32
    %c0_i32_1 = arith.constant 0 : i32
    return %c0_i32, %c0_i32_0 : i32, i32
  }
  func.func @transform_1(%arg0: i32) -> (i32, i32) {
    %c0_i32 = arith.constant 0 : i32
    %c0_i32_0 = arith.constant 0 : i32
    %c0_i32_1 = arith.constant 0 : i32
    return %c0_i32, %c0_i32_0 : i32, i32
  }
  func.func @transform_2(%arg0: i32) -> (i32, i32, i32) {
    %c0_i32 = arith.constant 0 : i32
    %c0_i32_0 = arith.constant 0 : i32
    %c0_i32_1 = arith.constant 0 : i32
    %c0_i32_2 = arith.constant 0 : i32
    return %c0_i32, %c0_i32_0, %c0_i32_1 : i32, i32, i32
  }
  func.func @transform_3(%arg0: i32) -> (i32, i32) {
    %c0_i32 = arith.constant 0 : i32
    %c0_i32_0 = arith.constant 0 : i32
    %c0_i32_1 = arith.constant 0 : i32
    return %c0_i32, %c0_i32_0 : i32, i32
  }
  func.func @transform_4(%arg0: i32) -> (i32, i32) {
    %c0_i32 = arith.constant 0 : i32
    %c0_i32_0 = arith.constant 0 : i32
    %c0_i32_1 = arith.constant 0 : i32
    return %c0_i32, %c0_i32_0 : i32, i32
  }
  func.func @transform_5(%arg0: i32) -> (i32, i32, i32) {
    %c0_i32 = arith.constant 0 : i32
    %c0_i32_0 = arith.constant 0 : i32
    %c0_i32_1 = arith.constant 0 : i32
    %c0_i32_2 = arith.constant 0 : i32
    return %c0_i32, %c0_i32_0, %c0_i32_1 : i32, i32, i32
  }
  func.func @transform_6(%arg0: i32) -> (i32, i32) {
    %c0_i32 = arith.constant 0 : i32
    %c0_i32_0 = arith.constant 0 : i32
    %c0_i32_1 = arith.constant 0 : i32
    return %c0_i32, %c0_i32_0 : i32, i32
  }
  func.func @transform_7(%arg0: i32) -> (i32, i32) {
    %c0_i32 = arith.constant 0 : i32
    %c0_i32_0 = arith.constant 0 : i32
    %c0_i32_1 = arith.constant 0 : i32
    return %c0_i32, %c0_i32_0 : i32, i32
  }
  func.func @transform_8(%arg0: i32) -> (i32, i32) {
    %c0_i32 = arith.constant 0 : i32
    %c0_i32_0 = arith.constant 0 : i32
    %c0_i32_1 = arith.constant 0 : i32
    return %c0_i32, %c0_i32_0 : i32, i32
  }
  func.func @transform_9(%arg0: i32) -> (i32, i32) {
    %c0_i32 = arith.constant 0 : i32
    %c0_i32_0 = arith.constant 0 : i32
    %c0_i32_1 = arith.constant 0 : i32
    return %c0_i32, %c0_i32_0 : i32, i32
  }
  func.func @transform_10(%arg0: i32) -> (i32, i32) {
    %c0_i32 = arith.constant 0 : i32
    %c0_i32_0 = arith.constant 0 : i32
    %c0_i32_1 = arith.constant 0 : i32
    return %c0_i32, %c0_i32_0 : i32, i32
  }
  func.func @transform_11(%arg0: i32) -> (i32, i32) {
    %c0_i32 = arith.constant 0 : i32
    %c0_i32_0 = arith.constant 0 : i32
    %c0_i32_1 = arith.constant 0 : i32
    return %c0_i32, %c0_i32_0 : i32, i32
  }
}

</mosaic_0001>

<llo_original>
// kernel: tpu_custom_call.1
$region0: #{tpu_custom_call.1}
  #allocation0 [shape = 'u32[]', space=smem, size = 0x4, offset = 0x4, fixed_abs, tag = 'smem constant byte address 0x4 - core index']
  #allocation1 [shape = 'u32[72,128]{1,0:T(1,128)}', space=vmem, size = 0x9000, scoped, tag = 'internal scratch']
  #allocation2 [shape = 'f32[16,32]{1,0:T(8,128)}', space=vmem, size = 0x2000, scoped, tag = 'scratch operand']
  %s0 = inlined_call_operand.hbm [shape: f32[16,32], index: 0, kind: input, shape index: {}]
  %s1 = inlined_call_operand.hbm [shape: f32[32,128], index: 1, kind: input, shape index: {}]
  %s2 = inlined_call_operand.hbm [shape: f32[4,32,32], index: 2, kind: input, shape index: {}]
  %s3 = inlined_call_operand.vmem [shape: f32[1,128], index: 3, kind: input, shape index: {}]
  %s4 = inlined_call_operand.hbm [shape: f32[32,128], index: 4, kind: input, shape index: {}]
  %s5 = inlined_call_operand.hbm [shape: f32[4,32,32], index: 5, kind: input, shape index: {}]
  %s6 = inlined_call_operand.vmem [shape: f32[1,128], index: 6, kind: input, shape index: {}]
  %s7 = inlined_call_operand.hbm [shape: f32[32,32], index: 7, kind: input, shape index: {}]
  %s8 = inlined_call_operand.vmem [shape: f32[1,32], index: 8, kind: input, shape index: {}]
  %s9 = inlined_call_operand.hbm [shape: f32[32,32], index: 9, kind: input, shape index: {}]
  %s10 = inlined_call_operand.vmem [shape: f32[1,32], index: 10, kind: input, shape index: {}]
  %s11 = inlined_call_operand.hbm [shape: f32[2,32], index: 11, kind: output, shape index: {}]
  %s12 = sld [smem:[#allocation0]]
  $region82: #{tpu_custom_call.1} parent=0
    _
  %s14 = ssub.s32 1, %s12
  %s15 = scalar_select 0, %s14, %s12
  $region1: #{tpu_custom_call.1} parent=0
    #allocation3 [shape = 'u8[8192]{0}', space=vmem, size = 0x2000, scoped, tag = 'input window, operand 0, single buffered']
    #allocation4 [shape = 's32[1]{0}', space=sflag, size = 0x4, scoped, tag = 'scoped memory for tpu_custom_call.1']
    #allocation5 [shape = 's32[1]{0}', space=sflag, size = 0x4, scoped, tag = 'scoped memory for tpu_custom_call.1']
    #allocation6 [shape = 'u8[16384]{0}', space=vmem, size = 0x4000, scoped, tag = 'input window, operand 1, single buffered']
    #allocation7 [shape = 's32[1]{0}', space=sflag, size = 0x4, scoped, tag = 'scoped memory for tpu_custom_call.1']
    #allocation8 [shape = 'u8[65536]{0}', space=vmem, size = 0x10000, scoped, tag = 'input window, operand 2, single buffered']
    #allocation9 [shape = 'u8[16384]{0}', space=vmem, size = 0x4000, scoped, tag = 'input window, operand 4, single buffered']
    #allocation10 [shape = 's32[1]{0}', space=sflag, size = 0x4, scoped, tag = 'scoped memory for tpu_custom_call.1']
    #allocation11 [shape = 'u8[65536]{0}', space=vmem, size = 0x10000, scoped, tag = 'input window, operand 5, single buffered']
    #allocation12 [shape = 'u8[16384]{0}', space=vmem, size = 0x4000, scoped, tag = 'input window, operand 7, single buffered']
    #allocation13 [shape = 's32[1]{0}', space=sflag, size = 0x4, scoped, tag = 'scoped memory for tpu_custom_call.1']
    #allocation14 [shape = 'u8[16384]{0}', space=vmem, size = 0x4000, scoped, tag = 'input window, operand 9, single buffered']
    #allocation15 [shape = 'u8[1024]{0}', space=vmem, size = 0x400, scoped, tag = 'output window, operand 0, single buffered']
    %16 = vsyncpa [#allocation4], 0
    %17 = vsyncpa [#allocation7], 0
    %18 = vsyncpa [#allocation10], 0
    %19 = vsyncpa [#allocation13], 0
    %20 = vsyncpa [#allocation5], 0
    // Predicated region
    $region2: #{tpu_custom_call.1} parent=1 // pred_check
      _
    $region3: #{tpu_custom_call.1} parent=1 // pred_check_branch
      %22 = sbr.rel (0) target = $region5
    $region4: #{tpu_custom_call.1} parent=1 // pred_region
      %24 = vsyncadd [#allocation4], 0
      %s25 = sshll.u32 %s0, 4
      %s26 = int_to_ptr.hbm [resolvable:$true] %s25
      %s27 = sshll.u32 [#allocation3], 4
      %s28 = int_to_ptr.vmem [resolvable:$true] %s27
      %33 = dma.hbm_to_vmem [thread:$0]  %s26, 256, %s28, [#allocation4], 128, 128, 8
    $region5: #{tpu_custom_call.1} parent=1 // pred_fallthru
      _
    // Predicated region
    $region6: #{tpu_custom_call.1} parent=1 // pred_check
      _
    $region7: #{tpu_custom_call.1} parent=1 // pred_check_branch
      %35 = sbr.rel (0) target = $region9
    $region8: #{tpu_custom_call.1} parent=1 // pred_region
      %37 = vsyncadd [#allocation7], 0
      %s38 = sshll.u32 %s1, 4
      %s39 = int_to_ptr.hbm [resolvable:$true] %s38
      %s40 = sshll.u32 [#allocation6], 4
      %s41 = int_to_ptr.vmem [resolvable:$true] %s40
      %46 = dma.hbm_to_vmem [thread:$0]  %s39, 512, %s41, [#allocation7], 128, 128, 8
    $region9: #{tpu_custom_call.1} parent=1 // pred_fallthru
      _
    // Predicated region
    $region10: #{tpu_custom_call.1} parent=1 // pred_check
      _
    $region11: #{tpu_custom_call.1} parent=1 // pred_check_branch
      %48 = sbr.rel (0) target = $region13
    $region12: #{tpu_custom_call.1} parent=1 // pred_region
      %50 = vsyncadd [#allocation7], 0
      %s51 = sshll.u32 %s2, 4
      %s52 = int_to_ptr.hbm [resolvable:$true] %s51
      %s53 = sshll.u32 [#allocation8], 4
      %s54 = int_to_ptr.vmem [resolvable:$true] %s53
      %59 = dma.hbm_to_vmem [thread:$0]  %s52, 2048, %s54, [#allocation7], 128, 128, 8
    $region13: #{tpu_custom_call.1} parent=1 // pred_fallthru
      _
    // Predicated region
    $region14: #{tpu_custom_call.1} parent=1 // pred_check
      _
    $region15: #{tpu_custom_call.1} parent=1 // pred_check_branch
      %61 = sbr.rel (0) target = $region17
    $region16: #{tpu_custom_call.1} parent=1 // pred_region
      _
    $region17: #{tpu_custom_call.1} parent=1 // pred_fallthru
      _
    // Predicated region
    $region18: #{tpu_custom_call.1} parent=1 // pred_check
      _
    $region19: #{tpu_custom_call.1} parent=1 // pred_check_branch
      %63 = sbr.rel (0) target = $region21
    $region20: #{tpu_custom_call.1} parent=1 // pred_region
      %65 = vsyncadd [#allocation10], 0
      %s66 = sshll.u32 %s4, 4
      %s67 = int_to_ptr.hbm [resolvable:$true] %s66
      %s68 = sshll.u32 [#allocation9], 4
      %s69 = int_to_ptr.vmem [resolvable:$true] %s68
      %74 = dma.hbm_to_vmem [thread:$0]  %s67, 512, %s69, [#allocation10], 128, 128, 8
    $region21: #{tpu_custom_call.1} parent=1 // pred_fallthru
      _
    // Predicated region
    $region22: #{tpu_custom_call.1} parent=1 // pred_check
      _
    $region23: #{tpu_custom_call.1} parent=1 // pred_check_branch
      %76 = sbr.rel (0) target = $region25
    $region24: #{tpu_custom_call.1} parent=1 // pred_region
      %78 = vsyncadd [#allocation10], 0
      %s79 = sshll.u32 %s5, 4
      %s80 = int_to_ptr.hbm [resolvable:$true] %s79
      %s81 = sshll.u32 [#allocation11], 4
      %s82 = int_to_ptr.vmem [resolvable:$true] %s81
      %87 = dma.hbm_to_vmem [thread:$0]  %s80, 2048, %s82, [#allocation10], 128, 128, 8
    $region25: #{tpu_custom_call.1} parent=1 // pred_fallthru
      _
    // Predicated region
    $region26: #{tpu_custom_call.1} parent=1 // pred_check
      _
    $region27: #{tpu_custom_call.1} parent=1 // pred_check_branch
      %89 = sbr.rel (0) target = $region29
    $region28: #{tpu_custom_call.1} parent=1 // pred_region
      _
    $region29: #{tpu_custom_call.1} parent=1 // pred_fallthru
      _
    // Predicated region
    $region30: #{tpu_custom_call.1} parent=1 // pred_check
      _
    $region31: #{tpu_custom_call.1} parent=1 // pred_check_branch
      %91 = sbr.rel (0) target = $region33
    $region32: #{tpu_custom_call.1} parent=1 // pred_region
      %93 = vsyncadd [#allocation13], 0
      %s94 = sshll.u32 %s7, 4
      %s95 = int_to_ptr.hbm [resolvable:$true] %s94
      %s96 = sshll.u32 [#allocation12], 4
      %s97 = int_to_ptr.vmem [resolvable:$true] %s96
      %102 = dma.hbm_to_vmem [thread:$0]  %s95, 512, %s97, [#allocation13], 128, 128, 8
    $region33: #{tpu_custom_call.1} parent=1 // pred_fallthru
      _
    // Predicated region
    $region34: #{tpu_custom_call.1} parent=1 // pred_check
      _
    $region35: #{tpu_custom_call.1} parent=1 // pred_check_branch
      %104 = sbr.rel (0) target = $region37
    $region36: #{tpu_custom_call.1} parent=1 // pred_region
      _
    $region37: #{tpu_custom_call.1} parent=1 // pred_fallthru
      _
    // Predicated region
    $region38: #{tpu_custom_call.1} parent=1 // pred_check
      _
    $region39: #{tpu_custom_call.1} parent=1 // pred_check_branch
      %106 = sbr.rel (0) target = $region41
    $region40: #{tpu_custom_call.1} parent=1 // pred_region
      %108 = vsyncadd [#allocation13], 0
      %s109 = sshll.u32 %s9, 4
      %s110 = int_to_ptr.hbm [resolvable:$true] %s109
      %s111 = sshll.u32 [#allocation14], 4
      %s112 = int_to_ptr.vmem [resolvable:$true] %s111
      %117 = dma.hbm_to_vmem [thread:$0]  %s110, 512, %s112, [#allocation13], 128, 128, 8
    $region41: #{tpu_custom_call.1} parent=1 // pred_fallthru
      _
    // Predicated region
    $region42: #{tpu_custom_call.1} parent=1 // pred_check
      _
    $region43: #{tpu_custom_call.1} parent=1 // pred_check_branch
      %119 = sbr.rel (0) target = $region45
    $region44: #{tpu_custom_call.1} parent=1 // pred_region
      _
    $region45: #{tpu_custom_call.1} parent=1 // pred_fallthru
      _
    // Predicated region
    $region46: #{tpu_custom_call.1} parent=1 // pred_check
      _
    $region47: #{tpu_custom_call.1} parent=1 // pred_check_branch
      %121 = sbr.rel (0) target = $region49
    $region48: #{tpu_custom_call.1} parent=1 // pred_region
      %123 = dma.done [#allocation4], 256
    $region49: #{tpu_custom_call.1} parent=1 // pred_fallthru
      _
    // Predicated region
    $region50: #{tpu_custom_call.1} parent=1 // pred_check
      _
    $region51: #{tpu_custom_call.1} parent=1 // pred_check_branch
      %125 = sbr.rel (0) target = $region53
    $region52: #{tpu_custom_call.1} parent=1 // pred_region
      %127 = dma.done [#allocation7], 512
    $region53: #{tpu_custom_call.1} parent=1 // pred_fallthru
      _
    // Predicated region
    $region54: #{tpu_custom_call.1} parent=1 // pred_check
      _
    $region55: #{tpu_custom_call.1} parent=1 // pred_check_branch
      %129 = sbr.rel (0) target = $region57
    $region56: #{tpu_custom_call.1} parent=1 // pred_region
      %131 = dma.done [#allocation7], 2048
    $region57: #{tpu_custom_call.1} parent=1 // pred_fallthru
      _
    // Predicated region
    $region58: #{tpu_custom_call.1} parent=1 // pred_check
      _
    $region59: #{tpu_custom_call.1} parent=1 // pred_check_branch
      %133 = sbr.rel (0) target = $region61
    $region60: #{tpu_custom_call.1} parent=1 // pred_region
      %135 = dma.done [#allocation10], 512
    $region61: #{tpu_custom_call.1} parent=1 // pred_fallthru
      _
    // Predicated region
    $region62: #{tpu_custom_call.1} parent=1 // pred_check
      _
    $region63: #{tpu_custom_call.1} parent=1 // pred_check_branch
      %137 = sbr.rel (0) target = $region65
    $region64: #{tpu_custom_call.1} parent=1 // pred_region
      %139 = dma.done [#allocation10], 2048
    $region65: #{tpu_custom_call.1} parent=1 // pred_fallthru
      _
    // Predicated region
    $region66: #{tpu_custom_call.1} parent=1 // pred_check
      _
    $region67: #{tpu_custom_call.1} parent=1 // pred_check_branch
      %141 = sbr.rel (0) target = $region69
    $region68: #{tpu_custom_call.1} parent=1 // pred_region
      %143 = dma.done [#allocation13], 512
    $region69: #{tpu_custom_call.1} parent=1 // pred_fallthru
      _
    // Predicated region
    $region70: #{tpu_custom_call.1} parent=1 // pred_check
      _
    $region71: #{tpu_custom_call.1} parent=1 // pred_check_branch
      %145 = sbr.rel (0) target = $region73
    $region72: #{tpu_custom_call.1} parent=1 // pred_region
      %147 = dma.done [#allocation13], 512
    $region73: #{tpu_custom_call.1} parent=1 // pred_fallthru
      _
    %v148 = vld [vmem:[#allocation3] sm:$0xff]
    %v149 = vld [vmem:[#allocation3 + $0x8] sm:$0xff]
    %v150 = vld [vmem:[#allocation6] sm:$0xff]
    %v151 = vld [vmem:[#allocation6 + $0x8] sm:$0xff]
    %v152 = vld [vmem:[#allocation6 + $0x10] sm:$0xff]
    %v153 = vld [vmem:[#allocation6 + $0x18] sm:$0xff]
    %v154 = vld [vmem:[%s3] sm:$0x1]
    %v156 = vperm.slane %v154, 0
    %vm158 = vcmask 261120
    %v160 = vsel %vm158, %v148, 0
    %v163 = vsel %vm158, %v149, 0
    %165 = vmatpush.msra.mxu0 0.0
    %166 = vmatpush.msra.mxu0 0.0
    %167 = vmatpush.msra.mxu0 0.0
    %168 = vmatpush.msra.mxu0 0.0
    %169 = vmatpush.msra.mxu0 0.0
    %170 = vmatpush.msra.mxu0 0.0
    %171 = vmatpush.msra.mxu0 0.0
    %172 = vmatpush.msra.mxu0 0.0
    %173 = vmatpush.msra.mxu0 0.0
    %174 = vmatpush.msra.mxu0 0.0
    %175 = vmatpush.msra.mxu0 0.0
    %176 = vmatpush.msra.mxu0 0.0
    %177 = vmatpush.msra.mxu0 %v153
    %178 = vmatpush.msra.mxu0 %v152
    %179 = vmatpush.msra.mxu0 %v151
    %180 = vmatpush.msra.mxu0 %v150
    %181 = vmatmul.f32.gmra.mxu0 %v160
    %v182 = vpop.f32.mrf.mxu0
    %v183 = vadd.f32 %v156, %v182
    %184 = vmatmul.f32.gmra.mxu0 %v163
    %v185 = vpop.f32.mrf.mxu0
    %v186 = vadd.f32 %v156, %v185
    %187 = vdwg.mxu0
    %v188 = vxor.u32 %v183, 2147483648
    %v189 = vmul.f32 %v188, 1.442695
    %v190 = vpow.pop %v189
    %v191 = vadd.f32 %v190, 1.0
    %v192 = vrcp.pop %v191
    %v193 = vmul.f32 %v191, %v192
    %v194 = vsub.f32 1.0, %v193
    %v195 = vmul.f32 %v192, %v194
    %v196 = vadd.f32 %v192, %v195
    %vm197 = vweird.f32 %v191
    %vm198 = vweird.f32 %v192
    %vm199 = vmor %vm197, %vm198
    %v200 = vsel %vm199, %v192, %v196
    %v201 = vand.u32 2147483647, %v191
    %vm202 = vcmp.eq.f32.partialorder %v201, 8.507059e+37
    %v203 = vand.u32 %v191, 2147483648
    %v204 = vor.u32 1.1754944e-38, %v203
    %v205 = vsel %vm202, %v204, %v200
    %v206 = vmul.f32 1.0, %v205
    %v207 = vtanh.pop %v183
    %209 = vrot.lane.b32.xlu0 %v207, 64
    %v210 = vpop.permute.xlu0 %209
    %v212 = vmul.f32 %v206, %v210
    %v213 = vtanh.pop %v212
    %215 = vrot.lane.b32.xlu0 %v213, 96
    %v216 = vpop.permute.xlu0 %215
    %v218 = vmul.f32 %v206, %v216
    %220 = vrot.lane.b32.xlu0 %v218, 32
    %v221 = vpop.permute.xlu0 %220
    %vm223 = vcmask 254976
    %224 = vst.msk [vmem:[#allocation2] sm:$0x3] %vm223, %v221
    %v225 = vld [vmem:[#allocation8] sm:$0xff]
    %v226 = vld [vmem:[#allocation8 + $0x8] sm:$0xff]
    %v227 = vld [vmem:[#allocation8 + $0x10] sm:$0xff]
    %v228 = vld [vmem:[#allocation8 + $0x18] sm:$0xff]
    %v229 = vsel %vm158, %v221, 0
    %231 = vmatpush.msra.mxu0 0.0
    %232 = vmatpush.msra.mxu0 0.0
    %233 = vmatpush.msra.mxu0 0.0
    %234 = vmatpush.msra.mxu0 0.0
    %235 = vmatpush.msra.mxu0 0.0
    %236 = vmatpush.msra.mxu0 0.0
    %237 = vmatpush.msra.mxu0 0.0
    %238 = vmatpush.msra.mxu0 0.0
    %239 = vmatpush.msra.mxu0 0.0
    %240 = vmatpush.msra.mxu0 0.0
    %241 = vmatpush.msra.mxu0 0.0
    %242 = vmatpush.msra.mxu0 0.0
    %243 = vmatpush.msra.mxu0 %v228
    %244 = vmatpush.msra.mxu0 %v227
    %245 = vmatpush.msra.mxu0 %v226
    %246 = vmatpush.msra.mxu0 %v225
    %247 = vmatmul.f32.gmra.mxu0 %v229
    %v248 = vpop.f32.mrf.mxu0
    %v249 = vadd.f32 0.0, %v248
    %250 = vdwg.mxu0
    %v252 = vrot.slane %v249, 6
    %v254 = vadd.f32 %v183, %v252
    %s255 = scalar_lea.vmem [#allocation8], 32
    %v256 = vld [vmem:[%s255] sm:$0xff]
    %v257 = vld [vmem:[%s255 + $0x8] sm:$0xff]
    %v258 = vld [vmem:[%s255 + $0x10] sm:$0xff]
    %v259 = vld [vmem:[%s255 + $0x18] sm:$0xff]
    %260 = vmatpush.msra.mxu0 0.0
    %261 = vmatpush.msra.mxu0 0.0
    %262 = vmatpush.msra.mxu0 0.0
    %263 = vmatpush.msra.mxu0 0.0
    %264 = vmatpush.msra.mxu0 0.0
    %265 = vmatpush.msra.mxu0 0.0
    %266 = vmatpush.msra.mxu0 0.0
    %267 = vmatpush.msra.mxu0 0.0
    %268 = vmatpush.msra.mxu0 0.0
    %269 = vmatpush.msra.mxu0 0.0
    %270 = vmatpush.msra.mxu0 0.0
    %271 = vmatpush.msra.mxu0 0.0
    %272 = vmatpush.msra.mxu0 %v259
    %273 = vmatpush.msra.mxu0 %v258
    %274 = vmatpush.msra.mxu0 %v257
    %275 = vmatpush.msra.mxu0 %v256
    %276 = vmatmul.f32.gmra.mxu0 %v229
    %v277 = vpop.f32.mrf.mxu0
    %v278 = vadd.f32 0.0, %v277
    %279 = vdwg.mxu0
    %v281 = vrot.slane %v278, 6
    %282 = vrot.lane.b32.xlu0 %v281, 32
    %v283 = vpop.permute.xlu0 %282
    %v285 = vadd.f32 %v183, %v283
    %s286 = scalar_lea.vmem [#allocation8], 64
    %v287 = vld [vmem:[%s286] sm:$0xff]
    %v288 = vld [vmem:[%s286 + $0x8] sm:$0xff]
    %v289 = vld [vmem:[%s286 + $0x10] sm:$0xff]
    %v290 = vld [vmem:[%s286 + $0x18] sm:$0xff]
    %291 = vmatpush.msra.mxu0 0.0
    %292 = vmatpush.msra.mxu0 0.0
    %293 = vmatpush.msra.mxu0 0.0
    %294 = vmatpush.msra.mxu0 0.0
    %295 = vmatpush.msra.mxu0 0.0
    %296 = vmatpush.msra.mxu0 0.0
    %297 = vmatpush.msra.mxu0 0.0
    %298 = vmatpush.msra.mxu0 0.0
    %299 = vmatpush.msra.mxu0 0.0
    %300 = vmatpush.msra.mxu0 0.0
    %301 = vmatpush.msra.mxu0 0.0
    %302 = vmatpush.msra.mxu0 0.0
    %303 = vmatpush.msra.mxu0 %v290
    %304 = vmatpush.msra.mxu0 %v289
    %305 = vmatpush.msra.mxu0 %v288
    %306 = vmatpush.msra.mxu0 %v287
    %307 = vmatmul.f32.gmra.mxu0 %v229
    %v308 = vpop.f32.mrf.mxu0
    %v309 = vadd.f32 0.0, %v308
    %310 = vdwg.mxu0
    %v312 = vrot.slane %v309, 6
    %313 = vrot.lane.b32.xlu0 %v312, 64
    %v314 = vpop.permute.xlu0 %313
    %v316 = vadd.f32 %v183, %v314
    %s317 = scalar_lea.vmem [#allocation8], 96
    %v318 = vld [vmem:[%s317] sm:$0xff]
    %v319 = vld [vmem:[%s317 + $0x8] sm:$0xff]
    %v320 = vld [vmem:[%s317 + $0x10] sm:$0xff]
    %v321 = vld [vmem:[%s317 + $0x18] sm:$0xff]
    %322 = vmatpush.msra.mxu0 0.0
    %323 = vmatpush.msra.mxu0 0.0
    %324 = vmatpush.msra.mxu0 0.0
    %325 = vmatpush.msra.mxu0 0.0
    %326 = vmatpush.msra.mxu0 0.0
    %327 = vmatpush.msra.mxu0 0.0
    %328 = vmatpush.msra.mxu0 0.0
    %329 = vmatpush.msra.mxu0 0.0
    %330 = vmatpush.msra.mxu0 0.0
    %331 = vmatpush.msra.mxu0 0.0
    %332 = vmatpush.msra.mxu0 0.0
    %333 = vmatpush.msra.mxu0 0.0
    %334 = vmatpush.msra.mxu0 %v321
    %335 = vmatpush.msra.mxu0 %v320
    %336 = vmatpush.msra.mxu0 %v319
    %337 = vmatpush.msra.mxu0 %v318
    %338 = vmatmul.f32.gmra.mxu0 %v229
    %v339 = vpop.f32.mrf.mxu0
    %v340 = vadd.f32 0.0, %v339
    %341 = vdwg.mxu0
    %v343 = vrot.slane %v340, 6
    %344 = vrot.lane.b32.xlu0 %v343, 96
    %v345 = vpop.permute.xlu0 %344
    %v347 = vadd.f32 %v183, %v345
    %v348 = vxor.u32 %v254, 2147483648
    %v349 = vmul.f32 %v348, 1.442695
    %v350 = vpow.pop %v349
    %v351 = vadd.f32 %v350, 1.0
    %v352 = vrcp.pop %v351
    %v353 = vmul.f32 %v351, %v352
    %v354 = vsub.f32 1.0, %v353
    %v355 = vmul.f32 %v352, %v354
    %v356 = vadd.f32 %v352, %v355
    %vm357 = vweird.f32 %v351
    %vm358 = vweird.f32 %v352
    %vm359 = vmor %vm357, %vm358
    %v360 = vsel %vm359, %v352, %v356
    %v361 = vand.u32 2147483647, %v351
    %vm362 = vcmp.eq.f32.partialorder %v361, 8.507059e+37
    %v363 = vand.u32 %v351, 2147483648
    %v364 = vor.u32 1.1754944e-38, %v363
    %v365 = vsel %vm362, %v364, %v360
    %v366 = vmul.f32 1.0, %v365
    %v367 = vxor.u32 %v285, 2147483648
    %v368 = vmul.f32 %v367, 1.442695
    %v369 = vpow.pop %v368
    %v370 = vadd.f32 %v369, 1.0
    %v371 = vrcp.pop %v370
    %v372 = vmul.f32 %v370, %v371
    %v373 = vsub.f32 1.0, %v372
    %v374 = vmul.f32 %v371, %v373
    %v375 = vadd.f32 %v371, %v374
    %vm376 = vweird.f32 %v370
    %vm377 = vweird.f32 %v371
    %vm378 = vmor %vm376, %vm377
    %v379 = vsel %vm378, %v371, %v375
    %v380 = vand.u32 2147483647, %v370
    %vm381 = vcmp.eq.f32.partialorder %v380, 8.507059e+37
    %v382 = vand.u32 %v370, 2147483648
    %v383 = vor.u32 1.1754944e-38, %v382
    %v384 = vsel %vm381, %v383, %v379
    %v385 = vmul.f32 1.0, %v384
    %v386 = vtanh.pop %v316
    %v387 = vxor.u32 %v347, 2147483648
    %v388 = vmul.f32 %v387, 1.442695
    %v389 = vpow.pop %v388
    %v390 = vadd.f32 %v389, 1.0
    %v391 = vrcp.pop %v390
    %v392 = vmul.f32 %v390, %v391
    %v393 = vsub.f32 1.0, %v392
    %v394 = vmul.f32 %v391, %v393
    %v395 = vadd.f32 %v391, %v394
    %vm396 = vweird.f32 %v390
    %vm397 = vweird.f32 %v391
    %vm398 = vmor %vm396, %vm397
    %v399 = vsel %vm398, %v391, %v395
    %v400 = vand.u32 2147483647, %v390
    %vm401 = vcmp.eq.f32.partialorder %v400, 8.507059e+37
    %v402 = vand.u32 %v390, 2147483648
    %v403 = vor.u32 1.1754944e-38, %v402
    %v404 = vsel %vm401, %v403, %v399
    %v405 = vmul.f32 1.0, %v404
    %v407 = vrot.slane %v212, 6
    %408 = vrot.lane.b32.xlu0 %v407, 32
    %v409 = vpop.permute.xlu0 %408
    %v411 = vmul.f32 %v385, %v409
    %413 = vrot.lane.b32.xlu0 %v386, 64
    %v414 = vpop.permute.xlu0 %413
    %v416 = vmul.f32 %v366, %v414
    %418 = vrot.lane.b32.xlu0 %v416, 32
    %v419 = vpop.permute.xlu0 %418
    %v421 = vadd.f32 %v411, %v419
    %v422 = vtanh.pop %v421
    %424 = vrot.lane.b32.xlu0 %v422, 64
    %v425 = vpop.permute.xlu0 %424
    %v427 = vmul.f32 %v405, %v425
    %429 = vrot.lane.b32.xlu0 %v427, 32
    %v430 = vpop.permute.xlu0 %429
    %vm432 = vcmask 257026
    %433 = vst.msk [vmem:[#allocation2] sm:$0xc] %vm432, %v430
    %v434 = vld [vmem:[#allocation8] sm:$0xff]
    %v435 = vld [vmem:[#allocation8 + $0x8] sm:$0xff]
    %v436 = vld [vmem:[#allocation8 + $0x10] sm:$0xff]
    %v437 = vld [vmem:[#allocation8 + $0x18] sm:$0xff]
    %v438 = vrot.slane %v427, 2
    %439 = vrot.lane.b32.xlu0 %v438, 32
    %v440 = vpop.permute.xlu0 %439
    %v441 = vsel %vm158, %v440, 0
    %443 = vmatpush.msra.mxu0 0.0
    %444 = vmatpush.msra.mxu0 0.0
    %445 = vmatpush.msra.mxu0 0.0
    %446 = vmatpush.msra.mxu0 0.0
    %447 = vmatpush.msra.mxu0 0.0
    %448 = vmatpush.msra.mxu0 0.0
    %449 = vmatpush.msra.mxu0 0.0
    %450 = vmatpush.msra.mxu0 0.0
    %451 = vmatpush.msra.mxu0 0.0
    %452 = vmatpush.msra.mxu0 0.0
    %453 = vmatpush.msra.mxu0 0.0
    %454 = vmatpush.msra.mxu0 0.0
    %455 = vmatpush.msra.mxu0 %v437
    %456 = vmatpush.msra.mxu0 %v436
    %457 = vmatpush.msra.mxu0 %v435
    %458 = vmatpush.msra.mxu0 %v434
    %459 = vmatmul.f32.gmra.mxu0 %v441
    %v460 = vpop.f32.mrf.mxu0
    %v461 = vadd.f32 0.0, %v460
    %462 = vdwg.mxu0
    %v464 = vrot.slane %v461, 4
    %v466 = vadd.f32 %v183, %v464
    %v467 = vld [vmem:[%s255] sm:$0xff]
    %v468 = vld [vmem:[%s255 + $0x8] sm:$0xff]
    %v469 = vld [vmem:[%s255 + $0x10] sm:$0xff]
    %v470 = vld [vmem:[%s255 + $0x18] sm:$0xff]
    %471 = vmatpush.msra.mxu0 0.0
    %472 = vmatpush.msra.mxu0 0.0
    %473 = vmatpush.msra.mxu0 0.0
    %474 = vmatpush.msra.mxu0 0.0
    %475 = vmatpush.msra.mxu0 0.0
    %476 = vmatpush.msra.mxu0 0.0
    %477 = vmatpush.msra.mxu0 0.0
    %478 = vmatpush.msra.mxu0 0.0
    %479 = vmatpush.msra.mxu0 0.0
    %480 = vmatpush.msra.mxu0 0.0
    %481 = vmatpush.msra.mxu0 0.0
    %482 = vmatpush.msra.mxu0 0.0
    %483 = vmatpush.msra.mxu0 %v470
    %484 = vmatpush.msra.mxu0 %v469
    %485 = vmatpush.msra.mxu0 %v468
    %486 = vmatpush.msra.mxu0 %v467
    %487 = vmatmul.f32.gmra.mxu0 %v441
    %v488 = vpop.f32.mrf.mxu0
    %v489 = vadd.f32 0.0, %v488
    %490 = vdwg.mxu0
    %v492 = vrot.slane %v489, 4
    %493 = vrot.lane.b32.xlu0 %v492, 32
    %v494 = vpop.permute.xlu0 %493
    %v496 = vadd.f32 %v183, %v494
    %v497 = vld [vmem:[%s286] sm:$0xff]
    %v498 = vld [vmem:[%s286 + $0x8] sm:$0xff]
    %v499 = vld [vmem:[%s286 + $0x10] sm:$0xff]
    %v500 = vld [vmem:[%s286 + $0x18] sm:$0xff]
    %501 = vmatpush.msra.mxu0 0.0
    %502 = vmatpush.msra.mxu0 0.0
    %503 = vmatpush.msra.mxu0 0.0
    %504 = vmatpush.msra.mxu0 0.0
    %505 = vmatpush.msra.mxu0 0.0
    %506 = vmatpush.msra.mxu0 0.0
    %507 = vmatpush.msra.mxu0 0.0
    %508 = vmatpush.msra.mxu0 0.0
    %509 = vmatpush.msra.mxu0 0.0
    %510 = vmatpush.msra.mxu0 0.0
    %511 = vmatpush.msra.mxu0 0.0
    %512 = vmatpush.msra.mxu0 0.0
    %513 = vmatpush.msra.mxu0 %v500
    %514 = vmatpush.msra.mxu0 %v499
    %515 = vmatpush.msra.mxu0 %v498
    %516 = vmatpush.msra.mxu0 %v497
    %517 = vmatmul.f32.gmra.mxu0 %v441
    %v518 = vpop.f32.mrf.mxu0
    %v519 = vadd.f32 0.0, %v518
    %520 = vdwg.mxu0
    %v522 = vrot.slane %v519, 4
    %523 = vrot.lane.b32.xlu0 %v522, 64
    %v524 = vpop.permute.xlu0 %523
    %v526 = vadd.f32 %v183, %v524
    %v527 = vld [vmem:[%s317] sm:$0xff]
    %v528 = vld [vmem:[%s317 + $0x8] sm:$0xff]
    %v529 = vld [vmem:[%s317 + $0x10] sm:$0xff]
    %v530 = vld [vmem:[%s317 + $0x18] sm:$0xff]
    %531 = vmatpush.msra.mxu0 0.0
    %532 = vmatpush.msra.mxu0 0.0
    %533 = vmatpush.msra.mxu0 0.0
    %534 = vmatpush.msra.mxu0 0.0
    %535 = vmatpush.msra.mxu0 0.0
    %536 = vmatpush.msra.mxu0 0.0
    %537 = vmatpush.msra.mxu0 0.0
    %538 = vmatpush.msra.mxu0 0.0
    %539 = vmatpush.msra.mxu0 0.0
    %540 = vmatpush.msra.mxu0 0.0
    %541 = vmatpush.msra.mxu0 0.0
    %542 = vmatpush.msra.mxu0 0.0
    %543 = vmatpush.msra.mxu0 %v530
    %544 = vmatpush.msra.mxu0 %v529
    %545 = vmatpush.msra.mxu0 %v528
    %546 = vmatpush.msra.mxu0 %v527
    %547 = vmatmul.f32.gmra.mxu0 %v441
    %v548 = vpop.f32.mrf.mxu0
    %v549 = vadd.f32 0.0, %v548
    %550 = vdwg.mxu0
    %v552 = vrot.slane %v549, 4
    %553 = vrot.lane.b32.xlu0 %v552, 96
    %v554 = vpop.permute.xlu0 %553
    %v556 = vadd.f32 %v183, %v554
    %v557 = vxor.u32 %v466, 2147483648
    %v558 = vmul.f32 %v557, 1.442695
    %v559 = vpow.pop %v558
    %v560 = vadd.f32 %v559, 1.0
    %v561 = vrcp.pop %v560
    %v562 = vmul.f32 %v560, %v561
    %v563 = vsub.f32 1.0, %v562
    %v564 = vmul.f32 %v561, %v563
    %v565 = vadd.f32 %v561, %v564
    %vm566 = vweird.f32 %v560
    %vm567 = vweird.f32 %v561
    %vm568 = vmor %vm566, %vm567
    %v569 = vsel %vm568, %v561, %v565
    %v570 = vand.u32 2147483647, %v560
    %vm571 = vcmp.eq.f32.partialorder %v570, 8.507059e+37
    %v572 = vand.u32 %v560, 2147483648
    %v573 = vor.u32 1.1754944e-38, %v572
    %v574 = vsel %vm571, %v573, %v569
    %v575 = vmul.f32 1.0, %v574
    %v576 = vxor.u32 %v496, 2147483648
    %v577 = vmul.f32 %v576, 1.442695
    %v578 = vpow.pop %v577
    %v579 = vadd.f32 %v578, 1.0
    %v580 = vrcp.pop %v579
    %v581 = vmul.f32 %v579, %v580
    %v582 = vsub.f32 1.0, %v581
    %v583 = vmul.f32 %v580, %v582
    %v584 = vadd.f32 %v580, %v583
    %vm585 = vweird.f32 %v579
    %vm586 = vweird.f32 %v580
    %vm587 = vmor %vm585, %vm586
    %v588 = vsel %vm587, %v580, %v584
    %v589 = vand.u32 2147483647, %v579
    %vm590 = vcmp.eq.f32.partialorder %v589, 8.507059e+37
    %v591 = vand.u32 %v579, 2147483648
    %v592 = vor.u32 1.1754944e-38, %v591
    %v593 = vsel %vm590, %v592, %v588
    %v594 = vmul.f32 1.0, %v593
    %v595 = vtanh.pop %v526
    %v596 = vxor.u32 %v556, 2147483648
    %v597 = vmul.f32 %v596, 1.442695
    %v598 = vpow.pop %v597
    %v599 = vadd.f32 %v598, 1.0
    %v600 = vrcp.pop %v599
    %v601 = vmul.f32 %v599, %v600
    %v602 = vsub.f32 1.0, %v601
    %v603 = vmul.f32 %v600, %v602
    %v604 = vadd.f32 %v600, %v603
    %vm605 = vweird.f32 %v599
    %vm606 = vweird.f32 %v600
    %vm607 = vmor %vm605, %vm606
    %v608 = vsel %vm607, %v600, %v604
    %v609 = vand.u32 2147483647, %v599
    %vm610 = vcmp.eq.f32.partialorder %v609, 8.507059e+37
    %v611 = vand.u32 %v599, 2147483648
    %v612 = vor.u32 1.1754944e-38, %v611
    %v613 = vsel %vm610, %v612, %v608
    %v614 = vmul.f32 1.0, %v613
    %v616 = vrot.slane %v421, 6
    %v618 = vmul.f32 %v594, %v616
    %620 = vrot.lane.b32.xlu0 %v595, 64
    %v621 = vpop.permute.xlu0 %620
    %v623 = vmul.f32 %v575, %v621
    %625 = vrot.lane.b32.xlu0 %v623, 32
    %v626 = vpop.permute.xlu0 %625
    %v628 = vadd.f32 %v618, %v626
    %v629 = vtanh.pop %v628
    %631 = vrot.lane.b32.xlu0 %v629, 64
    %v632 = vpop.permute.xlu0 %631
    %v634 = vmul.f32 %v614, %v632
    %636 = vrot.lane.b32.xlu0 %v634, 32
    %v637 = vpop.permute.xlu0 %636
    %vm639 = vcmask 259076
    %640 = vst.msk [vmem:[#allocation2] sm:$0x30] %vm639, %v637
    %v641 = vld [vmem:[#allocation8] sm:$0xff]
    %v642 = vld [vmem:[#allocation8 + $0x8] sm:$0xff]
    %v643 = vld [vmem:[#allocation8 + $0x10] sm:$0xff]
    %v644 = vld [vmem:[#allocation8 + $0x18] sm:$0xff]
    %v645 = vrot.slane %v634, 4
    %646 = vrot.lane.b32.xlu0 %v645, 32
    %v647 = vpop.permute.xlu0 %646
    %v648 = vsel %vm158, %v647, 0
    %650 = vmatpush.msra.mxu0 0.0
    %651 = vmatpush.msra.mxu0 0.0
    %652 = vmatpush.msra.mxu0 0.0
    %653 = vmatpush.msra.mxu0 0.0
    %654 = vmatpush.msra.mxu0 0.0
    %655 = vmatpush.msra.mxu0 0.0
    %656 = vmatpush.msra.mxu0 0.0
    %657 = vmatpush.msra.mxu0 0.0
    %658 = vmatpush.msra.mxu0 0.0
    %659 = vmatpush.msra.mxu0 0.0
    %660 = vmatpush.msra.mxu0 0.0
    %661 = vmatpush.msra.mxu0 0.0
    %662 = vmatpush.msra.mxu0 %v644
    %663 = vmatpush.msra.mxu0 %v643
    %664 = vmatpush.msra.mxu0 %v642
    %665 = vmatpush.msra.mxu0 %v641
    %666 = vmatmul.f32.gmra.mxu0 %v648
    %v667 = vpop.f32.mrf.mxu0
    %v668 = vadd.f32 0.0, %v667
    %669 = vdwg.mxu0
    %v671 = vrot.slane %v668, 2
    %v673 = vadd.f32 %v183, %v671
    %v674 = vld [vmem:[%s255] sm:$0xff]
    %v675 = vld [vmem:[%s255 + $0x8] sm:$0xff]
    %v676 = vld [vmem:[%s255 + $0x10] sm:$0xff]
    %v677 = vld [vmem:[%s255 + $0x18] sm:$0xff]
    %678 = vmatpush.msra.mxu0 0.0
    %679 = vmatpush.msra.mxu0 0.0
    %680 = vmatpush.msra.mxu0 0.0
    %681 = vmatpush.msra.mxu0 0.0
    %682 = vmatpush.msra.mxu0 0.0
    %683 = vmatpush.msra.mxu0 0.0
    %684 = vmatpush.msra.mxu0 0.0
    %685 = vmatpush.msra.mxu0 0.0
    %686 = vmatpush.msra.mxu0 0.0
    %687 = vmatpush.msra.mxu0 0.0
    %688 = vmatpush.msra.mxu0 0.0
    %689 = vmatpush.msra.mxu0 0.0
    %690 = vmatpush.msra.mxu0 %v677
    %691 = vmatpush.msra.mxu0 %v676
    %692 = vmatpush.msra.mxu0 %v675
    %693 = vmatpush.msra.mxu0 %v674
    %694 = vmatmul.f32.gmra.mxu0 %v648
    %v695 = vpop.f32.mrf.mxu0
    %v696 = vadd.f32 0.0, %v695
    %697 = vdwg.mxu0
    %v699 = vrot.slane %v696, 2
    %700 = vrot.lane.b32.xlu0 %v699, 32
    %v701 = vpop.permute.xlu0 %700
    %v703 = vadd.f32 %v183, %v701
    %v704 = vld [vmem:[%s286] sm:$0xff]
    %v705 = vld [vmem:[%s286 + $0x8] sm:$0xff]
    %v706 = vld [vmem:[%s286 + $0x10] sm:$0xff]
    %v707 = vld [vmem:[%s286 + $0x18] sm:$0xff]
    %708 = vmatpush.msra.mxu0 0.0
    %709 = vmatpush.msra.mxu0 0.0
    %710 = vmatpush.msra.mxu0 0.0
    %711 = vmatpush.msra.mxu0 0.0
    %712 = vmatpush.msra.mxu0 0.0
    %713 = vmatpush.msra.mxu0 0.0
    %714 = vmatpush.msra.mxu0 0.0
    %715 = vmatpush.msra.mxu0 0.0
    %716 = vmatpush.msra.mxu0 0.0
    %717 = vmatpush.msra.mxu0 0.0
    %718 = vmatpush.msra.mxu0 0.0
    %719 = vmatpush.msra.mxu0 0.0
    %720 = vmatpush.msra.mxu0 %v707
    %721 = vmatpush.msra.mxu0 %v706
    %722 = vmatpush.msra.mxu0 %v705
    %723 = vmatpush.msra.mxu0 %v704
    %724 = vmatmul.f32.gmra.mxu0 %v648
    %v725 = vpop.f32.mrf.mxu0
    %v726 = vadd.f32 0.0, %v725
    %727 = vdwg.mxu0
    %v729 = vrot.slane %v726, 2
    %730 = vrot.lane.b32.xlu0 %v729, 64
    %v731 = vpop.permute.xlu0 %730
    %v733 = vadd.f32 %v183, %v731
    %v734 = vld [vmem:[%s317] sm:$0xff]
    %v735 = vld [vmem:[%s317 + $0x8] sm:$0xff]
    %v736 = vld [vmem:[%s317 + $0x10] sm:$0xff]
    %v737 = vld [vmem:[%s317 + $0x18] sm:$0xff]
    %738 = vmatpush.msra.mxu0 0.0
    %739 = vmatpush.msra.mxu0 0.0
    %740 = vmatpush.msra.mxu0 0.0
    %741 = vmatpush.msra.mxu0 0.0
    %742 = vmatpush.msra.mxu0 0.0
    %743 = vmatpush.msra.mxu0 0.0
    %744 = vmatpush.msra.mxu0 0.0
    %745 = vmatpush.msra.mxu0 0.0
    %746 = vmatpush.msra.mxu0 0.0
    %747 = vmatpush.msra.mxu0 0.0
    %748 = vmatpush.msra.mxu0 0.0
    %749 = vmatpush.msra.mxu0 0.0
    %750 = vmatpush.msra.mxu0 %v737
    %751 = vmatpush.msra.mxu0 %v736
    %752 = vmatpush.msra.mxu0 %v735
    %753 = vmatpush.msra.mxu0 %v734
    %754 = vmatmul.f32.gmra.mxu0 %v648
    %v755 = vpop.f32.mrf.mxu0
    %v756 = vadd.f32 0.0, %v755
    %757 = vdwg.mxu0
    %v759 = vrot.slane %v756, 2
    %760 = vrot.lane.b32.xlu0 %v759, 96
    %v761 = vpop.permute.xlu0 %760
    %v763 = vadd.f32 %v183, %v761
    %v764 = vxor.u32 %v673, 2147483648
    %v765 = vmul.f32 %v764, 1.442695
    %v766 = vpow.pop %v765
    %v767 = vadd.f32 %v766, 1.0
    %v768 = vrcp.pop %v767
    %v769 = vmul.f32 %v767, %v768
    %v770 = vsub.f32 1.0, %v769
    %v771 = vmul.f32 %v768, %v770
    %v772 = vadd.f32 %v768, %v771
    %vm773 = vweird.f32 %v767
    %vm774 = vweird.f32 %v768
    %vm775 = vmor %vm773, %vm774
    %v776 = vsel %vm775, %v768, %v772
    %v777 = vand.u32 2147483647, %v767
    %vm778 = vcmp.eq.f32.partialorder %v777, 8.507059e+37
    %v779 = vand.u32 %v767, 2147483648
    %v780 = vor.u32 1.1754944e-38, %v779
    %v781 = vsel %vm778, %v780, %v776
    %v782 = vmul.f32 1.0, %v781
    %v783 = vxor.u32 %v703, 2147483648
    %v784 = vmul.f32 %v783, 1.442695
    %v785 = vpow.pop %v784
    %v786 = vadd.f32 %v785, 1.0
    %v787 = vrcp.pop %v786
    %v788 = vmul.f32 %v786, %v787
    %v789 = vsub.f32 1.0, %v788
    %v790 = vmul.f32 %v787, %v789
    %v791 = vadd.f32 %v787, %v790
    %vm792 = vweird.f32 %v786
    %vm793 = vweird.f32 %v787
    %vm794 = vmor %vm792, %vm793
    %v795 = vsel %vm794, %v787, %v791
    %v796 = vand.u32 2147483647, %v786
    %vm797 = vcmp.eq.f32.partialorder %v796, 8.507059e+37
    %v798 = vand.u32 %v786, 2147483648
    %v799 = vor.u32 1.1754944e-38, %v798
    %v800 = vsel %vm797, %v799, %v795
    %v801 = vmul.f32 1.0, %v800
    %v802 = vtanh.pop %v733
    %v803 = vxor.u32 %v763, 2147483648
    %v804 = vmul.f32 %v803, 1.442695
    %v805 = vpow.pop %v804
    %v806 = vadd.f32 %v805, 1.0
    %v807 = vrcp.pop %v806
    %v808 = vmul.f32 %v806, %v807
    %v809 = vsub.f32 1.0, %v808
    %v810 = vmul.f32 %v807, %v809
    %v811 = vadd.f32 %v807, %v810
    %vm812 = vweird.f32 %v806
    %vm813 = vweird.f32 %v807
    %vm814 = vmor %vm812, %vm813
    %v815 = vsel %vm814, %v807, %v811
    %v816 = vand.u32 2147483647, %v806
    %vm817 = vcmp.eq.f32.partialorder %v816, 8.507059e+37
    %v818 = vand.u32 %v806, 2147483648
    %v819 = vor.u32 1.1754944e-38, %v818
    %v820 = vsel %vm817, %v819, %v815
    %v821 = vmul.f32 1.0, %v820
    %v823 = vrot.slane %v628, 6
    %v825 = vmul.f32 %v801, %v823
    %827 = vrot.lane.b32.xlu0 %v802, 64
    %v828 = vpop.permute.xlu0 %827
    %v830 = vmul.f32 %v782, %v828
    %832 = vrot.lane.b32.xlu0 %v830, 32
    %v833 = vpop.permute.xlu0 %832
    %v835 = vadd.f32 %v825, %v833
    %v836 = vtanh.pop %v835
    %838 = vrot.lane.b32.xlu0 %v836, 64
    %v839 = vpop.permute.xlu0 %838
    %v841 = vmul.f32 %v821, %v839
    %843 = vrot.lane.b32.xlu0 %v841, 32
    %v844 = vpop.permute.xlu0 %843
    %vm846 = vcmask 261126
    %847 = vst.msk [vmem:[#allocation2] sm:$0xc0] %vm846, %v844
    %v848 = vld [vmem:[#allocation8] sm:$0xff]
    %v849 = vld [vmem:[#allocation8 + $0x8] sm:$0xff]
    %v850 = vld [vmem:[#allocation8 + $0x10] sm:$0xff]
    %v851 = vld [vmem:[#allocation8 + $0x18] sm:$0xff]
    %v852 = vrot.slane %v841, 6
    %853 = vrot.lane.b32.xlu0 %v852, 32
    %v854 = vpop.permute.xlu0 %853
    %v855 = vsel %vm158, %v854, 0
    %857 = vmatpush.msra.mxu0 0.0
    %858 = vmatpush.msra.mxu0 0.0
    %859 = vmatpush.msra.mxu0 0.0
    %860 = vmatpush.msra.mxu0 0.0
    %861 = vmatpush.msra.mxu0 0.0
    %862 = vmatpush.msra.mxu0 0.0
    %863 = vmatpush.msra.mxu0 0.0
    %864 = vmatpush.msra.mxu0 0.0
    %865 = vmatpush.msra.mxu0 0.0
    %866 = vmatpush.msra.mxu0 0.0
    %867 = vmatpush.msra.mxu0 0.0
    %868 = vmatpush.msra.mxu0 0.0
    %869 = vmatpush.msra.mxu0 %v851
    %870 = vmatpush.msra.mxu0 %v850
    %871 = vmatpush.msra.mxu0 %v849
    %872 = vmatpush.msra.mxu0 %v848
    %873 = vmatmul.f32.gmra.mxu0 %v855
    %v874 = vpop.f32.mrf.mxu0
    %v875 = vadd.f32 0.0, %v874
    %876 = vdwg.mxu0
    %v877 = vadd.f32 %v186, %v875
    %v878 = vld [vmem:[%s255] sm:$0xff]
    %v879 = vld [vmem:[%s255 + $0x8] sm:$0xff]
    %v880 = vld [vmem:[%s255 + $0x10] sm:$0xff]
    %v881 = vld [vmem:[%s255 + $0x18] sm:$0xff]
    %882 = vmatpush.msra.mxu0 0.0
    %883 = vmatpush.msra.mxu0 0.0
    %884 = vmatpush.msra.mxu0 0.0
    %885 = vmatpush.msra.mxu0 0.0
    %886 = vmatpush.msra.mxu0 0.0
    %887 = vmatpush.msra.mxu0 0.0
    %888 = vmatpush.msra.mxu0 0.0
    %889 = vmatpush.msra.mxu0 0.0
    %890 = vmatpush.msra.mxu0 0.0
    %891 = vmatpush.msra.mxu0 0.0
    %892 = vmatpush.msra.mxu0 0.0
    %893 = vmatpush.msra.mxu0 0.0
    %894 = vmatpush.msra.mxu0 %v881
    %895 = vmatpush.msra.mxu0 %v880
    %896 = vmatpush.msra.mxu0 %v879
    %897 = vmatpush.msra.mxu0 %v878
    %898 = vmatmul.f32.gmra.mxu0 %v855
    %v899 = vpop.f32.mrf.mxu0
    %v900 = vadd.f32 0.0, %v899
    %901 = vdwg.mxu0
    %903 = vrot.lane.b32.xlu0 %v900, 32
    %v904 = vpop.permute.xlu0 %903
    %v906 = vadd.f32 %v186, %v904
    %v907 = vld [vmem:[%s286] sm:$0xff]
    %v908 = vld [vmem:[%s286 + $0x8] sm:$0xff]
    %v909 = vld [vmem:[%s286 + $0x10] sm:$0xff]
    %v910 = vld [vmem:[%s286 + $0x18] sm:$0xff]
    %911 = vmatpush.msra.mxu0 0.0
    %912 = vmatpush.msra.mxu0 0.0
    %913 = vmatpush.msra.mxu0 0.0
    %914 = vmatpush.msra.mxu0 0.0
    %915 = vmatpush.msra.mxu0 0.0
    %916 = vmatpush.msra.mxu0 0.0
    %917 = vmatpush.msra.mxu0 0.0
    %918 = vmatpush.msra.mxu0 0.0
    %919 = vmatpush.msra.mxu0 0.0
    %920 = vmatpush.msra.mxu0 0.0
    %921 = vmatpush.msra.mxu0 0.0
    %922 = vmatpush.msra.mxu0 0.0
    %923 = vmatpush.msra.mxu0 %v910
    %924 = vmatpush.msra.mxu0 %v909
    %925 = vmatpush.msra.mxu0 %v908
    %926 = vmatpush.msra.mxu0 %v907
    %927 = vmatmul.f32.gmra.mxu0 %v855
    %v928 = vpop.f32.mrf.mxu0
    %v929 = vadd.f32 0.0, %v928
    %930 = vdwg.mxu0
    %932 = vrot.lane.b32.xlu0 %v929, 64
    %v933 = vpop.permute.xlu0 %932
    %v935 = vadd.f32 %v186, %v933
    %v936 = vld [vmem:[%s317] sm:$0xff]
    %v937 = vld [vmem:[%s317 + $0x8] sm:$0xff]
    %v938 = vld [vmem:[%s317 + $0x10] sm:$0xff]
    %v939 = vld [vmem:[%s317 + $0x18] sm:$0xff]
    %940 = vmatpush.msra.mxu0 0.0
    %941 = vmatpush.msra.mxu0 0.0
    %942 = vmatpush.msra.mxu0 0.0
    %943 = vmatpush.msra.mxu0 0.0
    %944 = vmatpush.msra.mxu0 0.0
    %945 = vmatpush.msra.mxu0 0.0
    %946 = vmatpush.msra.mxu0 0.0
    %947 = vmatpush.msra.mxu0 0.0
    %948 = vmatpush.msra.mxu0 0.0
    %949 = vmatpush.msra.mxu0 0.0
    %950 = vmatpush.msra.mxu0 0.0
    %951 = vmatpush.msra.mxu0 0.0
    %952 = vmatpush.msra.mxu0 %v939
    %953 = vmatpush.msra.mxu0 %v938
    %954 = vmatpush.msra.mxu0 %v937
    %955 = vmatpush.msra.mxu0 %v936
    %956 = vmatmul.f32.gmra.mxu0 %v855
    %v957 = vpop.f32.mrf.mxu0
    %v958 = vadd.f32 0.0, %v957
    %959 = vdwg.mxu0
    %961 = vrot.lane.b32.xlu0 %v958, 96
    %v962 = vpop.permute.xlu0 %961
    %v964 = vadd.f32 %v186, %v962
    %v965 = vxor.u32 %v877, 2147483648
    %v966 = vmul.f32 %v965, 1.442695
    %v967 = vpow.pop %v966
    %v968 = vadd.f32 %v967, 1.0
    %v969 = vrcp.pop %v968
    %v970 = vmul.f32 %v968, %v969
    %v971 = vsub.f32 1.0, %v970
    %v972 = vmul.f32 %v969, %v971
    %v973 = vadd.f32 %v969, %v972
    %vm974 = vweird.f32 %v968
    %vm975 = vweird.f32 %v969
    %vm976 = vmor %vm974, %vm975
    %v977 = vsel %vm976, %v969, %v973
    %v978 = vand.u32 2147483647, %v968
    %vm979 = vcmp.eq.f32.partialorder %v978, 8.507059e+37
    %v980 = vand.u32 %v968, 2147483648
    %v981 = vor.u32 1.1754944e-38, %v980
    %v982 = vsel %vm979, %v981, %v977
    %v983 = vmul.f32 1.0, %v982
    %v984 = vxor.u32 %v906, 2147483648
    %v985 = vmul.f32 %v984, 1.442695
    %v986 = vpow.pop %v985
    %v987 = vadd.f32 %v986, 1.0
    %v988 = vrcp.pop %v987
    %v989 = vmul.f32 %v987, %v988
    %v990 = vsub.f32 1.0, %v989
    %v991 = vmul.f32 %v988, %v990
    %v992 = vadd.f32 %v988, %v991
    %vm993 = vweird.f32 %v987
    %vm994 = vweird.f32 %v988
    %vm995 = vmor %vm993, %vm994
    %v996 = vsel %vm995, %v988, %v992
    %v997 = vand.u32 2147483647, %v987
    %vm998 = vcmp.eq.f32.partialorder %v997, 8.507059e+37
    %v999 = vand.u32 %v987, 2147483648
    %v1000 = vor.u32 1.1754944e-38, %v999
    %v1001 = vsel %vm998, %v1000, %v996
    %v1002 = vmul.f32 1.0, %v1001
    %v1003 = vtanh.pop %v935
    %v1004 = vxor.u32 %v964, 2147483648
    %v1005 = vmul.f32 %v1004, 1.442695
    %v1006 = vpow.pop %v1005
    %v1007 = vadd.f32 %v1006, 1.0
    %v1008 = vrcp.pop %v1007
    %v1009 = vmul.f32 %v1007, %v1008
    %v1010 = vsub.f32 1.0, %v1009
    %v1011 = vmul.f32 %v1008, %v1010
    %v1012 = vadd.f32 %v1008, %v1011
    %vm1013 = vweird.f32 %v1007
    %vm1014 = vweird.f32 %v1008
    %vm1015 = vmor %vm1013, %vm1014
    %v1016 = vsel %vm1015, %v1008, %v1012
    %v1017 = vand.u32 2147483647, %v1007
    %vm1018 = vcmp.eq.f32.partialorder %v1017, 8.507059e+37
    %v1019 = vand.u32 %v1007, 2147483648
    %v1020 = vor.u32 1.1754944e-38, %v1019
    %v1021 = vsel %vm1018, %v1020, %v1016
    %v1022 = vmul.f32 1.0, %v1021
    %v1024 = vrot.slane %v835, 6
    %v1026 = vmul.f32 %v1002, %v1024
    %1028 = vrot.lane.b32.xlu0 %v1003, 64
    %v1029 = vpop.permute.xlu0 %1028
    %v1031 = vmul.f32 %v983, %v1029
    %1033 = vrot.lane.b32.xlu0 %v1031, 32
    %v1034 = vpop.permute.xlu0 %1033
    %v1036 = vadd.f32 %v1026, %v1034
    %v1037 = vtanh.pop %v1036
    %1039 = vrot.lane.b32.xlu0 %v1037, 64
    %v1040 = vpop.permute.xlu0 %1039
    %v1042 = vmul.f32 %v1022, %v1040
    %1044 = vrot.lane.b32.xlu0 %v1042, 32
    %v1045 = vpop.permute.xlu0 %1044
    %1047 = vst.msk [vmem:[#allocation2 + $0x8] sm:$0x3] %vm223, %v1045
    %v1048 = vld [vmem:[#allocation8] sm:$0xff]
    %v1049 = vld [vmem:[#allocation8 + $0x8] sm:$0xff]
    %v1050 = vld [vmem:[#allocation8 + $0x10] sm:$0xff]
    %v1051 = vld [vmem:[#allocation8 + $0x18] sm:$0xff]
    %v1052 = vsel %vm158, %v1045, 0
    %1054 = vmatpush.msra.mxu0 0.0
    %1055 = vmatpush.msra.mxu0 0.0
    %1056 = vmatpush.msra.mxu0 0.0
    %1057 = vmatpush.msra.mxu0 0.0
    %1058 = vmatpush.msra.mxu0 0.0
    %1059 = vmatpush.msra.mxu0 0.0
    %1060 = vmatpush.msra.mxu0 0.0
    %1061 = vmatpush.msra.mxu0 0.0
    %1062 = vmatpush.msra.mxu0 0.0
    %1063 = vmatpush.msra.mxu0 0.0
    %1064 = vmatpush.msra.mxu0 0.0
    %1065 = vmatpush.msra.mxu0 0.0
    %1066 = vmatpush.msra.mxu0 %v1051
    %1067 = vmatpush.msra.mxu0 %v1050
    %1068 = vmatpush.msra.mxu0 %v1049
    %1069 = vmatpush.msra.mxu0 %v1048
    %1070 = vmatmul.f32.gmra.mxu0 %v1052
    %v1071 = vpop.f32.mrf.mxu0
    %v1072 = vadd.f32 0.0, %v1071
    %1073 = vdwg.mxu0
    %v1075 = vrot.slane %v1072, 6
    %v1077 = vadd.f32 %v186, %v1075
    %v1078 = vld [vmem:[%s255] sm:$0xff]
    %v1079 = vld [vmem:[%s255 + $0x8] sm:$0xff]
    %v1080 = vld [vmem:[%s255 + $0x10] sm:$0xff]
    %v1081 = vld [vmem:[%s255 + $0x18] sm:$0xff]
    %1082 = vmatpush.msra.mxu0 0.0
    %1083 = vmatpush.msra.mxu0 0.0
    %1084 = vmatpush.msra.mxu0 0.0
    %1085 = vmatpush.msra.mxu0 0.0
    %1086 = vmatpush.msra.mxu0 0.0
    %1087 = vmatpush.msra.mxu0 0.0
    %1088 = vmatpush.msra.mxu0 0.0
    %1089 = vmatpush.msra.mxu0 0.0
    %1090 = vmatpush.msra.mxu0 0.0
    %1091 = vmatpush.msra.mxu0 0.0
    %1092 = vmatpush.msra.mxu0 0.0
    %1093 = vmatpush.msra.mxu0 0.0
    %1094 = vmatpush.msra.mxu0 %v1081
    %1095 = vmatpush.msra.mxu0 %v1080
    %1096 = vmatpush.msra.mxu0 %v1079
    %1097 = vmatpush.msra.mxu0 %v1078
    %1098 = vmatmul.f32.gmra.mxu0 %v1052
    %v1099 = vpop.f32.mrf.mxu0
    %v1100 = vadd.f32 0.0, %v1099
    %1101 = vdwg.mxu0
    %v1103 = vrot.slane %v1100, 6
    %1104 = vrot.lane.b32.xlu0 %v1103, 32
    %v1105 = vpop.permute.xlu0 %1104
    %v1107 = vadd.f32 %v186, %v1105
    %v1108 = vld [vmem:[%s286] sm:$0xff]
    %v1109 = vld [vmem:[%s286 + $0x8] sm:$0xff]
    %v1110 = vld [vmem:[%s286 + $0x10] sm:$0xff]
    %v1111 = vld [vmem:[%s286 + $0x18] sm:$0xff]
    %1112 = vmatpush.msra.mxu0 0.0
    %1113 = vmatpush.msra.mxu0 0.0
    %1114 = vmatpush.msra.mxu0 0.0
    %1115 = vmatpush.msra.mxu0 0.0
    %1116 = vmatpush.msra.mxu0 0.0
    %1117 = vmatpush.msra.mxu0 0.0
    %1118 = vmatpush.msra.mxu0 0.0
    %1119 = vmatpush.msra.mxu0 0.0
    %1120 = vmatpush.msra.mxu0 0.0
    %1121 = vmatpush.msra.mxu0 0.0
    %1122 = vmatpush.msra.mxu0 0.0
    %1123 = vmatpush.msra.mxu0 0.0
    %1124 = vmatpush.msra.mxu0 %v1111
    %1125 = vmatpush.msra.mxu0 %v1110
    %1126 = vmatpush.msra.mxu0 %v1109
    %1127 = vmatpush.msra.mxu0 %v1108
    %1128 = vmatmul.f32.gmra.mxu0 %v1052
    %v1129 = vpop.f32.mrf.mxu0
    %v1130 = vadd.f32 0.0, %v1129
    %1131 = vdwg.mxu0
    %v1133 = vrot.slane %v1130, 6
    %1134 = vrot.lane.b32.xlu0 %v1133, 64
    %v1135 = vpop.permute.xlu0 %1134
    %v1137 = vadd.f32 %v186, %v1135
    %v1138 = vld [vmem:[%s317] sm:$0xff]
    %v1139 = vld [vmem:[%s317 + $0x8] sm:$0xff]
    %v1140 = vld [vmem:[%s317 + $0x10] sm:$0xff]
    %v1141 = vld [vmem:[%s317 + $0x18] sm:$0xff]
    %1142 = vmatpush.msra.mxu0 0.0
    %1143 = vmatpush.msra.mxu0 0.0
    %1144 = vmatpush.msra.mxu0 0.0
    %1145 = vmatpush.msra.mxu0 0.0
    %1146 = vmatpush.msra.mxu0 0.0
    %1147 = vmatpush.msra.mxu0 0.0
    %1148 = vmatpush.msra.mxu0 0.0
    %1149 = vmatpush.msra.mxu0 0.0
    %1150 = vmatpush.msra.mxu0 0.0
    %1151 = vmatpush.msra.mxu0 0.0
    %1152 = vmatpush.msra.mxu0 0.0
    %1153 = vmatpush.msra.mxu0 0.0
    %1154 = vmatpush.msra.mxu0 %v1141
    %1155 = vmatpush.msra.mxu0 %v1140
    %1156 = vmatpush.msra.mxu0 %v1139
    %1157 = vmatpush.msra.mxu0 %v1138
    %1158 = vmatmul.f32.gmra.mxu0 %v1052
    %v1159 = vpop.f32.mrf.mxu0
    %v1160 = vadd.f32 0.0, %v1159
    %1161 = vdwg.mxu0
    %v1163 = vrot.slane %v1160, 6
    %1164 = vrot.lane.b32.xlu0 %v1163, 96
    %v1165 = vpop.permute.xlu0 %1164
    %v1167 = vadd.f32 %v186, %v1165
    %v1168 = vxor.u32 %v1077, 2147483648
    %v1169 = vmul.f32 %v1168, 1.442695
    %v1170 = vpow.pop %v1169
    %v1171 = vadd.f32 %v1170, 1.0
    %v1172 = vrcp.pop %v1171
    %v1173 = vmul.f32 %v1171, %v1172
    %v1174 = vsub.f32 1.0, %v1173
    %v1175 = vmul.f32 %v1172, %v1174
    %v1176 = vadd.f32 %v1172, %v1175
    %vm1177 = vweird.f32 %v1171
    %vm1178 = vweird.f32 %v1172
    %vm1179 = vmor %vm1177, %vm1178
    %v1180 = vsel %vm1179, %v1172, %v1176
    %v1181 = vand.u32 2147483647, %v1171
    %vm1182 = vcmp.eq.f32.partialorder %v1181, 8.507059e+37
    %v1183 = vand.u32 %v1171, 2147483648
    %v1184 = vor.u32 1.1754944e-38, %v1183
    %v1185 = vsel %vm1182, %v1184, %v1180
    %v1186 = vmul.f32 1.0, %v1185
    %v1187 = vxor.u32 %v1107, 2147483648
    %v1188 = vmul.f32 %v1187, 1.442695
    %v1189 = vpow.pop %v1188
    %v1190 = vadd.f32 %v1189, 1.0
    %v1191 = vrcp.pop %v1190
    %v1192 = vmul.f32 %v1190, %v1191
    %v1193 = vsub.f32 1.0, %v1192
    %v1194 = vmul.f32 %v1191, %v1193
    %v1195 = vadd.f32 %v1191, %v1194
    %vm1196 = vweird.f32 %v1190
    %vm1197 = vweird.f32 %v1191
    %vm1198 = vmor %vm1196, %vm1197
    %v1199 = vsel %vm1198, %v1191, %v1195
    %v1200 = vand.u32 2147483647, %v1190
    %vm1201 = vcmp.eq.f32.partialorder %v1200, 8.507059e+37
    %v1202 = vand.u32 %v1190, 2147483648
    %v1203 = vor.u32 1.1754944e-38, %v1202
    %v1204 = vsel %vm1201, %v1203, %v1199
    %v1205 = vmul.f32 1.0, %v1204
    %v1206 = vtanh.pop %v1137
    %v1207 = vxor.u32 %v1167, 2147483648
    %v1208 = vmul.f32 %v1207, 1.442695
    %v1209 = vpow.pop %v1208
    %v1210 = vadd.f32 %v1209, 1.0
    %v1211 = vrcp.pop %v1210
    %v1212 = vmul.f32 %v1210, %v1211
    %v1213 = vsub.f32 1.0, %v1212
    %v1214 = vmul.f32 %v1211, %v1213
    %v1215 = vadd.f32 %v1211, %v1214
    %vm1216 = vweird.f32 %v1210
    %vm1217 = vweird.f32 %v1211
    %vm1218 = vmor %vm1216, %vm1217
    %v1219 = vsel %vm1218, %v1211, %v1215
    %v1220 = vand.u32 2147483647, %v1210
    %vm1221 = vcmp.eq.f32.partialorder %v1220, 8.507059e+37
    %v1222 = vand.u32 %v1210, 2147483648
    %v1223 = vor.u32 1.1754944e-38, %v1222
    %v1224 = vsel %vm1221, %v1223, %v1219
    %v1225 = vmul.f32 1.0, %v1224
    %v1227 = vrot.slane %v1036, 6
    %v1229 = vmul.f32 %v1205, %v1227
    %1231 = vrot.lane.b32.xlu0 %v1206, 64
    %v1232 = vpop.permute.xlu0 %1231
    %v1234 = vmul.f32 %v1186, %v1232
    %1236 = vrot.lane.b32.xlu0 %v1234, 32
    %v1237 = vpop.permute.xlu0 %1236
    %v1239 = vadd.f32 %v1229, %v1237
    %v1240 = vtanh.pop %v1239
    %1242 = vrot.lane.b32.xlu0 %v1240, 64
    %v1243 = vpop.permute.xlu0 %1242
    %v1245 = vmul.f32 %v1225, %v1243
    %1247 = vrot.lane.b32.xlu0 %v1245, 32
    %v1248 = vpop.permute.xlu0 %1247
    %1250 = vst.msk [vmem:[#allocation2 + $0x8] sm:$0xc] %vm432, %v1248
    %v1251 = vld [vmem:[#allocation8] sm:$0xff]
    %v1252 = vld [vmem:[#allocation8 + $0x8] sm:$0xff]
    %v1253 = vld [vmem:[#allocation8 + $0x10] sm:$0xff]
    %v1254 = vld [vmem:[#allocation8 + $0x18] sm:$0xff]
    %v1255 = vrot.slane %v1245, 2
    %1256 = vrot.lane.b32.xlu0 %v1255, 32
    %v1257 = vpop.permute.xlu0 %1256
    %v1258 = vsel %vm158, %v1257, 0
    %1260 = vmatpush.msra.mxu0 0.0
    %1261 = vmatpush.msra.mxu0 0.0
    %1262 = vmatpush.msra.mxu0 0.0
    %1263 = vmatpush.msra.mxu0 0.0
    %1264 = vmatpush.msra.mxu0 0.0
    %1265 = vmatpush.msra.mxu0 0.0
    %1266 = vmatpush.msra.mxu0 0.0
    %1267 = vmatpush.msra.mxu0 0.0
    %1268 = vmatpush.msra.mxu0 0.0
    %1269 = vmatpush.msra.mxu0 0.0
    %1270 = vmatpush.msra.mxu0 0.0
    %1271 = vmatpush.msra.mxu0 0.0
    %1272 = vmatpush.msra.mxu0 %v1254
    %1273 = vmatpush.msra.mxu0 %v1253
    %1274 = vmatpush.msra.mxu0 %v1252
    %1275 = vmatpush.msra.mxu0 %v1251
    %1276 = vmatmul.f32.gmra.mxu0 %v1258
    %v1277 = vpop.f32.mrf.mxu0
    %v1278 = vadd.f32 0.0, %v1277
    %1279 = vdwg.mxu0
    %v1281 = vrot.slane %v1278, 4
    %v1283 = vadd.f32 %v186, %v1281
    %v1284 = vld [vmem:[%s255] sm:$0xff]
    %v1285 = vld [vmem:[%s255 + $0x8] sm:$0xff]
    %v1286 = vld [vmem:[%s255 + $0x10] sm:$0xff]
    %v1287 = vld [vmem:[%s255 + $0x18] sm:$0xff]
    %1288 = vmatpush.msra.mxu0 0.0
    %1289 = vmatpush.msra.mxu0 0.0
    %1290 = vmatpush.msra.mxu0 0.0
    %1291 = vmatpush.msra.mxu0 0.0
    %1292 = vmatpush.msra.mxu0 0.0
    %1293 = vmatpush.msra.mxu0 0.0
    %1294 = vmatpush.msra.mxu0 0.0
    %1295 = vmatpush.msra.mxu0 0.0
    %1296 = vmatpush.msra.mxu0 0.0
    %1297 = vmatpush.msra.mxu0 0.0
    %1298 = vmatpush.msra.mxu0 0.0
    %1299 = vmatpush.msra.mxu0 0.0
    %1300 = vmatpush.msra.mxu0 %v1287
    %1301 = vmatpush.msra.mxu0 %v1286
    %1302 = vmatpush.msra.mxu0 %v1285
    %1303 = vmatpush.msra.mxu0 %v1284
    %1304 = vmatmul.f32.gmra.mxu0 %v1258
    %v1305 = vpop.f32.mrf.mxu0
    %v1306 = vadd.f32 0.0, %v1305
    %1307 = vdwg.mxu0
    %v1309 = vrot.slane %v1306, 4
    %1310 = vrot.lane.b32.xlu0 %v1309, 32
    %v1311 = vpop.permute.xlu0 %1310
    %v1313 = vadd.f32 %v186, %v1311
    %v1314 = vld [vmem:[%s286] sm:$0xff]
    %v1315 = vld [vmem:[%s286 + $0x8] sm:$0xff]
    %v1316 = vld [vmem:[%s286 + $0x10] sm:$0xff]
    %v1317 = vld [vmem:[%s286 + $0x18] sm:$0xff]
    %1318 = vmatpush.msra.mxu0 0.0
    %1319 = vmatpush.msra.mxu0 0.0
    %1320 = vmatpush.msra.mxu0 0.0
    %1321 = vmatpush.msra.mxu0 0.0
    %1322 = vmatpush.msra.mxu0 0.0
    %1323 = vmatpush.msra.mxu0 0.0
    %1324 = vmatpush.msra.mxu0 0.0
    %1325 = vmatpush.msra.mxu0 0.0
    %1326 = vmatpush.msra.mxu0 0.0
    %1327 = vmatpush.msra.mxu0 0.0
    %1328 = vmatpush.msra.mxu0 0.0
    %1329 = vmatpush.msra.mxu0 0.0
    %1330 = vmatpush.msra.mxu0 %v1317
    %1331 = vmatpush.msra.mxu0 %v1316
    %1332 = vmatpush.msra.mxu0 %v1315
    %1333 = vmatpush.msra.mxu0 %v1314
    %1334 = vmatmul.f32.gmra.mxu0 %v1258
    %v1335 = vpop.f32.mrf.mxu0
    %v1336 = vadd.f32 0.0, %v1335
    %1337 = vdwg.mxu0
    %v1339 = vrot.slane %v1336, 4
    %1340 = vrot.lane.b32.xlu0 %v1339, 64
    %v1341 = vpop.permute.xlu0 %1340
    %v1343 = vadd.f32 %v186, %v1341
    %v1344 = vld [vmem:[%s317] sm:$0xff]
    %v1345 = vld [vmem:[%s317 + $0x8] sm:$0xff]
    %v1346 = vld [vmem:[%s317 + $0x10] sm:$0xff]
    %v1347 = vld [vmem:[%s317 + $0x18] sm:$0xff]
    %1348 = vmatpush.msra.mxu0 0.0
    %1349 = vmatpush.msra.mxu0 0.0
    %1350 = vmatpush.msra.mxu0 0.0
    %1351 = vmatpush.msra.mxu0 0.0
    %1352 = vmatpush.msra.mxu0 0.0
    %1353 = vmatpush.msra.mxu0 0.0
    %1354 = vmatpush.msra.mxu0 0.0
    %1355 = vmatpush.msra.mxu0 0.0
    %1356 = vmatpush.msra.mxu0 0.0
    %1357 = vmatpush.msra.mxu0 0.0
    %1358 = vmatpush.msra.mxu0 0.0
    %1359 = vmatpush.msra.mxu0 0.0
    %1360 = vmatpush.msra.mxu0 %v1347
    %1361 = vmatpush.msra.mxu0 %v1346
    %1362 = vmatpush.msra.mxu0 %v1345
    %1363 = vmatpush.msra.mxu0 %v1344
    %1364 = vmatmul.f32.gmra.mxu0 %v1258
    %v1365 = vpop.f32.mrf.mxu0
    %v1366 = vadd.f32 0.0, %v1365
    %1367 = vdwg.mxu0
    %v1369 = vrot.slane %v1366, 4
    %1370 = vrot.lane.b32.xlu0 %v1369, 96
    %v1371 = vpop.permute.xlu0 %1370
    %v1373 = vadd.f32 %v186, %v1371
    %v1374 = vxor.u32 %v1283, 2147483648
    %v1375 = vmul.f32 %v1374, 1.442695
    %v1376 = vpow.pop %v1375
    %v1377 = vadd.f32 %v1376, 1.0
    %v1378 = vrcp.pop %v1377
    %v1379 = vmul.f32 %v1377, %v1378
    %v1380 = vsub.f32 1.0, %v1379
    %v1381 = vmul.f32 %v1378, %v1380
    %v1382 = vadd.f32 %v1378, %v1381
    %vm1383 = vweird.f32 %v1377
    %vm1384 = vweird.f32 %v1378
    %vm1385 = vmor %vm1383, %vm1384
    %v1386 = vsel %vm1385, %v1378, %v1382
    %v1387 = vand.u32 2147483647, %v1377
    %vm1388 = vcmp.eq.f32.partialorder %v1387, 8.507059e+37
    %v1389 = vand.u32 %v1377, 2147483648
    %v1390 = vor.u32 1.1754944e-38, %v1389
    %v1391 = vsel %vm1388, %v1390, %v1386
    %v1392 = vmul.f32 1.0, %v1391
    %v1393 = vxor.u32 %v1313, 2147483648
    %v1394 = vmul.f32 %v1393, 1.442695
    %v1395 = vpow.pop %v1394
    %v1396 = vadd.f32 %v1395, 1.0
    %v1397 = vrcp.pop %v1396
    %v1398 = vmul.f32 %v1396, %v1397
    %v1399 = vsub.f32 1.0, %v1398
    %v1400 = vmul.f32 %v1397, %v1399
    %v1401 = vadd.f32 %v1397, %v1400
    %vm1402 = vweird.f32 %v1396
    %vm1403 = vweird.f32 %v1397
    %vm1404 = vmor %vm1402, %vm1403
    %v1405 = vsel %vm1404, %v1397, %v1401
    %v1406 = vand.u32 2147483647, %v1396
    %vm1407 = vcmp.eq.f32.partialorder %v1406, 8.507059e+37
    %v1408 = vand.u32 %v1396, 2147483648
    %v1409 = vor.u32 1.1754944e-38, %v1408
    %v1410 = vsel %vm1407, %v1409, %v1405
    %v1411 = vmul.f32 1.0, %v1410
    %v1412 = vtanh.pop %v1343
    %v1413 = vxor.u32 %v1373, 2147483648
    %v1414 = vmul.f32 %v1413, 1.442695
    %v1415 = vpow.pop %v1414
    %v1416 = vadd.f32 %v1415, 1.0
    %v1417 = vrcp.pop %v1416
    %v1418 = vmul.f32 %v1416, %v1417
    %v1419 = vsub.f32 1.0, %v1418
    %v1420 = vmul.f32 %v1417, %v1419
    %v1421 = vadd.f32 %v1417, %v1420
    %vm1422 = vweird.f32 %v1416
    %vm1423 = vweird.f32 %v1417
    %vm1424 = vmor %vm1422, %vm1423
    %v1425 = vsel %vm1424, %v1417, %v1421
    %v1426 = vand.u32 2147483647, %v1416
    %vm1427 = vcmp.eq.f32.partialorder %v1426, 8.507059e+37
    %v1428 = vand.u32 %v1416, 2147483648
    %v1429 = vor.u32 1.1754944e-38, %v1428
    %v1430 = vsel %vm1427, %v1429, %v1425
    %v1431 = vmul.f32 1.0, %v1430
    %v1433 = vrot.slane %v1239, 6
    %v1435 = vmul.f32 %v1411, %v1433
    %1437 = vrot.lane.b32.xlu0 %v1412, 64
    %v1438 = vpop.permute.xlu0 %1437
    %v1440 = vmul.f32 %v1392, %v1438
    %1442 = vrot.lane.b32.xlu0 %v1440, 32
    %v1443 = vpop.permute.xlu0 %1442
    %v1445 = vadd.f32 %v1435, %v1443
    %v1446 = vtanh.pop %v1445
    %1448 = vrot.lane.b32.xlu0 %v1446, 64
    %v1449 = vpop.permute.xlu0 %1448
    %v1451 = vmul.f32 %v1431, %v1449
    %1453 = vrot.lane.b32.xlu0 %v1451, 32
    %v1454 = vpop.permute.xlu0 %1453
    %1456 = vst.msk [vmem:[#allocation2 + $0x8] sm:$0x30] %vm639, %v1454
    %v1457 = vld [vmem:[#allocation8] sm:$0xff]
    %v1458 = vld [vmem:[#allocation8 + $0x8] sm:$0xff]
    %v1459 = vld [vmem:[#allocation8 + $0x10] sm:$0xff]
    %v1460 = vld [vmem:[#allocation8 + $0x18] sm:$0xff]
    %v1461 = vrot.slane %v1451, 4
    %1462 = vrot.lane.b32.xlu0 %v1461, 32
    %v1463 = vpop.permute.xlu0 %1462
    %v1464 = vsel %vm158, %v1463, 0
    %1466 = vmatpush.msra.mxu0 0.0
    %1467 = vmatpush.msra.mxu0 0.0
    %1468 = vmatpush.msra.mxu0 0.0
    %1469 = vmatpush.msra.mxu0 0.0
    %1470 = vmatpush.msra.mxu0 0.0
    %1471 = vmatpush.msra.mxu0 0.0
    %1472 = vmatpush.msra.mxu0 0.0
    %1473 = vmatpush.msra.mxu0 0.0
    %1474 = vmatpush.msra.mxu0 0.0
    %1475 = vmatpush.msra.mxu0 0.0
    %1476 = vmatpush.msra.mxu0 0.0
    %1477 = vmatpush.msra.mxu0 0.0
    %1478 = vmatpush.msra.mxu0 %v1460
    %1479 = vmatpush.msra.mxu0 %v1459
    %1480 = vmatpush.msra.mxu0 %v1458
    %1481 = vmatpush.msra.mxu0 %v1457
    %1482 = vmatmul.f32.gmra.mxu0 %v1464
    %v1483 = vpop.f32.mrf.mxu0
    %v1484 = vadd.f32 0.0, %v1483
    %1485 = vdwg.mxu0
    %v1487 = vrot.slane %v1484, 2
    %v1489 = vadd.f32 %v186, %v1487
    %v1490 = vld [vmem:[%s255] sm:$0xff]
    %v1491 = vld [vmem:[%s255 + $0x8] sm:$0xff]
    %v1492 = vld [vmem:[%s255 + $0x10] sm:$0xff]
    %v1493 = vld [vmem:[%s255 + $0x18] sm:$0xff]
    %1494 = vmatpush.msra.mxu0 0.0
    %1495 = vmatpush.msra.mxu0 0.0
    %1496 = vmatpush.msra.mxu0 0.0
    %1497 = vmatpush.msra.mxu0 0.0
    %1498 = vmatpush.msra.mxu0 0.0
    %1499 = vmatpush.msra.mxu0 0.0
    %1500 = vmatpush.msra.mxu0 0.0
    %1501 = vmatpush.msra.mxu0 0.0
    %1502 = vmatpush.msra.mxu0 0.0
    %1503 = vmatpush.msra.mxu0 0.0
    %1504 = vmatpush.msra.mxu0 0.0
    %1505 = vmatpush.msra.mxu0 0.0
    %1506 = vmatpush.msra.mxu0 %v1493
    %1507 = vmatpush.msra.mxu0 %v1492
    %1508 = vmatpush.msra.mxu0 %v1491
    %1509 = vmatpush.msra.mxu0 %v1490
    %1510 = vmatmul.f32.gmra.mxu0 %v1464
    %v1511 = vpop.f32.mrf.mxu0
    %v1512 = vadd.f32 0.0, %v1511
    %1513 = vdwg.mxu0
    %v1515 = vrot.slane %v1512, 2
    %1516 = vrot.lane.b32.xlu0 %v1515, 32
    %v1517 = vpop.permute.xlu0 %1516
    %v1519 = vadd.f32 %v186, %v1517
    %v1520 = vld [vmem:[%s286] sm:$0xff]
    %v1521 = vld [vmem:[%s286 + $0x8] sm:$0xff]
    %v1522 = vld [vmem:[%s286 + $0x10] sm:$0xff]
    %v1523 = vld [vmem:[%s286 + $0x18] sm:$0xff]
    %1524 = vmatpush.msra.mxu0 0.0
    %1525 = vmatpush.msra.mxu0 0.0
    %1526 = vmatpush.msra.mxu0 0.0
    %1527 = vmatpush.msra.mxu0 0.0
    %1528 = vmatpush.msra.mxu0 0.0
    %1529 = vmatpush.msra.mxu0 0.0
    %1530 = vmatpush.msra.mxu0 0.0
    %1531 = vmatpush.msra.mxu0 0.0
    %1532 = vmatpush.msra.mxu0 0.0
    %1533 = vmatpush.msra.mxu0 0.0
    %1534 = vmatpush.msra.mxu0 0.0
    %1535 = vmatpush.msra.mxu0 0.0
    %1536 = vmatpush.msra.mxu0 %v1523
    %1537 = vmatpush.msra.mxu0 %v1522
    %1538 = vmatpush.msra.mxu0 %v1521
    %1539 = vmatpush.msra.mxu0 %v1520
    %1540 = vmatmul.f32.gmra.mxu0 %v1464
    %v1541 = vpop.f32.mrf.mxu0
    %v1542 = vadd.f32 0.0, %v1541
    %1543 = vdwg.mxu0
    %v1545 = vrot.slane %v1542, 2
    %1546 = vrot.lane.b32.xlu0 %v1545, 64
    %v1547 = vpop.permute.xlu0 %1546
    %v1549 = vadd.f32 %v186, %v1547
    %v1550 = vld [vmem:[%s317] sm:$0xff]
    %v1551 = vld [vmem:[%s317 + $0x8] sm:$0xff]
    %v1552 = vld [vmem:[%s317 + $0x10] sm:$0xff]
    %v1553 = vld [vmem:[%s317 + $0x18] sm:$0xff]
    %1554 = vmatpush.msra.mxu0 0.0
    %1555 = vmatpush.msra.mxu0 0.0
    %1556 = vmatpush.msra.mxu0 0.0
    %1557 = vmatpush.msra.mxu0 0.0
    %1558 = vmatpush.msra.mxu0 0.0
    %1559 = vmatpush.msra.mxu0 0.0
    %1560 = vmatpush.msra.mxu0 0.0
    %1561 = vmatpush.msra.mxu0 0.0
    %1562 = vmatpush.msra.mxu0 0.0
    %1563 = vmatpush.msra.mxu0 0.0
    %1564 = vmatpush.msra.mxu0 0.0
    %1565 = vmatpush.msra.mxu0 0.0
    %1566 = vmatpush.msra.mxu0 %v1553
    %1567 = vmatpush.msra.mxu0 %v1552
    %1568 = vmatpush.msra.mxu0 %v1551
    %1569 = vmatpush.msra.mxu0 %v1550
    %1570 = vmatmul.f32.gmra.mxu0 %v1464
    %v1571 = vpop.f32.mrf.mxu0
    %v1572 = vadd.f32 0.0, %v1571
    %1573 = vdwg.mxu0
    %v1575 = vrot.slane %v1572, 2
    %1576 = vrot.lane.b32.xlu0 %v1575, 96
    %v1577 = vpop.permute.xlu0 %1576
    %v1579 = vadd.f32 %v186, %v1577
    %v1580 = vxor.u32 %v1489, 2147483648
    %v1581 = vmul.f32 %v1580, 1.442695
    %v1582 = vpow.pop %v1581
    %v1583 = vadd.f32 %v1582, 1.0
    %v1584 = vrcp.pop %v1583
    %v1585 = vmul.f32 %v1583, %v1584
    %v1586 = vsub.f32 1.0, %v1585
    %v1587 = vmul.f32 %v1584, %v1586
    %v1588 = vadd.f32 %v1584, %v1587
    %vm1589 = vweird.f32 %v1583
    %vm1590 = vweird.f32 %v1584
    %vm1591 = vmor %vm1589, %vm1590
    %v1592 = vsel %vm1591, %v1584, %v1588
    %v1593 = vand.u32 2147483647, %v1583
    %vm1594 = vcmp.eq.f32.partialorder %v1593, 8.507059e+37
    %v1595 = vand.u32 %v1583, 2147483648
    %v1596 = vor.u32 1.1754944e-38, %v1595
    %v1597 = vsel %vm1594, %v1596, %v1592
    %v1598 = vmul.f32 1.0, %v1597
    %v1599 = vxor.u32 %v1519, 2147483648
    %v1600 = vmul.f32 %v1599, 1.442695
    %v1601 = vpow.pop %v1600
    %v1602 = vadd.f32 %v1601, 1.0
    %v1603 = vrcp.pop %v1602
    %v1604 = vmul.f32 %v1602, %v1603
    %v1605 = vsub.f32 1.0, %v1604
    %v1606 = vmul.f32 %v1603, %v1605
    %v1607 = vadd.f32 %v1603, %v1606
    %vm1608 = vweird.f32 %v1602
    %vm1609 = vweird.f32 %v1603
    %vm1610 = vmor %vm1608, %vm1609
    %v1611 = vsel %vm1610, %v1603, %v1607
    %v1612 = vand.u32 2147483647, %v1602
    %vm1613 = vcmp.eq.f32.partialorder %v1612, 8.507059e+37
    %v1614 = vand.u32 %v1602, 2147483648
    %v1615 = vor.u32 1.1754944e-38, %v1614
    %v1616 = vsel %vm1613, %v1615, %v1611
    %v1617 = vmul.f32 1.0, %v1616
    %v1618 = vtanh.pop %v1549
    %v1619 = vxor.u32 %v1579, 2147483648
    %v1620 = vmul.f32 %v1619, 1.442695
    %v1621 = vpow.pop %v1620
    %v1622 = vadd.f32 %v1621, 1.0
    %v1623 = vrcp.pop %v1622
    %v1624 = vmul.f32 %v1622, %v1623
    %v1625 = vsub.f32 1.0, %v1624
    %v1626 = vmul.f32 %v1623, %v1625
    %v1627 = vadd.f32 %v1623, %v1626
    %vm1628 = vweird.f32 %v1622
    %vm1629 = vweird.f32 %v1623
    %vm1630 = vmor %vm1628, %vm1629
    %v1631 = vsel %vm1630, %v1623, %v1627
    %v1632 = vand.u32 2147483647, %v1622
    %vm1633 = vcmp.eq.f32.partialorder %v1632, 8.507059e+37
    %v1634 = vand.u32 %v1622, 2147483648
    %v1635 = vor.u32 1.1754944e-38, %v1634
    %v1636 = vsel %vm1633, %v1635, %v1631
    %v1637 = vmul.f32 1.0, %v1636
    %v1639 = vrot.slane %v1445, 6
    %v1641 = vmul.f32 %v1617, %v1639
    %1643 = vrot.lane.b32.xlu0 %v1618, 64
    %v1644 = vpop.permute.xlu0 %1643
    %v1646 = vmul.f32 %v1598, %v1644
    %1648 = vrot.lane.b32.xlu0 %v1646, 32
    %v1649 = vpop.permute.xlu0 %1648
    %v1651 = vadd.f32 %v1641, %v1649
    %v1652 = vtanh.pop %v1651
    %1654 = vrot.lane.b32.xlu0 %v1652, 64
    %v1655 = vpop.permute.xlu0 %1654
    %v1657 = vmul.f32 %v1637, %v1655
    %1659 = vrot.lane.b32.xlu0 %v1657, 32
    %v1660 = vpop.permute.xlu0 %1659
    %1662 = vst.msk [vmem:[#allocation2 + $0x8] sm:$0xc0] %vm846, %v1660
    %v1663 = vld [vmem:[#allocation2] sm:$0xff]
    %v1664 = vld [vmem:[#allocation2 + $0x8] sm:$0xff]
    %v1665 = vld [vmem:[#allocation9] sm:$0xff]
    %v1666 = vld [vmem:[#allocation9 + $0x8] sm:$0xff]
    %v1667 = vld [vmem:[#allocation9 + $0x10] sm:$0xff]
    %v1668 = vld [vmem:[#allocation9 + $0x18] sm:$0xff]
    %v1669 = vld [vmem:[%s6] sm:$0x1]
    %v1671 = vperm.slane %v1669, 0
    %v1674 = vsel %vm158, %v1663, 0
    %v1677 = vsel %vm158, %v1664, 0
    %1679 = vmatpush.msra.mxu0 0.0
    %1680 = vmatpush.msra.mxu0 0.0
    %1681 = vmatpush.msra.mxu0 0.0
    %1682 = vmatpush.msra.mxu0 0.0
    %1683 = vmatpush.msra.mxu0 0.0
    %1684 = vmatpush.msra.mxu0 0.0
    %1685 = vmatpush.msra.mxu0 0.0
    %1686 = vmatpush.msra.mxu0 0.0
    %1687 = vmatpush.msra.mxu0 0.0
    %1688 = vmatpush.msra.mxu0 0.0
    %1689 = vmatpush.msra.mxu0 0.0
    %1690 = vmatpush.msra.mxu0 0.0
    %1691 = vmatpush.msra.mxu0 %v1668
    %1692 = vmatpush.msra.mxu0 %v1667
    %1693 = vmatpush.msra.mxu0 %v1666
    %1694 = vmatpush.msra.mxu0 %v1665
    %1695 = vmatmul.f32.gmra.mxu0 %v1674
    %v1696 = vpop.f32.mrf.mxu0
    %v1697 = vadd.f32 %v1671, %v1696
    %1698 = vmatmul.f32.gmra.mxu0 %v1677
    %v1699 = vpop.f32.mrf.mxu0
    %v1700 = vadd.f32 %v1671, %v1699
    %1701 = vdwg.mxu0
    %v1702 = vxor.u32 %v1697, 2147483648
    %v1703 = vmul.f32 %v1702, 1.442695
    %v1704 = vpow.pop %v1703
    %v1705 = vadd.f32 %v1704, 1.0
    %v1706 = vrcp.pop %v1705
    %v1707 = vmul.f32 %v1705, %v1706
    %v1708 = vsub.f32 1.0, %v1707
    %v1709 = vmul.f32 %v1706, %v1708
    %v1710 = vadd.f32 %v1706, %v1709
    %vm1711 = vweird.f32 %v1705
    %vm1712 = vweird.f32 %v1706
    %vm1713 = vmor %vm1711, %vm1712
    %v1714 = vsel %vm1713, %v1706, %v1710
    %v1715 = vand.u32 2147483647, %v1705
    %vm1716 = vcmp.eq.f32.partialorder %v1715, 8.507059e+37
    %v1717 = vand.u32 %v1705, 2147483648
    %v1718 = vor.u32 1.1754944e-38, %v1717
    %v1719 = vsel %vm1716, %v1718, %v1714
    %v1720 = vmul.f32 1.0, %v1719
    %v1721 = vtanh.pop %v1697
    %1723 = vrot.lane.b32.xlu0 %v1721, 64
    %v1724 = vpop.permute.xlu0 %1723
    %v1726 = vmul.f32 %v1720, %v1724
    %v1727 = vtanh.pop %v1726
    %1729 = vrot.lane.b32.xlu0 %v1727, 96
    %v1730 = vpop.permute.xlu0 %1729
    %v1732 = vmul.f32 %v1720, %v1730
    %1734 = vrot.lane.b32.xlu0 %v1732, 32
    %v1735 = vpop.permute.xlu0 %1734
    %1737 = vst.msk [vmem:[#allocation2] sm:$0x3] %vm223, %v1735
    %v1738 = vld [vmem:[#allocation11] sm:$0xff]
    %v1739 = vld [vmem:[#allocation11 + $0x8] sm:$0xff]
    %v1740 = vld [vmem:[#allocation11 + $0x10] sm:$0xff]
    %v1741 = vld [vmem:[#allocation11 + $0x18] sm:$0xff]
    %v1742 = vsel %vm158, %v1735, 0
    %1744 = vmatpush.msra.mxu0 0.0
    %1745 = vmatpush.msra.mxu0 0.0
    %1746 = vmatpush.msra.mxu0 0.0
    %1747 = vmatpush.msra.mxu0 0.0
    %1748 = vmatpush.msra.mxu0 0.0
    %1749 = vmatpush.msra.mxu0 0.0
    %1750 = vmatpush.msra.mxu0 0.0
    %1751 = vmatpush.msra.mxu0 0.0
    %1752 = vmatpush.msra.mxu0 0.0
    %1753 = vmatpush.msra.mxu0 0.0
    %1754 = vmatpush.msra.mxu0 0.0
    %1755 = vmatpush.msra.mxu0 0.0
    %1756 = vmatpush.msra.mxu0 %v1741
    %1757 = vmatpush.msra.mxu0 %v1740
    %1758 = vmatpush.msra.mxu0 %v1739
    %1759 = vmatpush.msra.mxu0 %v1738
    %1760 = vmatmul.f32.gmra.mxu0 %v1742
    %v1761 = vpop.f32.mrf.mxu0
    %v1762 = vadd.f32 0.0, %v1761
    %1763 = vdwg.mxu0
    %v1765 = vrot.slane %v1762, 6
    %v1767 = vadd.f32 %v1697, %v1765
    %s1768 = scalar_lea.vmem [#allocation11], 32
    %v1769 = vld [vmem:[%s1768] sm:$0xff]
    %v1770 = vld [vmem:[%s1768 + $0x8] sm:$0xff]
    %v1771 = vld [vmem:[%s1768 + $0x10] sm:$0xff]
    %v1772 = vld [vmem:[%s1768 + $0x18] sm:$0xff]
    %1773 = vmatpush.msra.mxu0 0.0
    %1774 = vmatpush.msra.mxu0 0.0
    %1775 = vmatpush.msra.mxu0 0.0
    %1776 = vmatpush.msra.mxu0 0.0
    %1777 = vmatpush.msra.mxu0 0.0
    %1778 = vmatpush.msra.mxu0 0.0
    %1779 = vmatpush.msra.mxu0 0.0
    %1780 = vmatpush.msra.mxu0 0.0
    %1781 = vmatpush.msra.mxu0 0.0
    %1782 = vmatpush.msra.mxu0 0.0
    %1783 = vmatpush.msra.mxu0 0.0
    %1784 = vmatpush.msra.mxu0 0.0
    %1785 = vmatpush.msra.mxu0 %v1772
    %1786 = vmatpush.msra.mxu0 %v1771
    %1787 = vmatpush.msra.mxu0 %v1770
    %1788 = vmatpush.msra.mxu0 %v1769
    %1789 = vmatmul.f32.gmra.mxu0 %v1742
    %v1790 = vpop.f32.mrf.mxu0
    %v1791 = vadd.f32 0.0, %v1790
    %1792 = vdwg.mxu0
    %v1794 = vrot.slane %v1791, 6
    %1795 = vrot.lane.b32.xlu0 %v1794, 32
    %v1796 = vpop.permute.xlu0 %1795
    %v1798 = vadd.f32 %v1697, %v1796
    %s1799 = scalar_lea.vmem [#allocation11], 64
    %v1800 = vld [vmem:[%s1799] sm:$0xff]
    %v1801 = vld [vmem:[%s1799 + $0x8] sm:$0xff]
    %v1802 = vld [vmem:[%s1799 + $0x10] sm:$0xff]
    %v1803 = vld [vmem:[%s1799 + $0x18] sm:$0xff]
    %1804 = vmatpush.msra.mxu0 0.0
    %1805 = vmatpush.msra.mxu0 0.0
    %1806 = vmatpush.msra.mxu0 0.0
    %1807 = vmatpush.msra.mxu0 0.0
    %1808 = vmatpush.msra.mxu0 0.0
    %1809 = vmatpush.msra.mxu0 0.0
    %1810 = vmatpush.msra.mxu0 0.0
    %1811 = vmatpush.msra.mxu0 0.0
    %1812 = vmatpush.msra.mxu0 0.0
    %1813 = vmatpush.msra.mxu0 0.0
    %1814 = vmatpush.msra.mxu0 0.0
    %1815 = vmatpush.msra.mxu0 0.0
    %1816 = vmatpush.msra.mxu0 %v1803
    %1817 = vmatpush.msra.mxu0 %v1802
    %1818 = vmatpush.msra.mxu0 %v1801
    %1819 = vmatpush.msra.mxu0 %v1800
    %1820 = vmatmul.f32.gmra.mxu0 %v1742
    %v1821 = vpop.f32.mrf.mxu0
    %v1822 = vadd.f32 0.0, %v1821
    %1823 = vdwg.mxu0
    %v1825 = vrot.slane %v1822, 6
    %1826 = vrot.lane.b32.xlu0 %v1825, 64
    %v1827 = vpop.permute.xlu0 %1826
    %v1829 = vadd.f32 %v1697, %v1827
    %s1830 = scalar_lea.vmem [#allocation11], 96
    %v1831 = vld [vmem:[%s1830] sm:$0xff]
    %v1832 = vld [vmem:[%s1830 + $0x8] sm:$0xff]
    %v1833 = vld [vmem:[%s1830 + $0x10] sm:$0xff]
    %v1834 = vld [vmem:[%s1830 + $0x18] sm:$0xff]
    %1835 = vmatpush.msra.mxu0 0.0
    %1836 = vmatpush.msra.mxu0 0.0
    %1837 = vmatpush.msra.mxu0 0.0
    %1838 = vmatpush.msra.mxu0 0.0
    %1839 = vmatpush.msra.mxu0 0.0
    %1840 = vmatpush.msra.mxu0 0.0
    %1841 = vmatpush.msra.mxu0 0.0
    %1842 = vmatpush.msra.mxu0 0.0
    %1843 = vmatpush.msra.mxu0 0.0
    %1844 = vmatpush.msra.mxu0 0.0
    %1845 = vmatpush.msra.mxu0 0.0
    %1846 = vmatpush.msra.mxu0 0.0
    %1847 = vmatpush.msra.mxu0 %v1834
    %1848 = vmatpush.msra.mxu0 %v1833
    %1849 = vmatpush.msra.mxu0 %v1832
    %1850 = vmatpush.msra.mxu0 %v1831
    %1851 = vmatmul.f32.gmra.mxu0 %v1742
    %v1852 = vpop.f32.mrf.mxu0
    %v1853 = vadd.f32 0.0, %v1852
    %1854 = vdwg.mxu0
    %v1856 = vrot.slane %v1853, 6
    %1857 = vrot.lane.b32.xlu0 %v1856, 96
    %v1858 = vpop.permute.xlu0 %1857
    %v1860 = vadd.f32 %v1697, %v1858
    %v1861 = vxor.u32 %v1767, 2147483648
    %v1862 = vmul.f32 %v1861, 1.442695
    %v1863 = vpow.pop %v1862
    %v1864 = vadd.f32 %v1863, 1.0
    %v1865 = vrcp.pop %v1864
    %v1866 = vmul.f32 %v1864, %v1865
    %v1867 = vsub.f32 1.0, %v1866
    %v1868 = vmul.f32 %v1865, %v1867
    %v1869 = vadd.f32 %v1865, %v1868
    %vm1870 = vweird.f32 %v1864
    %vm1871 = vweird.f32 %v1865
    %vm1872 = vmor %vm1870, %vm1871
    %v1873 = vsel %vm1872, %v1865, %v1869
    %v1874 = vand.u32 2147483647, %v1864
    %vm1875 = vcmp.eq.f32.partialorder %v1874, 8.507059e+37
    %v1876 = vand.u32 %v1864, 2147483648
    %v1877 = vor.u32 1.1754944e-38, %v1876
    %v1878 = vsel %vm1875, %v1877, %v1873
    %v1879 = vmul.f32 1.0, %v1878
    %v1880 = vxor.u32 %v1798, 2147483648
    %v1881 = vmul.f32 %v1880, 1.442695
    %v1882 = vpow.pop %v1881
    %v1883 = vadd.f32 %v1882, 1.0
    %v1884 = vrcp.pop %v1883
    %v1885 = vmul.f32 %v1883, %v1884
    %v1886 = vsub.f32 1.0, %v1885
    %v1887 = vmul.f32 %v1884, %v1886
    %v1888 = vadd.f32 %v1884, %v1887
    %vm1889 = vweird.f32 %v1883
    %vm1890 = vweird.f32 %v1884
    %vm1891 = vmor %vm1889, %vm1890
    %v1892 = vsel %vm1891, %v1884, %v1888
    %v1893 = vand.u32 2147483647, %v1883
    %vm1894 = vcmp.eq.f32.partialorder %v1893, 8.507059e+37
    %v1895 = vand.u32 %v1883, 2147483648
    %v1896 = vor.u32 1.1754944e-38, %v1895
    %v1897 = vsel %vm1894, %v1896, %v1892
    %v1898 = vmul.f32 1.0, %v1897
    %v1899 = vtanh.pop %v1829
    %v1900 = vxor.u32 %v1860, 2147483648
    %v1901 = vmul.f32 %v1900, 1.442695
    %v1902 = vpow.pop %v1901
    %v1903 = vadd.f32 %v1902, 1.0
    %v1904 = vrcp.pop %v1903
    %v1905 = vmul.f32 %v1903, %v1904
    %v1906 = vsub.f32 1.0, %v1905
    %v1907 = vmul.f32 %v1904, %v1906
    %v1908 = vadd.f32 %v1904, %v1907
    %vm1909 = vweird.f32 %v1903
    %vm1910 = vweird.f32 %v1904
    %vm1911 = vmor %vm1909, %vm1910
    %v1912 = vsel %vm1911, %v1904, %v1908
    %v1913 = vand.u32 2147483647, %v1903
    %vm1914 = vcmp.eq.f32.partialorder %v1913, 8.507059e+37
    %v1915 = vand.u32 %v1903, 2147483648
    %v1916 = vor.u32 1.1754944e-38, %v1915
    %v1917 = vsel %vm1914, %v1916, %v1912
    %v1918 = vmul.f32 1.0, %v1917
    %v1920 = vrot.slane %v1726, 6
    %1921 = vrot.lane.b32.xlu0 %v1920, 32
    %v1922 = vpop.permute.xlu0 %1921
    %v1924 = vmul.f32 %v1898, %v1922
    %1926 = vrot.lane.b32.xlu0 %v1899, 64
    %v1927 = vpop.permute.xlu0 %1926
    %v1929 = vmul.f32 %v1879, %v1927
    %1931 = vrot.lane.b32.xlu0 %v1929, 32
    %v1932 = vpop.permute.xlu0 %1931
    %v1934 = vadd.f32 %v1924, %v1932
    %v1935 = vtanh.pop %v1934
    %1937 = vrot.lane.b32.xlu0 %v1935, 64
    %v1938 = vpop.permute.xlu0 %1937
    %v1940 = vmul.f32 %v1918, %v1938
    %1942 = vrot.lane.b32.xlu0 %v1940, 32
    %v1943 = vpop.permute.xlu0 %1942
    %1945 = vst.msk [vmem:[#allocation2] sm:$0xc] %vm432, %v1943
    %v1946 = vld [vmem:[#allocation11] sm:$0xff]
    %v1947 = vld [vmem:[#allocation11 + $0x8] sm:$0xff]
    %v1948 = vld [vmem:[#allocation11 + $0x10] sm:$0xff]
    %v1949 = vld [vmem:[#allocation11 + $0x18] sm:$0xff]
    %v1950 = vrot.slane %v1940, 2
    %1951 = vrot.lane.b32.xlu0 %v1950, 32
    %v1952 = vpop.permute.xlu0 %1951
    %v1953 = vsel %vm158, %v1952, 0
    %1955 = vmatpush.msra.mxu0 0.0
    %1956 = vmatpush.msra.mxu0 0.0
    %1957 = vmatpush.msra.mxu0 0.0
    %1958 = vmatpush.msra.mxu0 0.0
    %1959 = vmatpush.msra.mxu0 0.0
    %1960 = vmatpush.msra.mxu0 0.0
    %1961 = vmatpush.msra.mxu0 0.0
    %1962 = vmatpush.msra.mxu0 0.0
    %1963 = vmatpush.msra.mxu0 0.0
    %1964 = vmatpush.msra.mxu0 0.0
    %1965 = vmatpush.msra.mxu0 0.0
    %1966 = vmatpush.msra.mxu0 0.0
    %1967 = vmatpush.msra.mxu0 %v1949
    %1968 = vmatpush.msra.mxu0 %v1948
    %1969 = vmatpush.msra.mxu0 %v1947
    %1970 = vmatpush.msra.mxu0 %v1946
    %1971 = vmatmul.f32.gmra.mxu0 %v1953
    %v1972 = vpop.f32.mrf.mxu0
    %v1973 = vadd.f32 0.0, %v1972
    %1974 = vdwg.mxu0
    %v1976 = vrot.slane %v1973, 4
    %v1978 = vadd.f32 %v1697, %v1976
    %v1979 = vld [vmem:[%s1768] sm:$0xff]
    %v1980 = vld [vmem:[%s1768 + $0x8] sm:$0xff]
    %v1981 = vld [vmem:[%s1768 + $0x10] sm:$0xff]
    %v1982 = vld [vmem:[%s1768 + $0x18] sm:$0xff]
    %1983 = vmatpush.msra.mxu0 0.0
    %1984 = vmatpush.msra.mxu0 0.0
    %1985 = vmatpush.msra.mxu0 0.0
    %1986 = vmatpush.msra.mxu0 0.0
    %1987 = vmatpush.msra.mxu0 0.0
    %1988 = vmatpush.msra.mxu0 0.0
    %1989 = vmatpush.msra.mxu0 0.0
    %1990 = vmatpush.msra.mxu0 0.0
    %1991 = vmatpush.msra.mxu0 0.0
    %1992 = vmatpush.msra.mxu0 0.0
    %1993 = vmatpush.msra.mxu0 0.0
    %1994 = vmatpush.msra.mxu0 0.0
    %1995 = vmatpush.msra.mxu0 %v1982
    %1996 = vmatpush.msra.mxu0 %v1981
    %1997 = vmatpush.msra.mxu0 %v1980
    %1998 = vmatpush.msra.mxu0 %v1979
    %1999 = vmatmul.f32.gmra.mxu0 %v1953
    %v2000 = vpop.f32.mrf.mxu0
    %v2001 = vadd.f32 0.0, %v2000
    %2002 = vdwg.mxu0
    %v2004 = vrot.slane %v2001, 4
    %2005 = vrot.lane.b32.xlu0 %v2004, 32
    %v2006 = vpop.permute.xlu0 %2005
    %v2008 = vadd.f32 %v1697, %v2006
    %v2009 = vld [vmem:[%s1799] sm:$0xff]
    %v2010 = vld [vmem:[%s1799 + $0x8] sm:$0xff]
    %v2011 = vld [vmem:[%s1799 + $0x10] sm:$0xff]
    %v2012 = vld [vmem:[%s1799 + $0x18] sm:$0xff]
    %2013 = vmatpush.msra.mxu0 0.0
    %2014 = vmatpush.msra.mxu0 0.0
    %2015 = vmatpush.msra.mxu0 0.0
    %2016 = vmatpush.msra.mxu0 0.0
    %2017 = vmatpush.msra.mxu0 0.0
    %2018 = vmatpush.msra.mxu0 0.0
    %2019 = vmatpush.msra.mxu0 0.0
    %2020 = vmatpush.msra.mxu0 0.0
    %2021 = vmatpush.msra.mxu0 0.0
    %2022 = vmatpush.msra.mxu0 0.0
    %2023 = vmatpush.msra.mxu0 0.0
    %2024 = vmatpush.msra.mxu0 0.0
    %2025 = vmatpush.msra.mxu0 %v2012
    %2026 = vmatpush.msra.mxu0 %v2011
    %2027 = vmatpush.msra.mxu0 %v2010
    %2028 = vmatpush.msra.mxu0 %v2009
    %2029 = vmatmul.f32.gmra.mxu0 %v1953
    %v2030 = vpop.f32.mrf.mxu0
    %v2031 = vadd.f32 0.0, %v2030
    %2032 = vdwg.mxu0
    %v2034 = vrot.slane %v2031, 4
    %2035 = vrot.lane.b32.xlu0 %v2034, 64
    %v2036 = vpop.permute.xlu0 %2035
    %v2038 = vadd.f32 %v1697, %v2036
    %v2039 = vld [vmem:[%s1830] sm:$0xff]
    %v2040 = vld [vmem:[%s1830 + $0x8] sm:$0xff]
    %v2041 = vld [vmem:[%s1830 + $0x10] sm:$0xff]
    %v2042 = vld [vmem:[%s1830 + $0x18] sm:$0xff]
    %2043 = vmatpush.msra.mxu0 0.0
    %2044 = vmatpush.msra.mxu0 0.0
    %2045 = vmatpush.msra.mxu0 0.0
    %2046 = vmatpush.msra.mxu0 0.0
    %2047 = vmatpush.msra.mxu0 0.0
    %2048 = vmatpush.msra.mxu0 0.0
    %2049 = vmatpush.msra.mxu0 0.0
    %2050 = vmatpush.msra.mxu0 0.0
    %2051 = vmatpush.msra.mxu0 0.0
    %2052 = vmatpush.msra.mxu0 0.0
    %2053 = vmatpush.msra.mxu0 0.0
    %2054 = vmatpush.msra.mxu0 0.0
    %2055 = vmatpush.msra.mxu0 %v2042
    %2056 = vmatpush.msra.mxu0 %v2041
    %2057 = vmatpush.msra.mxu0 %v2040
    %2058 = vmatpush.msra.mxu0 %v2039
    %2059 = vmatmul.f32.gmra.mxu0 %v1953
    %v2060 = vpop.f32.mrf.mxu0
    %v2061 = vadd.f32 0.0, %v2060
    %2062 = vdwg.mxu0
    %v2064 = vrot.slane %v2061, 4
    %2065 = vrot.lane.b32.xlu0 %v2064, 96
    %v2066 = vpop.permute.xlu0 %2065
    %v2068 = vadd.f32 %v1697, %v2066
    %v2069 = vxor.u32 %v1978, 2147483648
    %v2070 = vmul.f32 %v2069, 1.442695
    %v2071 = vpow.pop %v2070
    %v2072 = vadd.f32 %v2071, 1.0
    %v2073 = vrcp.pop %v2072
    %v2074 = vmul.f32 %v2072, %v2073
    %v2075 = vsub.f32 1.0, %v2074
    %v2076 = vmul.f32 %v2073, %v2075
    %v2077 = vadd.f32 %v2073, %v2076
    %vm2078 = vweird.f32 %v2072
    %vm2079 = vweird.f32 %v2073
    %vm2080 = vmor %vm2078, %vm2079
    %v2081 = vsel %vm2080, %v2073, %v2077
    %v2082 = vand.u32 2147483647, %v2072
    %vm2083 = vcmp.eq.f32.partialorder %v2082, 8.507059e+37
    %v2084 = vand.u32 %v2072, 2147483648
    %v2085 = vor.u32 1.1754944e-38, %v2084
    %v2086 = vsel %vm2083, %v2085, %v2081
    %v2087 = vmul.f32 1.0, %v2086
    %v2088 = vxor.u32 %v2008, 2147483648
    %v2089 = vmul.f32 %v2088, 1.442695
    %v2090 = vpow.pop %v2089
    %v2091 = vadd.f32 %v2090, 1.0
    %v2092 = vrcp.pop %v2091
    %v2093 = vmul.f32 %v2091, %v2092
    %v2094 = vsub.f32 1.0, %v2093
    %v2095 = vmul.f32 %v2092, %v2094
    %v2096 = vadd.f32 %v2092, %v2095
    %vm2097 = vweird.f32 %v2091
    %vm2098 = vweird.f32 %v2092
    %vm2099 = vmor %vm2097, %vm2098
    %v2100 = vsel %vm2099, %v2092, %v2096
    %v2101 = vand.u32 2147483647, %v2091
    %vm2102 = vcmp.eq.f32.partialorder %v2101, 8.507059e+37
    %v2103 = vand.u32 %v2091, 2147483648
    %v2104 = vor.u32 1.1754944e-38, %v2103
    %v2105 = vsel %vm2102, %v2104, %v2100
    %v2106 = vmul.f32 1.0, %v2105
    %v2107 = vtanh.pop %v2038
    %v2108 = vxor.u32 %v2068, 2147483648
    %v2109 = vmul.f32 %v2108, 1.442695
    %v2110 = vpow.pop %v2109
    %v2111 = vadd.f32 %v2110, 1.0
    %v2112 = vrcp.pop %v2111
    %v2113 = vmul.f32 %v2111, %v2112
    %v2114 = vsub.f32 1.0, %v2113
    %v2115 = vmul.f32 %v2112, %v2114
    %v2116 = vadd.f32 %v2112, %v2115
    %vm2117 = vweird.f32 %v2111
    %vm2118 = vweird.f32 %v2112
    %vm2119 = vmor %vm2117, %vm2118
    %v2120 = vsel %vm2119, %v2112, %v2116
    %v2121 = vand.u32 2147483647, %v2111
    %vm2122 = vcmp.eq.f32.partialorder %v2121, 8.507059e+37
    %v2123 = vand.u32 %v2111, 2147483648
    %v2124 = vor.u32 1.1754944e-38, %v2123
    %v2125 = vsel %vm2122, %v2124, %v2120
    %v2126 = vmul.f32 1.0, %v2125
    %v2128 = vrot.slane %v1934, 6
    %v2130 = vmul.f32 %v2106, %v2128
    %2132 = vrot.lane.b32.xlu0 %v2107, 64
    %v2133 = vpop.permute.xlu0 %2132
    %v2135 = vmul.f32 %v2087, %v2133
    %2137 = vrot.lane.b32.xlu0 %v2135, 32
    %v2138 = vpop.permute.xlu0 %2137
    %v2140 = vadd.f32 %v2130, %v2138
    %v2141 = vtanh.pop %v2140
    %2143 = vrot.lane.b32.xlu0 %v2141, 64
    %v2144 = vpop.permute.xlu0 %2143
    %v2146 = vmul.f32 %v2126, %v2144
    %2148 = vrot.lane.b32.xlu0 %v2146, 32
    %v2149 = vpop.permute.xlu0 %2148
    %2151 = vst.msk [vmem:[#allocation2] sm:$0x30] %vm639, %v2149
    %v2152 = vld [vmem:[#allocation11] sm:$0xff]
    %v2153 = vld [vmem:[#allocation11 + $0x8] sm:$0xff]
    %v2154 = vld [vmem:[#allocation11 + $0x10] sm:$0xff]
    %v2155 = vld [vmem:[#allocation11 + $0x18] sm:$0xff]
    %v2156 = vrot.slane %v2146, 4
    %2157 = vrot.lane.b32.xlu0 %v2156, 32
    %v2158 = vpop.permute.xlu0 %2157
    %v2159 = vsel %vm158, %v2158, 0
    %2161 = vmatpush.msra.mxu0 0.0
    %2162 = vmatpush.msra.mxu0 0.0
    %2163 = vmatpush.msra.mxu0 0.0
    %2164 = vmatpush.msra.mxu0 0.0
    %2165 = vmatpush.msra.mxu0 0.0
    %2166 = vmatpush.msra.mxu0 0.0
    %2167 = vmatpush.msra.mxu0 0.0
    %2168 = vmatpush.msra.mxu0 0.0
    %2169 = vmatpush.msra.mxu0 0.0
    %2170 = vmatpush.msra.mxu0 0.0
    %2171 = vmatpush.msra.mxu0 0.0
    %2172 = vmatpush.msra.mxu0 0.0
    %2173 = vmatpush.msra.mxu0 %v2155
    %2174 = vmatpush.msra.mxu0 %v2154
    %2175 = vmatpush.msra.mxu0 %v2153
    %2176 = vmatpush.msra.mxu0 %v2152
    %2177 = vmatmul.f32.gmra.mxu0 %v2159
    %v2178 = vpop.f32.mrf.mxu0
    %v2179 = vadd.f32 0.0, %v2178
    %2180 = vdwg.mxu0
    %v2182 = vrot.slane %v2179, 2
    %v2184 = vadd.f32 %v1697, %v2182
    %v2185 = vld [vmem:[%s1768] sm:$0xff]
    %v2186 = vld [vmem:[%s1768 + $0x8] sm:$0xff]
    %v2187 = vld [vmem:[%s1768 + $0x10] sm:$0xff]
    %v2188 = vld [vmem:[%s1768 + $0x18] sm:$0xff]
    %2189 = vmatpush.msra.mxu0 0.0
    %2190 = vmatpush.msra.mxu0 0.0
    %2191 = vmatpush.msra.mxu0 0.0
    %2192 = vmatpush.msra.mxu0 0.0
    %2193 = vmatpush.msra.mxu0 0.0
    %2194 = vmatpush.msra.mxu0 0.0
    %2195 = vmatpush.msra.mxu0 0.0
    %2196 = vmatpush.msra.mxu0 0.0
    %2197 = vmatpush.msra.mxu0 0.0
    %2198 = vmatpush.msra.mxu0 0.0
    %2199 = vmatpush.msra.mxu0 0.0
    %2200 = vmatpush.msra.mxu0 0.0
    %2201 = vmatpush.msra.mxu0 %v2188
    %2202 = vmatpush.msra.mxu0 %v2187
    %2203 = vmatpush.msra.mxu0 %v2186
    %2204 = vmatpush.msra.mxu0 %v2185
    %2205 = vmatmul.f32.gmra.mxu0 %v2159
    %v2206 = vpop.f32.mrf.mxu0
    %v2207 = vadd.f32 0.0, %v2206
    %2208 = vdwg.mxu0
    %v2210 = vrot.slane %v2207, 2
    %2211 = vrot.lane.b32.xlu0 %v2210, 32
    %v2212 = vpop.permute.xlu0 %2211
    %v2214 = vadd.f32 %v1697, %v2212
    %v2215 = vld [vmem:[%s1799] sm:$0xff]
    %v2216 = vld [vmem:[%s1799 + $0x8] sm:$0xff]
    %v2217 = vld [vmem:[%s1799 + $0x10] sm:$0xff]
    %v2218 = vld [vmem:[%s1799 + $0x18] sm:$0xff]
    %2219 = vmatpush.msra.mxu0 0.0
    %2220 = vmatpush.msra.mxu0 0.0
    %2221 = vmatpush.msra.mxu0 0.0
    %2222 = vmatpush.msra.mxu0 0.0
    %2223 = vmatpush.msra.mxu0 0.0
    %2224 = vmatpush.msra.mxu0 0.0
    %2225 = vmatpush.msra.mxu0 0.0
    %2226 = vmatpush.msra.mxu0 0.0
    %2227 = vmatpush.msra.mxu0 0.0
    %2228 = vmatpush.msra.mxu0 0.0
    %2229 = vmatpush.msra.mxu0 0.0
    %2230 = vmatpush.msra.mxu0 0.0
    %2231 = vmatpush.msra.mxu0 %v2218
    %2232 = vmatpush.msra.mxu0 %v2217
    %2233 = vmatpush.msra.mxu0 %v2216
    %2234 = vmatpush.msra.mxu0 %v2215
    %2235 = vmatmul.f32.gmra.mxu0 %v2159
    %v2236 = vpop.f32.mrf.mxu0
    %v2237 = vadd.f32 0.0, %v2236
    %2238 = vdwg.mxu0
    %v2240 = vrot.slane %v2237, 2
    %2241 = vrot.lane.b32.xlu0 %v2240, 64
    %v2242 = vpop.permute.xlu0 %2241
    %v2244 = vadd.f32 %v1697, %v2242
    %v2245 = vld [vmem:[%s1830] sm:$0xff]
    %v2246 = vld [vmem:[%s1830 + $0x8] sm:$0xff]
    %v2247 = vld [vmem:[%s1830 + $0x10] sm:$0xff]
    %v2248 = vld [vmem:[%s1830 + $0x18] sm:$0xff]
    %2249 = vmatpush.msra.mxu0 0.0
    %2250 = vmatpush.msra.mxu0 0.0
    %2251 = vmatpush.msra.mxu0 0.0
    %2252 = vmatpush.msra.mxu0 0.0
    %2253 = vmatpush.msra.mxu0 0.0
    %2254 = vmatpush.msra.mxu0 0.0
    %2255 = vmatpush.msra.mxu0 0.0
    %2256 = vmatpush.msra.mxu0 0.0
    %2257 = vmatpush.msra.mxu0 0.0
    %2258 = vmatpush.msra.mxu0 0.0
    %2259 = vmatpush.msra.mxu0 0.0
    %2260 = vmatpush.msra.mxu0 0.0
    %2261 = vmatpush.msra.mxu0 %v2248
    %2262 = vmatpush.msra.mxu0 %v2247
    %2263 = vmatpush.msra.mxu0 %v2246
    %2264 = vmatpush.msra.mxu0 %v2245
    %2265 = vmatmul.f32.gmra.mxu0 %v2159
    %v2266 = vpop.f32.mrf.mxu0
    %v2267 = vadd.f32 0.0, %v2266
    %2268 = vdwg.mxu0
    %v2270 = vrot.slane %v2267, 2
    %2271 = vrot.lane.b32.xlu0 %v2270, 96
    %v2272 = vpop.permute.xlu0 %2271
    %v2274 = vadd.f32 %v1697, %v2272
    %v2275 = vxor.u32 %v2184, 2147483648
    %v2276 = vmul.f32 %v2275, 1.442695
    %v2277 = vpow.pop %v2276
    %v2278 = vadd.f32 %v2277, 1.0
    %v2279 = vrcp.pop %v2278
    %v2280 = vmul.f32 %v2278, %v2279
    %v2281 = vsub.f32 1.0, %v2280
    %v2282 = vmul.f32 %v2279, %v2281
    %v2283 = vadd.f32 %v2279, %v2282
    %vm2284 = vweird.f32 %v2278
    %vm2285 = vweird.f32 %v2279
    %vm2286 = vmor %vm2284, %vm2285
    %v2287 = vsel %vm2286, %v2279, %v2283
    %v2288 = vand.u32 2147483647, %v2278
    %vm2289 = vcmp.eq.f32.partialorder %v2288, 8.507059e+37
    %v2290 = vand.u32 %v2278, 2147483648
    %v2291 = vor.u32 1.1754944e-38, %v2290
    %v2292 = vsel %vm2289, %v2291, %v2287
    %v2293 = vmul.f32 1.0, %v2292
    %v2294 = vxor.u32 %v2214, 2147483648
    %v2295 = vmul.f32 %v2294, 1.442695
    %v2296 = vpow.pop %v2295
    %v2297 = vadd.f32 %v2296, 1.0
    %v2298 = vrcp.pop %v2297
    %v2299 = vmul.f32 %v2297, %v2298
    %v2300 = vsub.f32 1.0, %v2299
    %v2301 = vmul.f32 %v2298, %v2300
    %v2302 = vadd.f32 %v2298, %v2301
    %vm2303 = vweird.f32 %v2297
    %vm2304 = vweird.f32 %v2298
    %vm2305 = vmor %vm2303, %vm2304
    %v2306 = vsel %vm2305, %v2298, %v2302
    %v2307 = vand.u32 2147483647, %v2297
    %vm2308 = vcmp.eq.f32.partialorder %v2307, 8.507059e+37
    %v2309 = vand.u32 %v2297, 2147483648
    %v2310 = vor.u32 1.1754944e-38, %v2309
    %v2311 = vsel %vm2308, %v2310, %v2306
    %v2312 = vmul.f32 1.0, %v2311
    %v2313 = vtanh.pop %v2244
    %v2314 = vxor.u32 %v2274, 2147483648
    %v2315 = vmul.f32 %v2314, 1.442695
    %v2316 = vpow.pop %v2315
    %v2317 = vadd.f32 %v2316, 1.0
    %v2318 = vrcp.pop %v2317
    %v2319 = vmul.f32 %v2317, %v2318
    %v2320 = vsub.f32 1.0, %v2319
    %v2321 = vmul.f32 %v2318, %v2320
    %v2322 = vadd.f32 %v2318, %v2321
    %vm2323 = vweird.f32 %v2317
    %vm2324 = vweird.f32 %v2318
    %vm2325 = vmor %vm2323, %vm2324
    %v2326 = vsel %vm2325, %v2318, %v2322
    %v2327 = vand.u32 2147483647, %v2317
    %vm2328 = vcmp.eq.f32.partialorder %v2327, 8.507059e+37
    %v2329 = vand.u32 %v2317, 2147483648
    %v2330 = vor.u32 1.1754944e-38, %v2329
    %v2331 = vsel %vm2328, %v2330, %v2326
    %v2332 = vmul.f32 1.0, %v2331
    %v2334 = vrot.slane %v2140, 6
    %v2336 = vmul.f32 %v2312, %v2334
    %2338 = vrot.lane.b32.xlu0 %v2313, 64
    %v2339 = vpop.permute.xlu0 %2338
    %v2341 = vmul.f32 %v2293, %v2339
    %2343 = vrot.lane.b32.xlu0 %v2341, 32
    %v2344 = vpop.permute.xlu0 %2343
    %v2346 = vadd.f32 %v2336, %v2344
    %v2347 = vtanh.pop %v2346
    %2349 = vrot.lane.b32.xlu0 %v2347, 64
    %v2350 = vpop.permute.xlu0 %2349
    %v2352 = vmul.f32 %v2332, %v2350
    %2354 = vrot.lane.b32.xlu0 %v2352, 32
    %v2355 = vpop.permute.xlu0 %2354
    %2357 = vst.msk [vmem:[#allocation2] sm:$0xc0] %vm846, %v2355
    %v2358 = vld [vmem:[#allocation11] sm:$0xff]
    %v2359 = vld [vmem:[#allocation11 + $0x8] sm:$0xff]
    %v2360 = vld [vmem:[#allocation11 + $0x10] sm:$0xff]
    %v2361 = vld [vmem:[#allocation11 + $0x18] sm:$0xff]
    %v2362 = vrot.slane %v2352, 6
    %2363 = vrot.lane.b32.xlu0 %v2362, 32
    %v2364 = vpop.permute.xlu0 %2363
    %v2365 = vsel %vm158, %v2364, 0
    %2367 = vmatpush.msra.mxu0 0.0
    %2368 = vmatpush.msra.mxu0 0.0
    %2369 = vmatpush.msra.mxu0 0.0
    %2370 = vmatpush.msra.mxu0 0.0
    %2371 = vmatpush.msra.mxu0 0.0
    %2372 = vmatpush.msra.mxu0 0.0
    %2373 = vmatpush.msra.mxu0 0.0
    %2374 = vmatpush.msra.mxu0 0.0
    %2375 = vmatpush.msra.mxu0 0.0
    %2376 = vmatpush.msra.mxu0 0.0
    %2377 = vmatpush.msra.mxu0 0.0
    %2378 = vmatpush.msra.mxu0 0.0
    %2379 = vmatpush.msra.mxu0 %v2361
    %2380 = vmatpush.msra.mxu0 %v2360
    %2381 = vmatpush.msra.mxu0 %v2359
    %2382 = vmatpush.msra.mxu0 %v2358
    %2383 = vmatmul.f32.gmra.mxu0 %v2365
    %v2384 = vpop.f32.mrf.mxu0
    %v2385 = vadd.f32 0.0, %v2384
    %2386 = vdwg.mxu0
    %v2387 = vadd.f32 %v1700, %v2385
    %v2388 = vld [vmem:[%s1768] sm:$0xff]
    %v2389 = vld [vmem:[%s1768 + $0x8] sm:$0xff]
    %v2390 = vld [vmem:[%s1768 + $0x10] sm:$0xff]
    %v2391 = vld [vmem:[%s1768 + $0x18] sm:$0xff]
    %2392 = vmatpush.msra.mxu0 0.0
    %2393 = vmatpush.msra.mxu0 0.0
    %2394 = vmatpush.msra.mxu0 0.0
    %2395 = vmatpush.msra.mxu0 0.0
    %2396 = vmatpush.msra.mxu0 0.0
    %2397 = vmatpush.msra.mxu0 0.0
    %2398 = vmatpush.msra.mxu0 0.0
    %2399 = vmatpush.msra.mxu0 0.0
    %2400 = vmatpush.msra.mxu0 0.0
    %2401 = vmatpush.msra.mxu0 0.0
    %2402 = vmatpush.msra.mxu0 0.0
    %2403 = vmatpush.msra.mxu0 0.0
    %2404 = vmatpush.msra.mxu0 %v2391
    %2405 = vmatpush.msra.mxu0 %v2390
    %2406 = vmatpush.msra.mxu0 %v2389
    %2407 = vmatpush.msra.mxu0 %v2388
    %2408 = vmatmul.f32.gmra.mxu0 %v2365
    %v2409 = vpop.f32.mrf.mxu0
    %v2410 = vadd.f32 0.0, %v2409
    %2411 = vdwg.mxu0
    %2413 = vrot.lane.b32.xlu0 %v2410, 32
    %v2414 = vpop.permute.xlu0 %2413
    %v2416 = vadd.f32 %v1700, %v2414
    %v2417 = vld [vmem:[%s1799] sm:$0xff]
    %v2418 = vld [vmem:[%s1799 + $0x8] sm:$0xff]
    %v2419 = vld [vmem:[%s1799 + $0x10] sm:$0xff]
    %v2420 = vld [vmem:[%s1799 + $0x18] sm:$0xff]
    %2421 = vmatpush.msra.mxu0 0.0
    %2422 = vmatpush.msra.mxu0 0.0
    %2423 = vmatpush.msra.mxu0 0.0
    %2424 = vmatpush.msra.mxu0 0.0
    %2425 = vmatpush.msra.mxu0 0.0
    %2426 = vmatpush.msra.mxu0 0.0
    %2427 = vmatpush.msra.mxu0 0.0
    %2428 = vmatpush.msra.mxu0 0.0
    %2429 = vmatpush.msra.mxu0 0.0
    %2430 = vmatpush.msra.mxu0 0.0
    %2431 = vmatpush.msra.mxu0 0.0
    %2432 = vmatpush.msra.mxu0 0.0
    %2433 = vmatpush.msra.mxu0 %v2420
    %2434 = vmatpush.msra.mxu0 %v2419
    %2435 = vmatpush.msra.mxu0 %v2418
    %2436 = vmatpush.msra.mxu0 %v2417
    %2437 = vmatmul.f32.gmra.mxu0 %v2365
    %v2438 = vpop.f32.mrf.mxu0
    %v2439 = vadd.f32 0.0, %v2438
    %2440 = vdwg.mxu0
    %2442 = vrot.lane.b32.xlu0 %v2439, 64
    %v2443 = vpop.permute.xlu0 %2442
    %v2445 = vadd.f32 %v1700, %v2443
    %v2446 = vld [vmem:[%s1830] sm:$0xff]
    %v2447 = vld [vmem:[%s1830 + $0x8] sm:$0xff]
    %v2448 = vld [vmem:[%s1830 + $0x10] sm:$0xff]
    %v2449 = vld [vmem:[%s1830 + $0x18] sm:$0xff]
    %2450 = vmatpush.msra.mxu0 0.0
    %2451 = vmatpush.msra.mxu0 0.0
    %2452 = vmatpush.msra.mxu0 0.0
    %2453 = vmatpush.msra.mxu0 0.0
    %2454 = vmatpush.msra.mxu0 0.0
    %2455 = vmatpush.msra.mxu0 0.0
    %2456 = vmatpush.msra.mxu0 0.0
    %2457 = vmatpush.msra.mxu0 0.0
    %2458 = vmatpush.msra.mxu0 0.0
    %2459 = vmatpush.msra.mxu0 0.0
    %2460 = vmatpush.msra.mxu0 0.0
    %2461 = vmatpush.msra.mxu0 0.0
    %2462 = vmatpush.msra.mxu0 %v2449
    %2463 = vmatpush.msra.mxu0 %v2448
    %2464 = vmatpush.msra.mxu0 %v2447
    %2465 = vmatpush.msra.mxu0 %v2446
    %2466 = vmatmul.f32.gmra.mxu0 %v2365
    %v2467 = vpop.f32.mrf.mxu0
    %v2468 = vadd.f32 0.0, %v2467
    %2469 = vdwg.mxu0
    %2471 = vrot.lane.b32.xlu0 %v2468, 96
    %v2472 = vpop.permute.xlu0 %2471
    %v2474 = vadd.f32 %v1700, %v2472
    %v2475 = vxor.u32 %v2387, 2147483648
    %v2476 = vmul.f32 %v2475, 1.442695
    %v2477 = vpow.pop %v2476
    %v2478 = vadd.f32 %v2477, 1.0
    %v2479 = vrcp.pop %v2478
    %v2480 = vmul.f32 %v2478, %v2479
    %v2481 = vsub.f32 1.0, %v2480
    %v2482 = vmul.f32 %v2479, %v2481
    %v2483 = vadd.f32 %v2479, %v2482
    %vm2484 = vweird.f32 %v2478
    %vm2485 = vweird.f32 %v2479
    %vm2486 = vmor %vm2484, %vm2485
    %v2487 = vsel %vm2486, %v2479, %v2483
    %v2488 = vand.u32 2147483647, %v2478
    %vm2489 = vcmp.eq.f32.partialorder %v2488, 8.507059e+37
    %v2490 = vand.u32 %v2478, 2147483648
    %v2491 = vor.u32 1.1754944e-38, %v2490
    %v2492 = vsel %vm2489, %v2491, %v2487
    %v2493 = vmul.f32 1.0, %v2492
    %v2494 = vxor.u32 %v2416, 2147483648
    %v2495 = vmul.f32 %v2494, 1.442695
    %v2496 = vpow.pop %v2495
    %v2497 = vadd.f32 %v2496, 1.0
    %v2498 = vrcp.pop %v2497
    %v2499 = vmul.f32 %v2497, %v2498
    %v2500 = vsub.f32 1.0, %v2499
    %v2501 = vmul.f32 %v2498, %v2500
    %v2502 = vadd.f32 %v2498, %v2501
    %vm2503 = vweird.f32 %v2497
    %vm2504 = vweird.f32 %v2498
    %vm2505 = vmor %vm2503, %vm2504
    %v2506 = vsel %vm2505, %v2498, %v2502
    %v2507 = vand.u32 2147483647, %v2497
    %vm2508 = vcmp.eq.f32.partialorder %v2507, 8.507059e+37
    %v2509 = vand.u32 %v2497, 2147483648
    %v2510 = vor.u32 1.1754944e-38, %v2509
    %v2511 = vsel %vm2508, %v2510, %v2506
    %v2512 = vmul.f32 1.0, %v2511
    %v2513 = vtanh.pop %v2445
    %v2514 = vxor.u32 %v2474, 2147483648
    %v2515 = vmul.f32 %v2514, 1.442695
    %v2516 = vpow.pop %v2515
    %v2517 = vadd.f32 %v2516, 1.0
    %v2518 = vrcp.pop %v2517
    %v2519 = vmul.f32 %v2517, %v2518
    %v2520 = vsub.f32 1.0, %v2519
    %v2521 = vmul.f32 %v2518, %v2520
    %v2522 = vadd.f32 %v2518, %v2521
    %vm2523 = vweird.f32 %v2517
    %vm2524 = vweird.f32 %v2518
    %vm2525 = vmor %vm2523, %vm2524
    %v2526 = vsel %vm2525, %v2518, %v2522
    %v2527 = vand.u32 2147483647, %v2517
    %vm2528 = vcmp.eq.f32.partialorder %v2527, 8.507059e+37
    %v2529 = vand.u32 %v2517, 2147483648
    %v2530 = vor.u32 1.1754944e-38, %v2529
    %v2531 = vsel %vm2528, %v2530, %v2526
    %v2532 = vmul.f32 1.0, %v2531
    %v2534 = vrot.slane %v2346, 6
    %v2536 = vmul.f32 %v2512, %v2534
    %2538 = vrot.lane.b32.xlu0 %v2513, 64
    %v2539 = vpop.permute.xlu0 %2538
    %v2541 = vmul.f32 %v2493, %v2539
    %2543 = vrot.lane.b32.xlu0 %v2541, 32
    %v2544 = vpop.permute.xlu0 %2543
    %v2546 = vadd.f32 %v2536, %v2544
    %v2547 = vtanh.pop %v2546
    %2549 = vrot.lane.b32.xlu0 %v2547, 64
    %v2550 = vpop.permute.xlu0 %2549
    %v2552 = vmul.f32 %v2532, %v2550
    %2554 = vrot.lane.b32.xlu0 %v2552, 32
    %v2555 = vpop.permute.xlu0 %2554
    %2557 = vst.msk [vmem:[#allocation2 + $0x8] sm:$0x3] %vm223, %v2555
    %v2558 = vld [vmem:[#allocation11] sm:$0xff]
    %v2559 = vld [vmem:[#allocation11 + $0x8] sm:$0xff]
    %v2560 = vld [vmem:[#allocation11 + $0x10] sm:$0xff]
    %v2561 = vld [vmem:[#allocation11 + $0x18] sm:$0xff]
    %v2562 = vsel %vm158, %v2555, 0
    %2564 = vmatpush.msra.mxu0 0.0
    %2565 = vmatpush.msra.mxu0 0.0
    %2566 = vmatpush.msra.mxu0 0.0
    %2567 = vmatpush.msra.mxu0 0.0
    %2568 = vmatpush.msra.mxu0 0.0
    %2569 = vmatpush.msra.mxu0 0.0
    %2570 = vmatpush.msra.mxu0 0.0
    %2571 = vmatpush.msra.mxu0 0.0
    %2572 = vmatpush.msra.mxu0 0.0
    %2573 = vmatpush.msra.mxu0 0.0
    %2574 = vmatpush.msra.mxu0 0.0
    %2575 = vmatpush.msra.mxu0 0.0
    %2576 = vmatpush.msra.mxu0 %v2561
    %2577 = vmatpush.msra.mxu0 %v2560
    %2578 = vmatpush.msra.mxu0 %v2559
    %2579 = vmatpush.msra.mxu0 %v2558
    %2580 = vmatmul.f32.gmra.mxu0 %v2562
    %v2581 = vpop.f32.mrf.mxu0
    %v2582 = vadd.f32 0.0, %v2581
    %2583 = vdwg.mxu0
    %v2585 = vrot.slane %v2582, 6
    %v2587 = vadd.f32 %v1700, %v2585
    %v2588 = vld [vmem:[%s1768] sm:$0xff]
    %v2589 = vld [vmem:[%s1768 + $0x8] sm:$0xff]
    %v2590 = vld [vmem:[%s1768 + $0x10] sm:$0xff]
    %v2591 = vld [vmem:[%s1768 + $0x18] sm:$0xff]
    %2592 = vmatpush.msra.mxu0 0.0
    %2593 = vmatpush.msra.mxu0 0.0
    %2594 = vmatpush.msra.mxu0 0.0
    %2595 = vmatpush.msra.mxu0 0.0
    %2596 = vmatpush.msra.mxu0 0.0
    %2597 = vmatpush.msra.mxu0 0.0
    %2598 = vmatpush.msra.mxu0 0.0
    %2599 = vmatpush.msra.mxu0 0.0
    %2600 = vmatpush.msra.mxu0 0.0
    %2601 = vmatpush.msra.mxu0 0.0
    %2602 = vmatpush.msra.mxu0 0.0
    %2603 = vmatpush.msra.mxu0 0.0
    %2604 = vmatpush.msra.mxu0 %v2591
    %2605 = vmatpush.msra.mxu0 %v2590
    %2606 = vmatpush.msra.mxu0 %v2589
    %2607 = vmatpush.msra.mxu0 %v2588
    %2608 = vmatmul.f32.gmra.mxu0 %v2562
    %v2609 = vpop.f32.mrf.mxu0
    %v2610 = vadd.f32 0.0, %v2609
    %2611 = vdwg.mxu0
    %v2613 = vrot.slane %v2610, 6
    %2614 = vrot.lane.b32.xlu0 %v2613, 32
    %v2615 = vpop.permute.xlu0 %2614
    %v2617 = vadd.f32 %v1700, %v2615
    %v2618 = vld [vmem:[%s1799] sm:$0xff]
    %v2619 = vld [vmem:[%s1799 + $0x8] sm:$0xff]
    %v2620 = vld [vmem:[%s1799 + $0x10] sm:$0xff]
    %v2621 = vld [vmem:[%s1799 + $0x18] sm:$0xff]
    %2622 = vmatpush.msra.mxu0 0.0
    %2623 = vmatpush.msra.mxu0 0.0
    %2624 = vmatpush.msra.mxu0 0.0
    %2625 = vmatpush.msra.mxu0 0.0
    %2626 = vmatpush.msra.mxu0 0.0
    %2627 = vmatpush.msra.mxu0 0.0
    %2628 = vmatpush.msra.mxu0 0.0
    %2629 = vmatpush.msra.mxu0 0.0
    %2630 = vmatpush.msra.mxu0 0.0
    %2631 = vmatpush.msra.mxu0 0.0
    %2632 = vmatpush.msra.mxu0 0.0
    %2633 = vmatpush.msra.mxu0 0.0
    %2634 = vmatpush.msra.mxu0 %v2621
    %2635 = vmatpush.msra.mxu0 %v2620
    %2636 = vmatpush.msra.mxu0 %v2619
    %2637 = vmatpush.msra.mxu0 %v2618
    %2638 = vmatmul.f32.gmra.mxu0 %v2562
    %v2639 = vpop.f32.mrf.mxu0
    %v2640 = vadd.f32 0.0, %v2639
    %2641 = vdwg.mxu0
    %v2643 = vrot.slane %v2640, 6
    %2644 = vrot.lane.b32.xlu0 %v2643, 64
    %v2645 = vpop.permute.xlu0 %2644
    %v2647 = vadd.f32 %v1700, %v2645
    %v2648 = vld [vmem:[%s1830] sm:$0xff]
    %v2649 = vld [vmem:[%s1830 + $0x8] sm:$0xff]
    %v2650 = vld [vmem:[%s1830 + $0x10] sm:$0xff]
    %v2651 = vld [vmem:[%s1830 + $0x18] sm:$0xff]
    %2652 = vmatpush.msra.mxu0 0.0
    %2653 = vmatpush.msra.mxu0 0.0
    %2654 = vmatpush.msra.mxu0 0.0
    %2655 = vmatpush.msra.mxu0 0.0
    %2656 = vmatpush.msra.mxu0 0.0
    %2657 = vmatpush.msra.mxu0 0.0
    %2658 = vmatpush.msra.mxu0 0.0
    %2659 = vmatpush.msra.mxu0 0.0
    %2660 = vmatpush.msra.mxu0 0.0
    %2661 = vmatpush.msra.mxu0 0.0
    %2662 = vmatpush.msra.mxu0 0.0
    %2663 = vmatpush.msra.mxu0 0.0
    %2664 = vmatpush.msra.mxu0 %v2651
    %2665 = vmatpush.msra.mxu0 %v2650
    %2666 = vmatpush.msra.mxu0 %v2649
    %2667 = vmatpush.msra.mxu0 %v2648
    %2668 = vmatmul.f32.gmra.mxu0 %v2562
    %v2669 = vpop.f32.mrf.mxu0
    %v2670 = vadd.f32 0.0, %v2669
    %2671 = vdwg.mxu0
    %v2673 = vrot.slane %v2670, 6
    %2674 = vrot.lane.b32.xlu0 %v2673, 96
    %v2675 = vpop.permute.xlu0 %2674
    %v2677 = vadd.f32 %v1700, %v2675
    %v2678 = vxor.u32 %v2587, 2147483648
    %v2679 = vmul.f32 %v2678, 1.442695
    %v2680 = vpow.pop %v2679
    %v2681 = vadd.f32 %v2680, 1.0
    %v2682 = vrcp.pop %v2681
    %v2683 = vmul.f32 %v2681, %v2682
    %v2684 = vsub.f32 1.0, %v2683
    %v2685 = vmul.f32 %v2682, %v2684
    %v2686 = vadd.f32 %v2682, %v2685
    %vm2687 = vweird.f32 %v2681
    %vm2688 = vweird.f32 %v2682
    %vm2689 = vmor %vm2687, %vm2688
    %v2690 = vsel %vm2689, %v2682, %v2686
    %v2691 = vand.u32 2147483647, %v2681
    %vm2692 = vcmp.eq.f32.partialorder %v2691, 8.507059e+37
    %v2693 = vand.u32 %v2681, 2147483648
    %v2694 = vor.u32 1.1754944e-38, %v2693
    %v2695 = vsel %vm2692, %v2694, %v2690
    %v2696 = vmul.f32 1.0, %v2695
    %v2697 = vxor.u32 %v2617, 2147483648
    %v2698 = vmul.f32 %v2697, 1.442695
    %v2699 = vpow.pop %v2698
    %v2700 = vadd.f32 %v2699, 1.0
    %v2701 = vrcp.pop %v2700
    %v2702 = vmul.f32 %v2700, %v2701
    %v2703 = vsub.f32 1.0, %v2702
    %v2704 = vmul.f32 %v2701, %v2703
    %v2705 = vadd.f32 %v2701, %v2704
    %vm2706 = vweird.f32 %v2700
    %vm2707 = vweird.f32 %v2701
    %vm2708 = vmor %vm2706, %vm2707
    %v2709 = vsel %vm2708, %v2701, %v2705
    %v2710 = vand.u32 2147483647, %v2700
    %vm2711 = vcmp.eq.f32.partialorder %v2710, 8.507059e+37
    %v2712 = vand.u32 %v2700, 2147483648
    %v2713 = vor.u32 1.1754944e-38, %v2712
    %v2714 = vsel %vm2711, %v2713, %v2709
    %v2715 = vmul.f32 1.0, %v2714
    %v2716 = vtanh.pop %v2647
    %v2717 = vxor.u32 %v2677, 2147483648
    %v2718 = vmul.f32 %v2717, 1.442695
    %v2719 = vpow.pop %v2718
    %v2720 = vadd.f32 %v2719, 1.0
    %v2721 = vrcp.pop %v2720
    %v2722 = vmul.f32 %v2720, %v2721
    %v2723 = vsub.f32 1.0, %v2722
    %v2724 = vmul.f32 %v2721, %v2723
    %v2725 = vadd.f32 %v2721, %v2724
    %vm2726 = vweird.f32 %v2720
    %vm2727 = vweird.f32 %v2721
    %vm2728 = vmor %vm2726, %vm2727
    %v2729 = vsel %vm2728, %v2721, %v2725
    %v2730 = vand.u32 2147483647, %v2720
    %vm2731 = vcmp.eq.f32.partialorder %v2730, 8.507059e+37
    %v2732 = vand.u32 %v2720, 2147483648
    %v2733 = vor.u32 1.1754944e-38, %v2732
    %v2734 = vsel %vm2731, %v2733, %v2729
    %v2735 = vmul.f32 1.0, %v2734
    %v2737 = vrot.slane %v2546, 6
    %v2739 = vmul.f32 %v2715, %v2737
    %2741 = vrot.lane.b32.xlu0 %v2716, 64
    %v2742 = vpop.permute.xlu0 %2741
    %v2744 = vmul.f32 %v2696, %v2742
    %2746 = vrot.lane.b32.xlu0 %v2744, 32
    %v2747 = vpop.permute.xlu0 %2746
    %v2749 = vadd.f32 %v2739, %v2747
    %v2750 = vtanh.pop %v2749
    %2752 = vrot.lane.b32.xlu0 %v2750, 64
    %v2753 = vpop.permute.xlu0 %2752
    %v2755 = vmul.f32 %v2735, %v2753
    %2757 = vrot.lane.b32.xlu0 %v2755, 32
    %v2758 = vpop.permute.xlu0 %2757
    %2760 = vst.msk [vmem:[#allocation2 + $0x8] sm:$0xc] %vm432, %v2758
    %v2761 = vld [vmem:[#allocation11] sm:$0xff]
    %v2762 = vld [vmem:[#allocation11 + $0x8] sm:$0xff]
    %v2763 = vld [vmem:[#allocation11 + $0x10] sm:$0xff]
    %v2764 = vld [vmem:[#allocation11 + $0x18] sm:$0xff]
    %v2765 = vrot.slane %v2755, 2
    %2766 = vrot.lane.b32.xlu0 %v2765, 32
    %v2767 = vpop.permute.xlu0 %2766
    %v2768 = vsel %vm158, %v2767, 0
    %2770 = vmatpush.msra.mxu0 0.0
    %2771 = vmatpush.msra.mxu0 0.0
    %2772 = vmatpush.msra.mxu0 0.0
    %2773 = vmatpush.msra.mxu0 0.0
    %2774 = vmatpush.msra.mxu0 0.0
    %2775 = vmatpush.msra.mxu0 0.0
    %2776 = vmatpush.msra.mxu0 0.0
    %2777 = vmatpush.msra.mxu0 0.0
    %2778 = vmatpush.msra.mxu0 0.0
    %2779 = vmatpush.msra.mxu0 0.0
    %2780 = vmatpush.msra.mxu0 0.0
    %2781 = vmatpush.msra.mxu0 0.0
    %2782 = vmatpush.msra.mxu0 %v2764
    %2783 = vmatpush.msra.mxu0 %v2763
    %2784 = vmatpush.msra.mxu0 %v2762
    %2785 = vmatpush.msra.mxu0 %v2761
    %2786 = vmatmul.f32.gmra.mxu0 %v2768
    %v2787 = vpop.f32.mrf.mxu0
    %v2788 = vadd.f32 0.0, %v2787
    %2789 = vdwg.mxu0
    %v2791 = vrot.slane %v2788, 4
    %v2793 = vadd.f32 %v1700, %v2791
    %v2794 = vld [vmem:[%s1768] sm:$0xff]
    %v2795 = vld [vmem:[%s1768 + $0x8] sm:$0xff]
    %v2796 = vld [vmem:[%s1768 + $0x10] sm:$0xff]
    %v2797 = vld [vmem:[%s1768 + $0x18] sm:$0xff]
    %2798 = vmatpush.msra.mxu0 0.0
    %2799 = vmatpush.msra.mxu0 0.0
    %2800 = vmatpush.msra.mxu0 0.0
    %2801 = vmatpush.msra.mxu0 0.0
    %2802 = vmatpush.msra.mxu0 0.0
    %2803 = vmatpush.msra.mxu0 0.0
    %2804 = vmatpush.msra.mxu0 0.0
    %2805 = vmatpush.msra.mxu0 0.0
    %2806 = vmatpush.msra.mxu0 0.0
    %2807 = vmatpush.msra.mxu0 0.0
    %2808 = vmatpush.msra.mxu0 0.0
    %2809 = vmatpush.msra.mxu0 0.0
    %2810 = vmatpush.msra.mxu0 %v2797
    %2811 = vmatpush.msra.mxu0 %v2796
    %2812 = vmatpush.msra.mxu0 %v2795
    %2813 = vmatpush.msra.mxu0 %v2794
    %2814 = vmatmul.f32.gmra.mxu0 %v2768
    %v2815 = vpop.f32.mrf.mxu0
    %v2816 = vadd.f32 0.0, %v2815
    %2817 = vdwg.mxu0
    %v2819 = vrot.slane %v2816, 4
    %2820 = vrot.lane.b32.xlu0 %v2819, 32
    %v2821 = vpop.permute.xlu0 %2820
    %v2823 = vadd.f32 %v1700, %v2821
    %v2824 = vld [vmem:[%s1799] sm:$0xff]
    %v2825 = vld [vmem:[%s1799 + $0x8] sm:$0xff]
    %v2826 = vld [vmem:[%s1799 + $0x10] sm:$0xff]
    %v2827 = vld [vmem:[%s1799 + $0x18] sm:$0xff]
    %2828 = vmatpush.msra.mxu0 0.0
    %2829 = vmatpush.msra.mxu0 0.0
    %2830 = vmatpush.msra.mxu0 0.0
    %2831 = vmatpush.msra.mxu0 0.0
    %2832 = vmatpush.msra.mxu0 0.0
    %2833 = vmatpush.msra.mxu0 0.0
    %2834 = vmatpush.msra.mxu0 0.0
    %2835 = vmatpush.msra.mxu0 0.0
    %2836 = vmatpush.msra.mxu0 0.0
    %2837 = vmatpush.msra.mxu0 0.0
    %2838 = vmatpush.msra.mxu0 0.0
    %2839 = vmatpush.msra.mxu0 0.0
    %2840 = vmatpush.msra.mxu0 %v2827
    %2841 = vmatpush.msra.mxu0 %v2826
    %2842 = vmatpush.msra.mxu0 %v2825
    %2843 = vmatpush.msra.mxu0 %v2824
    %2844 = vmatmul.f32.gmra.mxu0 %v2768
    %v2845 = vpop.f32.mrf.mxu0
    %v2846 = vadd.f32 0.0, %v2845
    %2847 = vdwg.mxu0
    %v2849 = vrot.slane %v2846, 4
    %2850 = vrot.lane.b32.xlu0 %v2849, 64
    %v2851 = vpop.permute.xlu0 %2850
    %v2853 = vadd.f32 %v1700, %v2851
    %v2854 = vld [vmem:[%s1830] sm:$0xff]
    %v2855 = vld [vmem:[%s1830 + $0x8] sm:$0xff]
    %v2856 = vld [vmem:[%s1830 + $0x10] sm:$0xff]
    %v2857 = vld [vmem:[%s1830 + $0x18] sm:$0xff]
    %2858 = vmatpush.msra.mxu0 0.0
    %2859 = vmatpush.msra.mxu0 0.0
    %2860 = vmatpush.msra.mxu0 0.0
    %2861 = vmatpush.msra.mxu0 0.0
    %2862 = vmatpush.msra.mxu0 0.0
    %2863 = vmatpush.msra.mxu0 0.0
    %2864 = vmatpush.msra.mxu0 0.0
    %2865 = vmatpush.msra.mxu0 0.0
    %2866 = vmatpush.msra.mxu0 0.0
    %2867 = vmatpush.msra.mxu0 0.0
    %2868 = vmatpush.msra.mxu0 0.0
    %2869 = vmatpush.msra.mxu0 0.0
    %2870 = vmatpush.msra.mxu0 %v2857
    %2871 = vmatpush.msra.mxu0 %v2856
    %2872 = vmatpush.msra.mxu0 %v2855
    %2873 = vmatpush.msra.mxu0 %v2854
    %2874 = vmatmul.f32.gmra.mxu0 %v2768
    %v2875 = vpop.f32.mrf.mxu0
    %v2876 = vadd.f32 0.0, %v2875
    %2877 = vdwg.mxu0
    %v2879 = vrot.slane %v2876, 4
    %2880 = vrot.lane.b32.xlu0 %v2879, 96
    %v2881 = vpop.permute.xlu0 %2880
    %v2883 = vadd.f32 %v1700, %v2881
    %v2884 = vxor.u32 %v2793, 2147483648
    %v2885 = vmul.f32 %v2884, 1.442695
    %v2886 = vpow.pop %v2885
    %v2887 = vadd.f32 %v2886, 1.0
    %v2888 = vrcp.pop %v2887
    %v2889 = vmul.f32 %v2887, %v2888
    %v2890 = vsub.f32 1.0, %v2889
    %v2891 = vmul.f32 %v2888, %v2890
    %v2892 = vadd.f32 %v2888, %v2891
    %vm2893 = vweird.f32 %v2887
    %vm2894 = vweird.f32 %v2888
    %vm2895 = vmor %vm2893, %vm2894
    %v2896 = vsel %vm2895, %v2888, %v2892
    %v2897 = vand.u32 2147483647, %v2887
    %vm2898 = vcmp.eq.f32.partialorder %v2897, 8.507059e+37
    %v2899 = vand.u32 %v2887, 2147483648
    %v2900 = vor.u32 1.1754944e-38, %v2899
    %v2901 = vsel %vm2898, %v2900, %v2896
    %v2902 = vmul.f32 1.0, %v2901
    %v2903 = vxor.u32 %v2823, 2147483648
    %v2904 = vmul.f32 %v2903, 1.442695
    %v2905 = vpow.pop %v2904
    %v2906 = vadd.f32 %v2905, 1.0
    %v2907 = vrcp.pop %v2906
    %v2908 = vmul.f32 %v2906, %v2907
    %v2909 = vsub.f32 1.0, %v2908
    %v2910 = vmul.f32 %v2907, %v2909
    %v2911 = vadd.f32 %v2907, %v2910
    %vm2912 = vweird.f32 %v2906
    %vm2913 = vweird.f32 %v2907
    %vm2914 = vmor %vm2912, %vm2913
    %v2915 = vsel %vm2914, %v2907, %v2911
    %v2916 = vand.u32 2147483647, %v2906
    %vm2917 = vcmp.eq.f32.partialorder %v2916, 8.507059e+37
    %v2918 = vand.u32 %v2906, 2147483648
    %v2919 = vor.u32 1.1754944e-38, %v2918
    %v2920 = vsel %vm2917, %v2919, %v2915
    %v2921 = vmul.f32 1.0, %v2920
    %v2922 = vtanh.pop %v2853
    %v2923 = vxor.u32 %v2883, 2147483648
    %v2924 = vmul.f32 %v2923, 1.442695
    %v2925 = vpow.pop %v2924
    %v2926 = vadd.f32 %v2925, 1.0
    %v2927 = vrcp.pop %v2926
    %v2928 = vmul.f32 %v2926, %v2927
    %v2929 = vsub.f32 1.0, %v2928
    %v2930 = vmul.f32 %v2927, %v2929
    %v2931 = vadd.f32 %v2927, %v2930
    %vm2932 = vweird.f32 %v2926
    %vm2933 = vweird.f32 %v2927
    %vm2934 = vmor %vm2932, %vm2933
    %v2935 = vsel %vm2934, %v2927, %v2931
    %v2936 = vand.u32 2147483647, %v2926
    %vm2937 = vcmp.eq.f32.partialorder %v2936, 8.507059e+37
    %v2938 = vand.u32 %v2926, 2147483648
    %v2939 = vor.u32 1.1754944e-38, %v2938
    %v2940 = vsel %vm2937, %v2939, %v2935
    %v2941 = vmul.f32 1.0, %v2940
    %v2943 = vrot.slane %v2749, 6
    %v2945 = vmul.f32 %v2921, %v2943
    %2947 = vrot.lane.b32.xlu0 %v2922, 64
    %v2948 = vpop.permute.xlu0 %2947
    %v2950 = vmul.f32 %v2902, %v2948
    %2952 = vrot.lane.b32.xlu0 %v2950, 32
    %v2953 = vpop.permute.xlu0 %2952
    %v2955 = vadd.f32 %v2945, %v2953
    %v2956 = vtanh.pop %v2955
    %2958 = vrot.lane.b32.xlu0 %v2956, 64
    %v2959 = vpop.permute.xlu0 %2958
    %v2961 = vmul.f32 %v2941, %v2959
    %2963 = vrot.lane.b32.xlu0 %v2961, 32
    %v2964 = vpop.permute.xlu0 %2963
    %2966 = vst.msk [vmem:[#allocation2 + $0x8] sm:$0x30] %vm639, %v2964
    %v2967 = vld [vmem:[#allocation11] sm:$0xff]
    %v2968 = vld [vmem:[#allocation11 + $0x8] sm:$0xff]
    %v2969 = vld [vmem:[#allocation11 + $0x10] sm:$0xff]
    %v2970 = vld [vmem:[#allocation11 + $0x18] sm:$0xff]
    %v2971 = vrot.slane %v2961, 4
    %2972 = vrot.lane.b32.xlu0 %v2971, 32
    %v2973 = vpop.permute.xlu0 %2972
    %v2974 = vsel %vm158, %v2973, 0
    %2976 = vmatpush.msra.mxu0 0.0
    %2977 = vmatpush.msra.mxu0 0.0
    %2978 = vmatpush.msra.mxu0 0.0
    %2979 = vmatpush.msra.mxu0 0.0
    %2980 = vmatpush.msra.mxu0 0.0
    %2981 = vmatpush.msra.mxu0 0.0
    %2982 = vmatpush.msra.mxu0 0.0
    %2983 = vmatpush.msra.mxu0 0.0
    %2984 = vmatpush.msra.mxu0 0.0
    %2985 = vmatpush.msra.mxu0 0.0
    %2986 = vmatpush.msra.mxu0 0.0
    %2987 = vmatpush.msra.mxu0 0.0
    %2988 = vmatpush.msra.mxu0 %v2970
    %2989 = vmatpush.msra.mxu0 %v2969
    %2990 = vmatpush.msra.mxu0 %v2968
    %2991 = vmatpush.msra.mxu0 %v2967
    %2992 = vmatmul.f32.gmra.mxu0 %v2974
    %v2993 = vpop.f32.mrf.mxu0
    %v2994 = vadd.f32 0.0, %v2993
    %2995 = vdwg.mxu0
    %v2997 = vrot.slane %v2994, 2
    %v2999 = vadd.f32 %v1700, %v2997
    %v3000 = vld [vmem:[%s1768] sm:$0xff]
    %v3001 = vld [vmem:[%s1768 + $0x8] sm:$0xff]
    %v3002 = vld [vmem:[%s1768 + $0x10] sm:$0xff]
    %v3003 = vld [vmem:[%s1768 + $0x18] sm:$0xff]
    %3004 = vmatpush.msra.mxu0 0.0
    %3005 = vmatpush.msra.mxu0 0.0
    %3006 = vmatpush.msra.mxu0 0.0
    %3007 = vmatpush.msra.mxu0 0.0
    %3008 = vmatpush.msra.mxu0 0.0
    %3009 = vmatpush.msra.mxu0 0.0
    %3010 = vmatpush.msra.mxu0 0.0
    %3011 = vmatpush.msra.mxu0 0.0
    %3012 = vmatpush.msra.mxu0 0.0
    %3013 = vmatpush.msra.mxu0 0.0
    %3014 = vmatpush.msra.mxu0 0.0
    %3015 = vmatpush.msra.mxu0 0.0
    %3016 = vmatpush.msra.mxu0 %v3003
    %3017 = vmatpush.msra.mxu0 %v3002
    %3018 = vmatpush.msra.mxu0 %v3001
    %3019 = vmatpush.msra.mxu0 %v3000
    %3020 = vmatmul.f32.gmra.mxu0 %v2974
    %v3021 = vpop.f32.mrf.mxu0
    %v3022 = vadd.f32 0.0, %v3021
    %3023 = vdwg.mxu0
    %v3025 = vrot.slane %v3022, 2
    %3026 = vrot.lane.b32.xlu0 %v3025, 32
    %v3027 = vpop.permute.xlu0 %3026
    %v3029 = vadd.f32 %v1700, %v3027
    %v3030 = vld [vmem:[%s1799] sm:$0xff]
    %v3031 = vld [vmem:[%s1799 + $0x8] sm:$0xff]
    %v3032 = vld [vmem:[%s1799 + $0x10] sm:$0xff]
    %v3033 = vld [vmem:[%s1799 + $0x18] sm:$0xff]
    %3034 = vmatpush.msra.mxu0 0.0
    %3035 = vmatpush.msra.mxu0 0.0
    %3036 = vmatpush.msra.mxu0 0.0
    %3037 = vmatpush.msra.mxu0 0.0
    %3038 = vmatpush.msra.mxu0 0.0
    %3039 = vmatpush.msra.mxu0 0.0
    %3040 = vmatpush.msra.mxu0 0.0
    %3041 = vmatpush.msra.mxu0 0.0
    %3042 = vmatpush.msra.mxu0 0.0
    %3043 = vmatpush.msra.mxu0 0.0
    %3044 = vmatpush.msra.mxu0 0.0
    %3045 = vmatpush.msra.mxu0 0.0
    %3046 = vmatpush.msra.mxu0 %v3033
    %3047 = vmatpush.msra.mxu0 %v3032
    %3048 = vmatpush.msra.mxu0 %v3031
    %3049 = vmatpush.msra.mxu0 %v3030
    %3050 = vmatmul.f32.gmra.mxu0 %v2974
    %v3051 = vpop.f32.mrf.mxu0
    %v3052 = vadd.f32 0.0, %v3051
    %3053 = vdwg.mxu0
    %v3055 = vrot.slane %v3052, 2
    %3056 = vrot.lane.b32.xlu0 %v3055, 64
    %v3057 = vpop.permute.xlu0 %3056
    %v3059 = vadd.f32 %v1700, %v3057
    %v3060 = vld [vmem:[%s1830] sm:$0xff]
    %v3061 = vld [vmem:[%s1830 + $0x8] sm:$0xff]
    %v3062 = vld [vmem:[%s1830 + $0x10] sm:$0xff]
    %v3063 = vld [vmem:[%s1830 + $0x18] sm:$0xff]
    %3064 = vmatpush.msra.mxu0 0.0
    %3065 = vmatpush.msra.mxu0 0.0
    %3066 = vmatpush.msra.mxu0 0.0
    %3067 = vmatpush.msra.mxu0 0.0
    %3068 = vmatpush.msra.mxu0 0.0
    %3069 = vmatpush.msra.mxu0 0.0
    %3070 = vmatpush.msra.mxu0 0.0
    %3071 = vmatpush.msra.mxu0 0.0
    %3072 = vmatpush.msra.mxu0 0.0
    %3073 = vmatpush.msra.mxu0 0.0
    %3074 = vmatpush.msra.mxu0 0.0
    %3075 = vmatpush.msra.mxu0 0.0
    %3076 = vmatpush.msra.mxu0 %v3063
    %3077 = vmatpush.msra.mxu0 %v3062
    %3078 = vmatpush.msra.mxu0 %v3061
    %3079 = vmatpush.msra.mxu0 %v3060
    %3080 = vmatmul.f32.gmra.mxu0 %v2974
    %v3081 = vpop.f32.mrf.mxu0
    %v3082 = vadd.f32 0.0, %v3081
    %3083 = vdwg.mxu0
    %v3085 = vrot.slane %v3082, 2
    %3086 = vrot.lane.b32.xlu0 %v3085, 96
    %v3087 = vpop.permute.xlu0 %3086
    %v3089 = vadd.f32 %v1700, %v3087
    %v3090 = vxor.u32 %v2999, 2147483648
    %v3091 = vmul.f32 %v3090, 1.442695
    %v3092 = vpow.pop %v3091
    %v3093 = vadd.f32 %v3092, 1.0
    %v3094 = vrcp.pop %v3093
    %v3095 = vmul.f32 %v3093, %v3094
    %v3096 = vsub.f32 1.0, %v3095
    %v3097 = vmul.f32 %v3094, %v3096
    %v3098 = vadd.f32 %v3094, %v3097
    %vm3099 = vweird.f32 %v3093
    %vm3100 = vweird.f32 %v3094
    %vm3101 = vmor %vm3099, %vm3100
    %v3102 = vsel %vm3101, %v3094, %v3098
    %v3103 = vand.u32 2147483647, %v3093
    %vm3104 = vcmp.eq.f32.partialorder %v3103, 8.507059e+37
    %v3105 = vand.u32 %v3093, 2147483648
    %v3106 = vor.u32 1.1754944e-38, %v3105
    %v3107 = vsel %vm3104, %v3106, %v3102
    %v3108 = vmul.f32 1.0, %v3107
    %v3109 = vxor.u32 %v3029, 2147483648
    %v3110 = vmul.f32 %v3109, 1.442695
    %v3111 = vpow.pop %v3110
    %v3112 = vadd.f32 %v3111, 1.0
    %v3113 = vrcp.pop %v3112
    %v3114 = vmul.f32 %v3112, %v3113
    %v3115 = vsub.f32 1.0, %v3114
    %v3116 = vmul.f32 %v3113, %v3115
    %v3117 = vadd.f32 %v3113, %v3116
    %vm3118 = vweird.f32 %v3112
    %vm3119 = vweird.f32 %v3113
    %vm3120 = vmor %vm3118, %vm3119
    %v3121 = vsel %vm3120, %v3113, %v3117
    %v3122 = vand.u32 2147483647, %v3112
    %vm3123 = vcmp.eq.f32.partialorder %v3122, 8.507059e+37
    %v3124 = vand.u32 %v3112, 2147483648
    %v3125 = vor.u32 1.1754944e-38, %v3124
    %v3126 = vsel %vm3123, %v3125, %v3121
    %v3127 = vmul.f32 1.0, %v3126
    %v3128 = vtanh.pop %v3059
    %v3129 = vxor.u32 %v3089, 2147483648
    %v3130 = vmul.f32 %v3129, 1.442695
    %v3131 = vpow.pop %v3130
    %v3132 = vadd.f32 %v3131, 1.0
    %v3133 = vrcp.pop %v3132
    %v3134 = vmul.f32 %v3132, %v3133
    %v3135 = vsub.f32 1.0, %v3134
    %v3136 = vmul.f32 %v3133, %v3135
    %v3137 = vadd.f32 %v3133, %v3136
    %vm3138 = vweird.f32 %v3132
    %vm3139 = vweird.f32 %v3133
    %vm3140 = vmor %vm3138, %vm3139
    %v3141 = vsel %vm3140, %v3133, %v3137
    %v3142 = vand.u32 2147483647, %v3132
    %vm3143 = vcmp.eq.f32.partialorder %v3142, 8.507059e+37
    %v3144 = vand.u32 %v3132, 2147483648
    %v3145 = vor.u32 1.1754944e-38, %v3144
    %v3146 = vsel %vm3143, %v3145, %v3141
    %v3147 = vmul.f32 1.0, %v3146
    %v3149 = vrot.slane %v2955, 6
    %v3151 = vmul.f32 %v3127, %v3149
    %3153 = vrot.lane.b32.xlu0 %v3128, 64
    %v3154 = vpop.permute.xlu0 %3153
    %v3156 = vmul.f32 %v3108, %v3154
    %3158 = vrot.lane.b32.xlu0 %v3156, 32
    %v3159 = vpop.permute.xlu0 %3158
    %v3161 = vadd.f32 %v3151, %v3159
    %v3162 = vtanh.pop %v3161
    %3164 = vrot.lane.b32.xlu0 %v3162, 64
    %v3165 = vpop.permute.xlu0 %3164
    %v3167 = vmul.f32 %v3147, %v3165
    %3169 = vrot.lane.b32.xlu0 %v3167, 32
    %v3170 = vpop.permute.xlu0 %3169
    %3172 = vst.msk [vmem:[#allocation2 + $0x8] sm:$0xc0] %vm846, %v3170
    %v3173 = vld [vmem:[#allocation2] sm:$0xff]
    %v3174 = vld [vmem:[#allocation2 + $0x8] sm:$0xff]
    %v3175 = vld [vmem:[#allocation12] sm:$0xff]
    %v3176 = vld [vmem:[#allocation12 + $0x8] sm:$0xff]
    %v3177 = vld [vmem:[#allocation12 + $0x10] sm:$0xff]
    %v3178 = vld [vmem:[#allocation12 + $0x18] sm:$0xff]
    %v3179 = vld [vmem:[%s8] sm:$0x1]
    %v3181 = vperm.slane %v3179, 0
    %v3184 = vsel %vm158, %v3173, 0
    %v3187 = vsel %vm158, %v3174, 0
    %3189 = vmatpush.msra.mxu0 0.0
    %3190 = vmatpush.msra.mxu0 0.0
    %3191 = vmatpush.msra.mxu0 0.0
    %3192 = vmatpush.msra.mxu0 0.0
    %3193 = vmatpush.msra.mxu0 0.0
    %3194 = vmatpush.msra.mxu0 0.0
    %3195 = vmatpush.msra.mxu0 0.0
    %3196 = vmatpush.msra.mxu0 0.0
    %3197 = vmatpush.msra.mxu0 0.0
    %3198 = vmatpush.msra.mxu0 0.0
    %3199 = vmatpush.msra.mxu0 0.0
    %3200 = vmatpush.msra.mxu0 0.0
    %3201 = vmatpush.msra.mxu0 %v3178
    %3202 = vmatpush.msra.mxu0 %v3177
    %3203 = vmatpush.msra.mxu0 %v3176
    %3204 = vmatpush.msra.mxu0 %v3175
    %3205 = vmatmul.f32.gmra.mxu0 %v3184
    %v3206 = vpop.f32.mrf.mxu0
    %v3207 = vadd.f32 %v3181, %v3206
    %3208 = vmatmul.f32.gmra.mxu0 %v3187
    %v3209 = vpop.f32.mrf.mxu0
    %v3210 = vadd.f32 %v3181, %v3209
    %3211 = vdwg.mxu0
    %v3212 = vmax.f32 %v3207, 0.0
    %v3213 = vmax.f32 %v3210, 0.0
    %v3214 = vld [vmem:[#allocation14] sm:$0xff]
    %v3215 = vld [vmem:[#allocation14 + $0x8] sm:$0xff]
    %v3216 = vld [vmem:[#allocation14 + $0x10] sm:$0xff]
    %v3217 = vld [vmem:[#allocation14 + $0x18] sm:$0xff]
    %v3218 = vld [vmem:[%s10] sm:$0x1]
    %v3220 = vperm.slane %v3218, 0
    %v3223 = vsel %vm158, %v3212, 0
    %v3226 = vsel %vm158, %v3213, 0
    %3228 = vmatpush.msra.mxu0 0.0
    %3229 = vmatpush.msra.mxu0 0.0
    %3230 = vmatpush.msra.mxu0 0.0
    %3231 = vmatpush.msra.mxu0 0.0
    %3232 = vmatpush.msra.mxu0 0.0
    %3233 = vmatpush.msra.mxu0 0.0
    %3234 = vmatpush.msra.mxu0 0.0
    %3235 = vmatpush.msra.mxu0 0.0
    %3236 = vmatpush.msra.mxu0 0.0
    %3237 = vmatpush.msra.mxu0 0.0
    %3238 = vmatpush.msra.mxu0 0.0
    %3239 = vmatpush.msra.mxu0 0.0
    %3240 = vmatpush.msra.mxu0 %v3217
    %3241 = vmatpush.msra.mxu0 %v3216
    %3242 = vmatpush.msra.mxu0 %v3215
    %3243 = vmatpush.msra.mxu0 %v3214
    %3244 = vmatmul.f32.gmra.mxu0 %v3223
    %v3245 = vpop.f32.mrf.mxu0
    %v3246 = vadd.f32 %v3220, %v3245
    %3247 = vmatmul.f32.gmra.mxu0 %v3226
    %v3248 = vpop.f32.mrf.mxu0
    %v3249 = vadd.f32 %v3220, %v3248
    %3250 = vdwg.mxu0
    %v3252 = vrot.slane %v3246, 2
    %v3254 = vadd.f32 %v3246, %v3252
    %v3255 = vrot.slane %v3246, 4
    %v3257 = vadd.f32 %v3254, %v3255
    %v3258 = vrot.slane %v3246, 6
    %v3260 = vadd.f32 %v3257, %v3258
    %v3261 = vadd.f32 %v3260, %v3249
    %v3263 = vrot.slane %v3249, 2
    %v3265 = vadd.f32 %v3261, %v3263
    %v3266 = vrot.slane %v3249, 4
    %v3268 = vadd.f32 %v3265, %v3266
    %v3269 = vrot.slane %v3249, 6
    %v3271 = vadd.f32 %v3268, %v3269
    %v3272 = vmul.f32 %v3271, 0.125
    %3273 = vst.msk [vmem:[#allocation15] sm:$0x3] %vm223, %v3272
    // Predicated region
    $region74: #{tpu_custom_call.1} parent=1 // pred_check
      _
    $region75: #{tpu_custom_call.1} parent=1 // pred_check_branch
      %3275 = sbr.rel (0) target = $region77
    $region76: #{tpu_custom_call.1} parent=1 // pred_region
      %3277 = vsyncadd [#allocation5], 0
      %s3279 = sshll.u32 [#allocation15], 4
      %s3280 = int_to_ptr.vmem [resolvable:$true] %s3279
      %s3281 = sshll.u32 %s11, 4
      %s3282 = int_to_ptr.hbm [resolvable:$true] %s3281
      %3284 = dma.vmem_to_hbm [thread:$0]  %s3280, 32, %s3282, [#allocation5]
    $region77: #{tpu_custom_call.1} parent=1 // pred_fallthru
      _
    // Predicated region
    $region78: #{tpu_custom_call.1} parent=1 // pred_check
      _
    $region79: #{tpu_custom_call.1} parent=1 // pred_check_branch
      %3286 = sbr.rel (0) target = $region81
    $region80: #{tpu_custom_call.1} parent=1 // pred_region
      %3288 = dma.done [#allocation5], 32
    $region81: #{tpu_custom_call.1} parent=1 // pred_fallthru
      _
    %3289 = vsyncpa [#allocation4], 1
    %3290 = vsyncpa [#allocation7], 1
    %3291 = vsyncpa [#allocation10], 1
    %3292 = vsyncpa [#allocation13], 1
    %3293 = vsyncpa [#allocation5], 1

</llo_original>
